<compile_context>
chip_gen: v7x
topology: tpu7x:2x2x1
jax: 0.10.0
libtpu: 0.0.40
codegen_flags: <defaults>
</compile_context>

<pallas_src>
import functools

import jax
import jax.numpy as jnp
import numpy as np
from jax.experimental import pallas as pl
from jax.experimental.pallas import tpu as pltpu

BN_EPS = 1e-5
_ROWS_PER_STEP = 2048     # target pixel rows per grid step when folding batch


# ----------------------------------------------------------------------------
# Fused Pallas kernel: low 1x1+BN, channel concat, 3x3+BN cat conv
# ----------------------------------------------------------------------------

def _pfm_cat_kernel(f_low_ref, a_high_ref, w_low_ref, b_low_ref, w3_ref,
                    b_cat_ref, o_ref, buf_ref, *, H, W, HW, NB):
    # f_low_ref : (NB, H*W, Cl)   flat channels-last low-res input
    # a_high_ref: (NB, H*W, 128)  high branch (already conv'd + resized, wrapper)
    # w_low/b_low : 1x1 conv weight (BN scale folded) + f32 affine shift
    # w3_ref    : (3, 768, 128)   3x3 conv weights per kernel row, lane order
    #                             [center | left-tap | right-tap] x 256 in-ch
    # b_cat_ref : (1, 128) f32    cat-conv affine shift
    # buf_ref   : ((H+2)*W, 768)  fused buffer scratch (cdt-resident)
    RB = (H + 2) * W
    buf_dt = buf_ref.dtype

    # (HW, 1) column index -> border masks for the shifted tap sections.
    col = jax.lax.broadcasted_iota(jnp.int32, (HW, 1), 0) % W
    not_last = col != (W - 1)    # pixel may act as a left neighbour
    not_first = col != 0         # pixel may act as a right neighbour

    for bi in range(NB):
        # ---- low branch 1x1 conv (+ folded BN), f32 accumulate ----
        a_low = jnp.dot(f_low_ref[bi], w_low_ref[...],
                        preferred_element_type=jnp.float32) + b_low_ref[...]
        a_low = a_low.astype(buf_dt)
        a_high = a_high_ref[bi].astype(buf_dt)
        zero = jnp.zeros_like(a_low)

        # ---- build the fused (center | left-tap | right-tap) buffer ----
        # Only the 2*(W+1) row-padding border rows are zeroed; done every step
        # so the kernel is correct under megacore sharding of the batch axis.
        buf_ref[0:W + 1, :] = jnp.zeros((W + 1, 768), buf_dt)
        buf_ref[W + HW - 1:RB, :] = jnp.zeros((RB - (W + HW - 1), 768), buf_dt)

        # center section (kx == 1)
        buf_ref[W:W + HW, 0:128] = a_low
        buf_ref[W:W + HW, 128:256] = a_high
        # left-tap section (kx == 0): pixel shifted +1 row, last column masked
        buf_ref[W + 1:W + 1 + HW, 256:384] = jnp.where(not_last, a_low, zero)
        buf_ref[W + 1:W + 1 + HW, 384:512] = jnp.where(not_last, a_high, zero)
        # right-tap section (kx == 2): pixel shifted -1 row, first column masked
        buf_ref[W - 1:W - 1 + HW, 512:640] = jnp.where(not_first, a_low, zero)
        buf_ref[W - 1:W - 1 + HW, 640:768] = jnp.where(not_first, a_high, zero)

        # ---- 3x3 conv: 3 wide MXU matmuls (one per kernel row), f32 acc ----
        acc = jnp.dot(buf_ref[0:HW, :], w3_ref[0],
                      preferred_element_type=jnp.float32)
        acc = acc + jnp.dot(buf_ref[W:W + HW, :], w3_ref[1],
                            preferred_element_type=jnp.float32)
        acc = acc + jnp.dot(buf_ref[2 * W:2 * W + HW, :], w3_ref[2],
                            preferred_element_type=jnp.float32)
        o_ref[bi] = (acc + b_cat_ref[...]).astype(o_ref.dtype)


# ----------------------------------------------------------------------------
# Wrapper / glue
# ----------------------------------------------------------------------------

def _interp_matrix(out_size, in_size):
    """Row-stochastic matrix matching F.interpolate(bilinear, align_corners=True)."""
    r = np.zeros((out_size, in_size), np.float32)
    if out_size == 1:
        src = np.zeros((1,), np.float32)
    else:
        src = np.arange(out_size, dtype=np.float32) * ((in_size - 1) / (out_size - 1))
    lo = np.clip(np.floor(src).astype(np.int32), 0, in_size - 1)
    hi = np.minimum(lo + 1, in_size - 1)
    frac = src - lo.astype(np.float32)
    rows = np.arange(out_size)
    r[rows, lo] += 1.0 - frac
    r[rows, hi] += frac
    return r


def _resize_bilinear_ac_nhwc(x, out_h, out_w):
    """Separable align_corners bilinear resize (two tiny einsums, f32)."""
    _, h, w, _ = x.shape
    if (h, w) == (out_h, out_w):
        return x
    r_h = jnp.asarray(_interp_matrix(out_h, h))
    r_w = jnp.asarray(_interp_matrix(out_w, w))
    hi = jax.lax.Precision.HIGHEST
    y = jnp.einsum("ih,nhwc->niwc", r_h, x, precision=hi)
    y = jnp.einsum("jw,niwc->nijc", r_w, y, precision=hi)
    return y


def _fold(cb, cdt):
    """Conv weight (HWIO) with BN scale folded in, plus the remaining f32 shift."""
    w = (cb["w"] * cb["scale"]).astype(cdt)
    shift = cb["shift"].reshape(1, -1).astype(jnp.float32)
    return w, shift


def _device_vmem_bytes():
    try:
        cap = getattr(pltpu.get_tpu_info(), "vmem_capacity_bytes", None)
        if cap:
            return int(cap)
    except Exception:
        pass
    return 64 << 20   # v7x per-TC floor; safe on every generation


def _const_spec(shape, index_map):
    """Grid-invariant operand: single-buffered if pipeline_mode is available."""
    try:
        return pl.BlockSpec(shape, index_map, pipeline_mode=pl.Buffered(1))
    except Exception:
        return pl.BlockSpec(shape, index_map)


def pfm_forward(params, f_low_nchw, f_high_nchw, mode=2, *, compute_dtype=jnp.float32):
    branch = {2: "fusion", 1: "rgb"}.get(mode, "t")
    p = params[branch]
    cdt = np.dtype(compute_dtype)

    N, Cl, H, W = f_low_nchw.shape
    _, Ch, h2, w2 = f_high_nchw.shape
    HW = H * W
    RB = (H + 2) * W

    # NCHW -> flat channels-last.
    f_low = jnp.transpose(f_low_nchw, (0, 2, 3, 1)).reshape(N, HW, Cl).astype(cdt)
    f_high = jnp.transpose(f_high_nchw, (0, 2, 3, 1)).astype(jnp.float32)

    # High branch: 1x1 conv (+BN scale) then SEPARABLE bilinear resize, as tiny
    # XLA einsums on the small image.  The BN shift is added after the resize in
    # f32 (exact since bilinear rows sum to 1).  When resolutions already match,
    # PyTorch skips the high conv entirely, so this is a pure reshape.
    if (h2, w2) != (H, W):
        w_high = (p["high"]["w"][0, 0] * p["high"]["scale"]).astype(jnp.float32)
        u = jnp.einsum("nhwc,cd->nhwd", f_high, w_high,
                       precision=jax.lax.Precision.HIGHEST)
        u = _resize_bilinear_ac_nhwc(u, H, W)
        a_high = (u + p["high"]["shift"].astype(jnp.float32)
                  ).reshape(N, HW, 128).astype(cdt)
    else:
        if Ch != 128:
            raise ValueError("equal-resolution inputs require channel_h == 128")
        a_high = f_high.reshape(N, HW, 128).astype(cdt)

    w_low, b_low = _fold(p["low"], cdt)
    w_low = w_low[0, 0]                                   # (Cl, 128)

    # 3x3 cat conv (BN scale folded), rearranged to 3 matrices of shape (768,128)
    # whose 768 rows are ordered [center(kx=1) | left-tap(kx=0) | right-tap(kx=2)].
    w_cat = (p["cat"]["w"] * p["cat"]["scale"]).astype(cdt)      # (3,3,256,128)
    w3 = jnp.stack([jnp.concatenate([w_cat[ky, 1], w_cat[ky, 0], w_cat[ky, 2]],
                                    axis=0) for ky in range(3)])  # (3,768,128)
    b_cat = p["cat"]["shift"].reshape(1, 128).astype(jnp.float32)

    # Fold several batch elements per grid step when HW is small; keep >=2 grid
    # steps (dual-TC on v7x) and make the fold evenly divide N.
    nb_cap = max(1, _ROWS_PER_STEP // max(HW, 1))
    if N >= 2:
        nb_cap = min(nb_cap, max(1, N // 2))
    nb = 1
    for d in range(1, min(nb_cap, N) + 1):
        if N % d == 0:
            nb = d

    # bf16-resident fused buffer when computing in bf16 (v6e/v7x win).
    # TODO(synk): prefer an f32 buffer on v5e even with bf16 inputs (no bf16 VPU).
    buf_dt = cdt

    kernel = functools.partial(_pfm_cat_kernel, H=H, W=W, HW=HW, NB=nb)

    # Device-aware VMEM budget: double-buffered per-batch operands + output,
    # single-buffered constants, fused-buffer scratch, plus headroom.
    it = cdt.itemsize
    vmem_need = (2 * nb * HW * (Cl + 128) * it          # f_low + a_high (x2 bufs)
                 + 2 * nb * HW * 128 * it               # output (x2 bufs)
                 + (Cl * 128 + 3 * 768 * 128) * it      # weights (Buffered(1))
                 + 2 * 128 * 4                          # f32 biases
                 + RB * 768 * it)                       # fused buffer scratch
    cap = _device_vmem_bytes()
    vmem_limit = max(4 << 20, min(int(1.25 * vmem_need) + (2 << 20), cap - (2 << 20)))

    out_flat = pl.pallas_call(
        kernel,
        out_shape=jax.ShapeDtypeStruct((N, HW, 128), cdt),
        grid_spec=pltpu.PrefetchScalarGridSpec(
            num_scalar_prefetch=0,
            grid=(N // nb,),
            in_specs=[
                pl.BlockSpec((nb, HW, Cl), lambda n: (n, 0, 0)),
                pl.BlockSpec((nb, HW, 128), lambda n: (n, 0, 0)),
                _const_spec((Cl, 128), lambda n: (0, 0)),
                _const_spec((1, 128), lambda n: (0, 0)),
                _const_spec((3, 768, 128), lambda n: (0, 0, 0)),
                _const_spec((1, 128), lambda n: (0, 0)),
            ],
            out_specs=pl.BlockSpec((nb, HW, 128), lambda n: (n, 0, 0)),
            scratch_shapes=[pltpu.VMEM((RB, 768), buf_dt)],
        ),
        compiler_params=pltpu.CompilerParams(
            dimension_semantics=("parallel",),
            vmem_limit_bytes=vmem_limit,
        ),
    )(f_low, a_high, w_low, b_low, w3, b_cat)

    # flat channels-last -> NCHW (interface parity with the PyTorch module).
    return jnp.transpose(out_flat.reshape(N, H, W, 128), (0, 3, 1, 2))


# ----------------------------------------------------------------------------
# Parameters
# ----------------------------------------------------------------------------

def _make_convblock_params(key, kh, kw, cin, cout):
    ks = jax.random.split(key, 6)
    w = jax.random.normal(ks[0], (kh, kw, cin, cout), jnp.float32) * 0.05   # HWIO
    b = jax.random.normal(ks[1], (cout,), jnp.float32) * 0.05
    gamma = jax.random.uniform(ks[2], (cout,), jnp.float32, 0.5, 1.5)
    beta = jax.random.normal(ks[3], (cout,), jnp.float32) * 0.1
    mean = jax.random.normal(ks[4], (cout,), jnp.float32) * 0.1
    var = jax.random.uniform(ks[5], (cout,), jnp.float32, 0.5, 1.5)
    scale = gamma / jnp.sqrt(var + BN_EPS)
    shift = beta - mean * scale + b * scale    # fold conv bias + BN into affine
    return dict(w=w, b=b, gamma=gamma, beta=beta, mean=mean, var=var,
                scale=scale, shift=shift)


def init_pfm_params(key, channel_h=128, channel_l=128):
    names = ["fusion", "rgb", "t"]
    params = {}
    keys = jax.random.split(key, 3 * len(names))
    for i, name in enumerate(names):
        params[name] = {
            "high": _make_convblock_params(keys[3 * i + 0], 1, 1, channel_h, 128),
            "cat":  _make_convblock_params(keys[3 * i + 1], 3, 3, 128 * 2, 128),
            "low":  _make_convblock_params(keys[3 * i + 2], 1, 1, channel_l, 128),
        }
    return params


# ----------------------------------------------------------------------------
# Pure-JAX reference (validation only)
# ----------------------------------------------------------------------------

def bilinear_resize_align_corners(x_nhwc, out_h, out_w):
    N, H, W, C = x_nhwc.shape

    def coords(out_size, in_size):
        if out_size == 1:
            src = jnp.zeros((1,), jnp.float32)
        else:
            src = jnp.arange(out_size, dtype=jnp.float32) * (in_size - 1) / (out_size - 1)
        lo = jnp.clip(jnp.floor(src).astype(jnp.int32), 0, in_size - 1)
        hi = jnp.clip(lo + 1, 0, in_size - 1)
        frac = src - lo.astype(jnp.float32)
        return lo, hi, frac

    hlo, hhi, hf = coords(out_h, H)
    wlo, whi, wf = coords(out_w, W)
    wf_ = wf[None, None, :, None]
    top = x_nhwc[:, hlo][:, :, wlo] * (1.0 - wf_) + x_nhwc[:, hlo][:, :, whi] * wf_
    bot = x_nhwc[:, hhi][:, :, wlo] * (1.0 - wf_) + x_nhwc[:, hhi][:, :, whi] * wf_
    hf_ = hf[None, :, None, None]
    return top * (1.0 - hf_) + bot * hf_


def _convblock_ref(x_nhwc, cb, pad):
    y = jax.lax.conv_general_dilated(
        x_nhwc, cb["w"], (1, 1), [(pad, pad), (pad, pad)],
        dimension_numbers=("NHWC", "HWIO", "NHWC"),
        precision=jax.lax.Precision.HIGHEST)
    y = y + cb["b"]
    return (y - cb["mean"]) / jnp.sqrt(cb["var"] + BN_EPS) * cb["gamma"] + cb["beta"]


def pfm_forward_ref(params, f_low_nchw, f_high_nchw, mode=2):
    branch = {2: "fusion", 1: "rgb"}.get(mode, "t")
    p = params[branch]
    f_low = jnp.transpose(f_low_nchw, (0, 2, 3, 1)).astype(jnp.float32)
    f_high = jnp.transpose(f_high_nchw, (0, 2, 3, 1)).astype(jnp.float32)
    H, W = f_low.shape[1], f_low.shape[2]
    if f_high.shape[1:3] != (H, W):
        f_high = bilinear_resize_align_corners(f_high, H, W)
        f_high = _convblock_ref(f_high, p["high"], pad=0)
    f_low = _convblock_ref(f_low, p["low"], pad=0)
    f_cat = _convblock_ref(jnp.concatenate([f_low, f_high], axis=-1), p["cat"], pad=1)
    return jnp.transpose(f_cat, (0, 3, 1, 2))


# ----------------------------------------------------------------------------

if __name__ == "__main__":
    key = jax.random.PRNGKey(0)
    k_par, k_par2, k_low, k_high, k_low2, k_high2 = jax.random.split(key, 6)

    # --- test 1: 2x upsampled high branch (fusion mode), f32 and bf16 paths ---
    channel_h, channel_l = 64, 64
    params = init_pfm_params(k_par, channel_h=channel_h, channel_l=channel_l)
    f_low = jax.random.normal(k_low, (2, channel_l, 16, 16), jnp.float32)
    f_high = jax.random.normal(k_high, (2, channel_h, 8, 8), jnp.float32)
    ref = pfm_forward_ref(params, f_low, f_high, mode=2)

    fwd = jax.jit(functools.partial(pfm_forward, params, mode=2))
    out = jax.block_until_ready(fwd(f_low, f_high))
    assert out.shape == (2, 128, 16, 16), out.shape
    assert jnp.allclose(out, ref, atol=2e-3, rtol=2e-3), (
        float(jnp.max(jnp.abs(out - ref))))

    # bf16 at the HBM boundary + bf16-resident fused buffer (v6e/v7x path).
    fwd_bf16 = jax.jit(functools.partial(pfm_forward, params, mode=2,
                                         compute_dtype=jnp.bfloat16))
    out_bf16 = jax.block_until_ready(fwd_bf16(f_low, f_high)).astype(jnp.float32)
    assert out_bf16.shape == (2, 128, 16, 16), out_bf16.shape
    assert jnp.allclose(out_bf16, ref, atol=8e-2, rtol=8e-2), (
        float(jnp.max(jnp.abs(out_bf16 - ref))))

    # --- test 2: equal-resolution high branch (rgb mode) + batch folding ---
    params2 = init_pfm_params(k_par2, channel_h=128, channel_l=64)
    f_low2 = jax.random.normal(k_low2, (4, 64, 8, 8), jnp.float32)
    f_high2 = jax.random.normal(k_high2, (4, 128, 8, 8), jnp.float32)
    ref2 = pfm_forward_ref(params2, f_low2, f_high2, mode=1)
    out2 = jax.block_until_ready(
        jax.jit(functools.partial(pfm_forward, params2, mode=1))(f_low2, f_high2))
    assert out2.shape == (4, 128, 8, 8), out2.shape
    assert jnp.allclose(out2, ref2, atol=2e-3, rtol=2e-3), (
        float(jnp.max(jnp.abs(out2 - ref2))))

    print("KERNEL_OK")
</pallas_src>

<mosaic_0001>
module attributes {stable_mosaic.version = 11 : i64} {
  func.func @_pfm_cat_kernel(%arg0: i32, %arg1: memref<1x256x64xf32, #tpu.memory_space<vmem>>, %arg2: memref<1x256x128xf32, #tpu.memory_space<vmem>>, %arg3: memref<64x128xf32, #tpu.memory_space<vmem>>, %arg4: memref<1x128xf32, #tpu.memory_space<vmem>>, %arg5: memref<3x768x128xf32, #tpu.memory_space<vmem>>, %arg6: memref<1x128xf32, #tpu.memory_space<vmem>>, %arg7: memref<1x256x128xf32, #tpu.memory_space<vmem>>, %arg8: memref<288x768xf32, #tpu.memory_space<vmem>>) attributes {dimension_semantics = [#tpu.dimension_semantics<parallel>], iteration_bounds = array<i64: 2>, scalar_prefetch = 0 : i64, scratch_operands = 1 : i64, tpu.core_type = #tpu.core_type<tc>, window_params = [{transform_indices = @transform_0, window_bounds = array<i64: 1, 256, 64>}, {transform_indices = @transform_1, window_bounds = array<i64: 1, 256, 128>}, {pipeline_mode = #tpu.pipeline_mode<synchronous>, transform_indices = @transform_2, window_bounds = array<i64: 64, 128>}, {pipeline_mode = #tpu.pipeline_mode<synchronous>, transform_indices = @transform_3, window_bounds = array<i64: 1, 128>}, {pipeline_mode = #tpu.pipeline_mode<synchronous>, transform_indices = @transform_4, window_bounds = array<i64: 3, 768, 128>}, {pipeline_mode = #tpu.pipeline_mode<synchronous>, transform_indices = @transform_5, window_bounds = array<i64: 1, 128>}, {transform_indices = @transform_6, window_bounds = array<i64: 1, 256, 128>}]} {
    %0 = tpu.iota {dimensions = array<i32: 0>} : vector<256x1xi32>
    %c16_i32 = arith.constant 16 : i32
    %c0_i32 = arith.constant 0 : i32
    %1 = arith.cmpi eq, %c16_i32, %c0_i32 : i32
    %c1_i32 = arith.constant 1 : i32
    %2 = arith.select %1, %c1_i32, %c16_i32 : i32
    %3 = vector.broadcast %2 : i32 to vector<256x1xi32>
    %4 = arith.remsi %0, %3 : vector<256x1xi32>
    %c0_i32_0 = arith.constant 0 : i32
    %5 = vector.broadcast %c0_i32_0 : i32 to vector<256x1xi32>
    %6 = arith.cmpi ne, %4, %5 : vector<256x1xi32>
    %c0_i32_1 = arith.constant 0 : i32
    %7 = vector.broadcast %c0_i32_1 : i32 to vector<256x1xi32>
    %8 = arith.cmpi slt, %4, %7 : vector<256x1xi32>
    %c0_i32_2 = arith.constant 0 : i32
    %9 = arith.cmpi slt, %2, %c0_i32_2 : i32
    %10 = vector.broadcast %9 : i1 to vector<256x1xi1>
    %11 = vector.broadcast %10 : vector<256x1xi1> to vector<256x1xi1>
    %12 = arith.xori %8, %11 : vector<256x1xi1>
    %13 = arith.andi %12, %6 : vector<256x1xi1>
    %14 = vector.broadcast %2 : i32 to vector<256x1xi32>
    %15 = arith.addi %4, %14 : vector<256x1xi32>
    %16 = arith.select %13, %15, %4 : vector<256x1xi1>, vector<256x1xi32>
    %c15_i32 = arith.constant 15 : i32
    %17 = vector.broadcast %c15_i32 : i32 to vector<256x1xi32>
    %18 = arith.cmpi ne, %16, %17 : vector<256x1xi32>
    %c0_i32_3 = arith.constant 0 : i32
    %19 = vector.broadcast %c0_i32_3 : i32 to vector<256x1xi32>
    %20 = arith.cmpi ne, %16, %19 : vector<256x1xi32>
    %c0 = arith.constant 0 : index
    %c0_4 = arith.constant 0 : index
    %c0_5 = arith.constant 0 : index
    %21 = vector.load %arg1[%c0, %c0_4, %c0_5] : memref<1x256x64xf32, #tpu.memory_space<vmem>>, vector<1x256x64xf32>
    %22 = vector.shape_cast %21 : vector<1x256x64xf32> to vector<256x64xf32>
    %c0_6 = arith.constant 0 : index
    %c0_7 = arith.constant 0 : index
    %23 = vector.load %arg3[%c0_6, %c0_7] : memref<64x128xf32, #tpu.memory_space<vmem>>, vector<64x128xf32>
    %cst = arith.constant dense<0.000000e+00> : vector<256x128xf32>
    %24 = tpu.matmul %22, %23, %cst {dimension_numbers = #tpu.dot_dimension_numbers<[1], [0], [0], [1], [0, 0, 1, 1], [], []>} : vector<256x64xf32>, vector<64x128xf32>, vector<256x128xf32> -> vector<256x128xf32>
    %c0_8 = arith.constant 0 : index
    %c0_9 = arith.constant 0 : index
    %25 = vector.load %arg4[%c0_8, %c0_9] : memref<1x128xf32, #tpu.memory_space<vmem>>, vector<1x128xf32>
    %26 = vector.broadcast %25 : vector<1x128xf32> to vector<256x128xf32>
    %27 = arith.addf %24, %26 : vector<256x128xf32>
    %c0_10 = arith.constant 0 : index
    %c0_11 = arith.constant 0 : index
    %c0_12 = arith.constant 0 : index
    %28 = vector.load %arg2[%c0_10, %c0_11, %c0_12] : memref<1x256x128xf32, #tpu.memory_space<vmem>>, vector<1x256x128xf32>
    %29 = vector.shape_cast %28 : vector<1x256x128xf32> to vector<256x128xf32>
    %cst_13 = arith.constant 0.000000e+00 : f32
    %30 = vector.broadcast %cst_13 : f32 to vector<256x128xf32>
    %cst_14 = arith.constant 0.000000e+00 : f32
    %31 = vector.broadcast %cst_14 : f32 to vector<17x768xf32>
    %c0_15 = arith.constant 0 : index
    %c0_16 = arith.constant 0 : index
    %32 = vector.load %arg8[%c0_15, %c0_16] : memref<288x768xf32, #tpu.memory_space<vmem>>, vector<17x768xf32>
    tpu.vector_store %arg8[%c0_15, %c0_16], %31 {strides = array<i32>} : memref<288x768xf32, #tpu.memory_space<vmem>>, vector<17x768xf32>,
    %cst_17 = arith.constant 0.000000e+00 : f32
    %33 = vector.broadcast %cst_17 : f32 to vector<17x768xf32>
    %c271 = arith.constant 271 : index
    %c0_18 = arith.constant 0 : index
    %34 = vector.load %arg8[%c271, %c0_18] : memref<288x768xf32, #tpu.memory_space<vmem>>, vector<17x768xf32>
    tpu.vector_store %arg8[%c271, %c0_18], %33 {strides = array<i32>} : memref<288x768xf32, #tpu.memory_space<vmem>>, vector<17x768xf32>,
    %c16 = arith.constant 16 : index
    %c0_19 = arith.constant 0 : index
    %35 = vector.load %arg8[%c16, %c0_19] : memref<288x768xf32, #tpu.memory_space<vmem>>, vector<256x128xf32>
    tpu.vector_store %arg8[%c16, %c0_19], %27 {strides = array<i32>} : memref<288x768xf32, #tpu.memory_space<vmem>>, vector<256x128xf32>,
    %c16_20 = arith.constant 16 : index
    %c128 = arith.constant 128 : index
    %36 = vector.load %arg8[%c16_20, %c128] : memref<288x768xf32, #tpu.memory_space<vmem>>, vector<256x128xf32>
    tpu.vector_store %arg8[%c16_20, %c128], %29 {strides = array<i32>} : memref<288x768xf32, #tpu.memory_space<vmem>>, vector<256x128xf32>,
    %37 = vector.shape_cast %18 : vector<256x1xi1> to vector<256x1xi1>
    %38 = vector.broadcast %37 : vector<256x1xi1> to vector<256x128xi1>
    %39 = arith.select %38, %27, %30 : vector<256x128xi1>, vector<256x128xf32>
    %c17 = arith.constant 17 : index
    %c256 = arith.constant 256 : index
    %40 = vector.load %arg8[%c17, %c256] : memref<288x768xf32, #tpu.memory_space<vmem>>, vector<256x128xf32>
    tpu.vector_store %arg8[%c17, %c256], %39 {strides = array<i32>} : memref<288x768xf32, #tpu.memory_space<vmem>>, vector<256x128xf32>,
    %41 = vector.shape_cast %18 : vector<256x1xi1> to vector<256x1xi1>
    %42 = vector.broadcast %41 : vector<256x1xi1> to vector<256x128xi1>
    %43 = arith.select %42, %29, %30 : vector<256x128xi1>, vector<256x128xf32>
    %c17_21 = arith.constant 17 : index
    %c384 = arith.constant 384 : index
    %44 = vector.load %arg8[%c17_21, %c384] : memref<288x768xf32, #tpu.memory_space<vmem>>, vector<256x128xf32>
    tpu.vector_store %arg8[%c17_21, %c384], %43 {strides = array<i32>} : memref<288x768xf32, #tpu.memory_space<vmem>>, vector<256x128xf32>,
    %45 = vector.shape_cast %20 : vector<256x1xi1> to vector<256x1xi1>
    %46 = vector.broadcast %45 : vector<256x1xi1> to vector<256x128xi1>
    %47 = arith.select %46, %27, %30 : vector<256x128xi1>, vector<256x128xf32>
    %c15 = arith.constant 15 : index
    %c512 = arith.constant 512 : index
    %48 = vector.load %arg8[%c15, %c512] : memref<288x768xf32, #tpu.memory_space<vmem>>, vector<256x128xf32>
    tpu.vector_store %arg8[%c15, %c512], %47 {strides = array<i32>} : memref<288x768xf32, #tpu.memory_space<vmem>>, vector<256x128xf32>,
    %49 = vector.shape_cast %20 : vector<256x1xi1> to vector<256x1xi1>
    %50 = vector.broadcast %49 : vector<256x1xi1> to vector<256x128xi1>
    %51 = arith.select %50, %29, %30 : vector<256x128xi1>, vector<256x128xf32>
    %c15_22 = arith.constant 15 : index
    %c640 = arith.constant 640 : index
    %52 = vector.load %arg8[%c15_22, %c640] : memref<288x768xf32, #tpu.memory_space<vmem>>, vector<256x128xf32>
    tpu.vector_store %arg8[%c15_22, %c640], %51 {strides = array<i32>} : memref<288x768xf32, #tpu.memory_space<vmem>>, vector<256x128xf32>,
    %c0_23 = arith.constant 0 : index
    %c0_24 = arith.constant 0 : index
    %53 = vector.load %arg8[%c0_23, %c0_24] : memref<288x768xf32, #tpu.memory_space<vmem>>, vector<256x768xf32>
    %c0_25 = arith.constant 0 : index
    %c0_26 = arith.constant 0 : index
    %c0_27 = arith.constant 0 : index
    %54 = vector.load %arg5[%c0_25, %c0_26, %c0_27] : memref<3x768x128xf32, #tpu.memory_space<vmem>>, vector<1x768x128xf32>
    %55 = vector.shape_cast %54 : vector<1x768x128xf32> to vector<768x128xf32>
    %cst_28 = arith.constant dense<0.000000e+00> : vector<256x128xf32>
    %56 = tpu.matmul %53, %55, %cst_28 {dimension_numbers = #tpu.dot_dimension_numbers<[1], [0], [0], [1], [0, 0, 1, 1], [], []>} : vector<256x768xf32>, vector<768x128xf32>, vector<256x128xf32> -> vector<256x128xf32>
    %c16_29 = arith.constant 16 : index
    %c0_30 = arith.constant 0 : index
    %57 = vector.load %arg8[%c16_29, %c0_30] : memref<288x768xf32, #tpu.memory_space<vmem>>, vector<256x768xf32>
    %c1 = arith.constant 1 : index
    %c0_31 = arith.constant 0 : index
    %c0_32 = arith.constant 0 : index
    %58 = vector.load %arg5[%c1, %c0_31, %c0_32] : memref<3x768x128xf32, #tpu.memory_space<vmem>>, vector<1x768x128xf32>
    %59 = vector.shape_cast %58 : vector<1x768x128xf32> to vector<768x128xf32>
    %cst_33 = arith.constant dense<0.000000e+00> : vector<256x128xf32>
    %60 = tpu.matmul %57, %59, %cst_33 {dimension_numbers = #tpu.dot_dimension_numbers<[1], [0], [0], [1], [0, 0, 1, 1], [], []>} : vector<256x768xf32>, vector<768x128xf32>, vector<256x128xf32> -> vector<256x128xf32>
    %61 = arith.addf %56, %60 : vector<256x128xf32>
    %c32 = arith.constant 32 : index
    %c0_34 = arith.constant 0 : index
    %62 = vector.load %arg8[%c32, %c0_34] : memref<288x768xf32, #tpu.memory_space<vmem>>, vector<256x768xf32>
    %c2 = arith.constant 2 : index
    %c0_35 = arith.constant 0 : index
    %c0_36 = arith.constant 0 : index
    %63 = vector.load %arg5[%c2, %c0_35, %c0_36] : memref<3x768x128xf32, #tpu.memory_space<vmem>>, vector<1x768x128xf32>
    %64 = vector.shape_cast %63 : vector<1x768x128xf32> to vector<768x128xf32>
    %cst_37 = arith.constant dense<0.000000e+00> : vector<256x128xf32>
    %65 = tpu.matmul %62, %64, %cst_37 {dimension_numbers = #tpu.dot_dimension_numbers<[1], [0], [0], [1], [0, 0, 1, 1], [], []>} : vector<256x768xf32>, vector<768x128xf32>, vector<256x128xf32> -> vector<256x128xf32>
    %66 = arith.addf %61, %65 : vector<256x128xf32>
    %c0_38 = arith.constant 0 : index
    %c0_39 = arith.constant 0 : index
    %67 = vector.load %arg6[%c0_38, %c0_39] : memref<1x128xf32, #tpu.memory_space<vmem>>, vector<1x128xf32>
    %68 = vector.broadcast %67 : vector<1x128xf32> to vector<256x128xf32>
    %69 = arith.addf %66, %68 : vector<256x128xf32>
    %c0_40 = arith.constant 0 : index
    %c0_41 = arith.constant 0 : index
    %c0_42 = arith.constant 0 : index
    %70 = vector.load %arg7[%c0_40, %c0_41, %c0_42] : memref<1x256x128xf32, #tpu.memory_space<vmem>>, vector<1x256x128xf32>
    %71 = vector.shape_cast %70 : vector<1x256x128xf32> to vector<256x128xf32>
    %72 = vector.shape_cast %69 : vector<256x128xf32> to vector<1x256x128xf32>
    tpu.vector_store %arg7[%c0_40, %c0_41, %c0_42], %72 {strides = array<i32>} : memref<1x256x128xf32, #tpu.memory_space<vmem>>, vector<1x256x128xf32>,
    return
  }
  func.func @transform_0(%arg0: i32) -> (i32, i32, i32) {
    %c0_i32 = arith.constant 0 : i32
    %c0_i32_0 = arith.constant 0 : i32
    %c0_i32_1 = arith.constant 0 : i32
    return %arg0, %c0_i32, %c0_i32_0 : i32, i32, i32
  }
  func.func @transform_1(%arg0: i32) -> (i32, i32, i32) {
    %c0_i32 = arith.constant 0 : i32
    %c0_i32_0 = arith.constant 0 : i32
    %c0_i32_1 = arith.constant 0 : i32
    return %arg0, %c0_i32, %c0_i32_0 : i32, i32, i32
  }
  func.func @transform_2(%arg0: i32) -> (i32, i32) {
    %c0_i32 = arith.constant 0 : i32
    %c0_i32_0 = arith.constant 0 : i32
    %c0_i32_1 = arith.constant 0 : i32
    return %c0_i32, %c0_i32_0 : i32, i32
  }
  func.func @transform_3(%arg0: i32) -> (i32, i32) {
    %c0_i32 = arith.constant 0 : i32
    %c0_i32_0 = arith.constant 0 : i32
    %c0_i32_1 = arith.constant 0 : i32
    return %c0_i32, %c0_i32_0 : i32, i32
  }
  func.func @transform_4(%arg0: i32) -> (i32, i32, i32) {
    %c0_i32 = arith.constant 0 : i32
    %c0_i32_0 = arith.constant 0 : i32
    %c0_i32_1 = arith.constant 0 : i32
    %c0_i32_2 = arith.constant 0 : i32
    return %c0_i32, %c0_i32_0, %c0_i32_1 : i32, i32, i32
  }
  func.func @transform_5(%arg0: i32) -> (i32, i32) {
    %c0_i32 = arith.constant 0 : i32
    %c0_i32_0 = arith.constant 0 : i32
    %c0_i32_1 = arith.constant 0 : i32
    return %c0_i32, %c0_i32_0 : i32, i32
  }
  func.func @transform_6(%arg0: i32) -> (i32, i32, i32) {
    %c0_i32 = arith.constant 0 : i32
    %c0_i32_0 = arith.constant 0 : i32
    %c0_i32_1 = arith.constant 0 : i32
    return %arg0, %c0_i32, %c0_i32_0 : i32, i32, i32
  }
}

</mosaic_0001>

<llo_original>
// kernel: pfm_forward.1
$region0: #{pfm_forward.1}
  #allocation0 [shape = 'u32[]', space=smem, size = 0x4, offset = 0x4, fixed_abs, tag = 'smem constant byte address 0x4 - core index']
  #allocation1 [shape = 'u32[144,128]{1,0:T(1,128)}', space=vmem, size = 0x12000, scoped, tag = 'internal scratch']
  #allocation2 [shape = 'f32[288,768]{1,0:T(8,128)}', space=vmem, size = 0xd8000, scoped, tag = 'scratch operand']
  %s0 = inlined_call_operand.hbm [shape: f32[2,256,64], index: 0, kind: input, shape index: {}]
  %s1 = inlined_call_operand.vmem [shape: f32[2,256,128], index: 1, kind: input, shape index: {}]
  %s2 = inlined_call_operand.hbm [shape: f32[64,128], index: 2, kind: input, shape index: {}]
  %s3 = inlined_call_operand.hbm [shape: f32[1,128], index: 3, kind: input, shape index: {}]
  %s4 = inlined_call_operand.hbm [shape: f32[3,768,128], index: 4, kind: input, shape index: {}]
  %s5 = inlined_call_operand.hbm [shape: f32[1,128], index: 5, kind: input, shape index: {}]
  %s6 = inlined_call_operand.hbm [shape: f32[2,256,128], index: 6, kind: output, shape index: {}]
  %s7 = sld [smem:[#allocation0]]
  $region77: #{pfm_forward.1} parent=0
    _
  %s9 = ssub.s32 1, %s7
  %s10 = scalar_select 0, %s9, %s7
  $region1: #{pfm_forward.1} parent=0
    #allocation3 [shape = 'u8[262144]{0}', space=vmem, size = 0x40000, scoped, tag = 'input window, operand 0']
    #allocation4 [shape = 's32[2]{0}', space=sflag, size = 0x8, scoped, tag = 'scoped memory for pfm_forward.1']
    #allocation5 [shape = 's32[2]{0}', space=sflag, size = 0x8, scoped, tag = 'scoped memory for pfm_forward.1']
    #allocation6 [shape = 'u8[32768]{0}', space=vmem, size = 0x8000, scoped, tag = 'input window, operand 2, single buffered']
    #allocation7 [shape = 's32[1]{0}', space=sflag, size = 0x4, scoped, tag = 'scoped memory for pfm_forward.1']
    #allocation8 [shape = 'u8[512]{0}', space=vmem, size = 0x400, scoped, tag = 'input window, operand 3, single buffered']
    #allocation9 [shape = 'u8[1179648]{0}', space=vmem, size = 0x120000, scoped, tag = 'input window, operand 4, single buffered']
    #allocation10 [shape = 's32[1]{0}', space=sflag, size = 0x4, scoped, tag = 'scoped memory for pfm_forward.1']
    #allocation11 [shape = 'u8[512]{0}', space=vmem, size = 0x400, scoped, tag = 'input window, operand 5, single buffered']
    #allocation12 [shape = 'u8[262144]{0}', space=vmem, size = 0x40000, scoped, tag = 'output window, operand 0']
    %11 = vsyncpa [#allocation4], 0
    %s12 = scalar_lea.sflag [#allocation4], 1
    %13 = vsyncpa %s12, 0
    %14 = vsyncpa [#allocation7], 0
    %15 = vsyncpa [#allocation10], 0
    %16 = vsyncpa [#allocation5], 0
    %s17 = scalar_lea.sflag [#allocation5], 1
    %18 = vsyncpa %s17, 0
    loop: start=0, step=1, limit=4
    $region2: #{pfm_forward.1} parent=1 // loop_pre_header
      _
    $region3: #{pfm_forward.1} parent=1 // loop_header
      %s20 = sphi 0, %s24
      %p21 = scmp.ge.s32.totalorder %s20, 4
      %s30 = sphi 0, %s32
      %s33 = sphi 0, %s30
      %s34 = sphi 0, %s33
      %s50 = sphi 0, %s34
      %s56 = sphi 0, %s58
      %s59 = sphi 0, %s56
      %s60 = sphi 0, %s59
      %s76 = sphi 0, %s60
      %s80 = sphi 0, %s80
      %s82 = sphi 0, %s80
      %s83 = sphi 0, %s82
      %s97 = sphi 0, %s83
      %s101 = sphi 0, %s101
      %s103 = sphi 0, %s101
      %s104 = sphi 0, %s103
      %s118 = sphi 0, %s104
      %s122 = sphi 0, %s122
      %s124 = sphi 0, %s122
      %s125 = sphi 0, %s124
      %s139 = sphi 0, %s125
      %s143 = sphi 0, %s143
      %s145 = sphi 0, %s143
      %s146 = sphi 0, %s145
      %s160 = sphi 0, %s146
      %s166 = sphi 0, %s168
      %s169 = sphi 0, %s166
      %s170 = sphi 0, %s169
      %s186 = sphi 0, %s170
    $region4: #{pfm_forward.1} parent=1 // loop_header_branch
      %23 = sbr.rel (%p21) target = $region8
    $region5: #{pfm_forward.1} parent=1 // loop_body
      %s25 = ssub.s32 %s20, 1
      %s26 = ssub.s32 %s20, 2
      %s27 = sadd.s32 %s20, 1
      %s28 = ssub.s32 %s20, %s27
      %p29 = scmp.eq.s32.totalorder %s28, 0
      %s31 = sadd.s32 %s30, 1
      %s32 = scalar_select %p29, %s30, %s31
      %p35 = pneg %p29
      %p36 = scmp.eq.s32.totalorder %s20, 1
      %p37 = por %p35, %p36
      %p38 = scmp.ne.s32.totalorder %s30, %s33
      %p39 = scmp.eq.s32.totalorder %s20, 0
      %p40 = por %p38, %p39
      %p41 = scmp.ne.s32.totalorder %s30, %s33
      %p42 = scmp.eq.s32.totalorder %s25, 1
      %p43 = por %p41, %p42
      %p44 = scmp.ne.s32.totalorder %s33, %s34
      %p45 = scmp.eq.s32.totalorder %s25, 0
      %p46 = por %p44, %p45
      %p47 = scmp.ne.s32.totalorder %s33, %s34
      %p48 = scmp.eq.s32.totalorder %s26, 1
      %p49 = por %p47, %p48
      %p51 = scmp.ne.s32.totalorder %s34, %s50
      %p52 = scmp.eq.s32.totalorder %s26, 0
      %p53 = por %p51, %p52
      %s54 = ssub.s32 %s20, %s27
      %p55 = scmp.eq.s32.totalorder %s54, 0
      %s57 = sadd.s32 %s56, 1
      %s58 = scalar_select %p55, %s56, %s57
      %p61 = pneg %p55
      %p62 = scmp.eq.s32.totalorder %s20, 1
      %p63 = por %p61, %p62
      %p64 = scmp.ne.s32.totalorder %s56, %s59
      %p65 = scmp.eq.s32.totalorder %s20, 0
      %p66 = por %p64, %p65
      %p67 = scmp.ne.s32.totalorder %s56, %s59
      %p68 = scmp.eq.s32.totalorder %s25, 1
      %p69 = por %p67, %p68
      %p70 = scmp.ne.s32.totalorder %s59, %s60
      %p71 = scmp.eq.s32.totalorder %s25, 0
      %p72 = por %p70, %p71
      %p73 = scmp.ne.s32.totalorder %s59, %s60
      %p74 = scmp.eq.s32.totalorder %s26, 1
      %p75 = por %p73, %p74
      %p77 = scmp.ne.s32.totalorder %s60, %s76
      %p78 = scmp.eq.s32.totalorder %s26, 0
      %p79 = por %p77, %p78
      %s81 = sadd.s32 %s80, 1
      %p84 = scmp.eq.s32.totalorder %s20, 1
      %p85 = scmp.ne.s32.totalorder %s80, %s82
      %p86 = scmp.eq.s32.totalorder %s20, 0
      %p87 = por %p85, %p86
      %p88 = scmp.ne.s32.totalorder %s80, %s82
      %p89 = scmp.eq.s32.totalorder %s25, 1
      %p90 = por %p88, %p89
      %p91 = scmp.ne.s32.totalorder %s82, %s83
      %p92 = scmp.eq.s32.totalorder %s25, 0
      %p93 = por %p91, %p92
      %p94 = scmp.ne.s32.totalorder %s82, %s83
      %p95 = scmp.eq.s32.totalorder %s26, 1
      %p96 = por %p94, %p95
      %p98 = scmp.ne.s32.totalorder %s83, %s97
      %p99 = scmp.eq.s32.totalorder %s26, 0
      %p100 = por %p98, %p99
      %s102 = sadd.s32 %s101, 1
      %p105 = scmp.eq.s32.totalorder %s20, 1
      %p106 = scmp.ne.s32.totalorder %s101, %s103
      %p107 = scmp.eq.s32.totalorder %s20, 0
      %p108 = por %p106, %p107
      %p109 = scmp.ne.s32.totalorder %s101, %s103
      %p110 = scmp.eq.s32.totalorder %s25, 1
      %p111 = por %p109, %p110
      %p112 = scmp.ne.s32.totalorder %s103, %s104
      %p113 = scmp.eq.s32.totalorder %s25, 0
      %p114 = por %p112, %p113
      %p115 = scmp.ne.s32.totalorder %s103, %s104
      %p116 = scmp.eq.s32.totalorder %s26, 1
      %p117 = por %p115, %p116
      %p119 = scmp.ne.s32.totalorder %s104, %s118
      %p120 = scmp.eq.s32.totalorder %s26, 0
      %p121 = por %p119, %p120
      %s123 = sadd.s32 %s122, 1
      %p126 = scmp.eq.s32.totalorder %s20, 1
      %p127 = scmp.ne.s32.totalorder %s122, %s124
      %p128 = scmp.eq.s32.totalorder %s20, 0
      %p129 = por %p127, %p128
      %p130 = scmp.ne.s32.totalorder %s122, %s124
      %p131 = scmp.eq.s32.totalorder %s25, 1
      %p132 = por %p130, %p131
      %p133 = scmp.ne.s32.totalorder %s124, %s125
      %p134 = scmp.eq.s32.totalorder %s25, 0
      %p135 = por %p133, %p134
      %p136 = scmp.ne.s32.totalorder %s124, %s125
      %p137 = scmp.eq.s32.totalorder %s26, 1
      %p138 = por %p136, %p137
      %p140 = scmp.ne.s32.totalorder %s125, %s139
      %p141 = scmp.eq.s32.totalorder %s26, 0
      %p142 = por %p140, %p141
      %s144 = sadd.s32 %s143, 1
      %p147 = scmp.eq.s32.totalorder %s20, 1
      %p148 = scmp.ne.s32.totalorder %s143, %s145
      %p149 = scmp.eq.s32.totalorder %s20, 0
      %p150 = por %p148, %p149
      %p151 = scmp.ne.s32.totalorder %s143, %s145
      %p152 = scmp.eq.s32.totalorder %s25, 1
      %p153 = por %p151, %p152
      %p154 = scmp.ne.s32.totalorder %s145, %s146
      %p155 = scmp.eq.s32.totalorder %s25, 0
      %p156 = por %p154, %p155
      %p157 = scmp.ne.s32.totalorder %s145, %s146
      %p158 = scmp.eq.s32.totalorder %s26, 1
      %p159 = por %p157, %p158
      %p161 = scmp.ne.s32.totalorder %s146, %s160
      %p162 = scmp.eq.s32.totalorder %s26, 0
      %p163 = por %p161, %p162
      %s164 = ssub.s32 %s20, %s27
      %p165 = scmp.eq.s32.totalorder %s164, 0
      %s167 = sadd.s32 %s166, 1
      %s168 = scalar_select %p165, %s166, %s167
      %p171 = pneg %p165
      %p172 = scmp.eq.s32.totalorder %s20, 1
      %p173 = por %p171, %p172
      %p174 = scmp.ne.s32.totalorder %s166, %s169
      %p175 = scmp.eq.s32.totalorder %s20, 0
      %p176 = por %p174, %p175
      %p177 = scmp.ne.s32.totalorder %s166, %s169
      %p178 = scmp.eq.s32.totalorder %s25, 1
      %p179 = por %p177, %p178
      %p180 = scmp.ne.s32.totalorder %s169, %s170
      %p181 = scmp.eq.s32.totalorder %s25, 0
      %p182 = por %p180, %p181
      %p183 = scmp.ne.s32.totalorder %s169, %s170
      %p184 = scmp.eq.s32.totalorder %s26, 1
      %p185 = por %p183, %p184
      %p187 = scmp.ne.s32.totalorder %s170, %s186
      %p188 = scmp.eq.s32.totalorder %s26, 0
      %p189 = por %p187, %p188
      %p190 = scmp.le.s32.totalorder 1, %s20
      %p191 = scmp.lt.s32.totalorder %s20, 3
      %p192 = pnand %p190, %p191
      %p193 = pneg %p192
      // Predicated region
      $region9: #{pfm_forward.1} parent=5 // pred_check
        _
      $region10: #{pfm_forward.1} parent=5 // pred_check_branch
        %195 = sbr.rel (%p192) target = $region12
      $region11: #{pfm_forward.1} parent=5 // pred_region
        %s196 = ssub.s32 %s20, 1
        // Predicated region
        $region13: #{pfm_forward.1} parent=11 // pred_check
          %p197 = pneg %p93
        $region14: #{pfm_forward.1} parent=11 // pred_check_branch
          %199 = sbr.rel (%p197) target = $region16
        $region15: #{pfm_forward.1} parent=11 // pred_region
          %s201 = ssub.s32 1024, 1024
          %202 = vsyncadd [#allocation7], %s201
          %s203 = sshll.u32 [#allocation6], 4
          %s204 = int_to_ptr.vmem [resolvable:$true] %s203
          %209 = dma.hbm_to_vmem [thread:$0]  %s2, 1024, %s204, [#allocation7], 128, 128, 8
        $region16: #{pfm_forward.1} parent=11 // pred_fallthru
          _
        // Predicated region
        $region17: #{pfm_forward.1} parent=11 // pred_check
          %p210 = pneg %p114
        $region18: #{pfm_forward.1} parent=11 // pred_check_branch
          %212 = sbr.rel (%p210) target = $region20
        $region19: #{pfm_forward.1} parent=11 // pred_region
          %s214 = ssub.s32 16, 16
          %215 = vsyncadd [#allocation7], %s214
          %s217 = sshll.u32 [#allocation8], 4
          %s218 = int_to_ptr.vmem [resolvable:$true] %s217
          %220 = dma.hbm_to_vmem [thread:$0]  %s3, 16, %s218, [#allocation7]
        $region20: #{pfm_forward.1} parent=11 // pred_fallthru
          _
        // Predicated region
        $region21: #{pfm_forward.1} parent=11 // pred_check
          %p221 = pneg %p135
        $region22: #{pfm_forward.1} parent=11 // pred_check_branch
          %223 = sbr.rel (%p221) target = $region24
        $region23: #{pfm_forward.1} parent=11 // pred_region
          %s225 = ssub.s32 36864, 36864
          %226 = vsyncadd [#allocation10], %s225
          %s227 = sshll.u32 [#allocation9], 4
          %s228 = int_to_ptr.vmem [resolvable:$true] %s227
          %233 = dma.hbm_to_vmem [thread:$0]  %s4, 36864, %s228, [#allocation10], 128, 128, 8
        $region24: #{pfm_forward.1} parent=11 // pred_fallthru
          _
        // Predicated region
        $region25: #{pfm_forward.1} parent=11 // pred_check
          %p234 = pneg %p156
        $region26: #{pfm_forward.1} parent=11 // pred_check_branch
          %236 = sbr.rel (%p234) target = $region28
        $region27: #{pfm_forward.1} parent=11 // pred_region
          %s238 = ssub.s32 16, 16
          %239 = vsyncadd [#allocation10], %s238
          %s241 = sshll.u32 [#allocation11], 4
          %s242 = int_to_ptr.vmem [resolvable:$true] %s241
          %244 = dma.hbm_to_vmem [thread:$0]  %s5, 16, %s242, [#allocation10]
        $region28: #{pfm_forward.1} parent=11 // pred_fallthru
          _
      $region12: #{pfm_forward.1} parent=5 // pred_fallthru
        _
      %p245 = scmp.lt.s32.totalorder %s20, 2
      // Predicated region
      $region29: #{pfm_forward.1} parent=5 // pred_check
        %p246 = pneg %p245
      $region30: #{pfm_forward.1} parent=5 // pred_check_branch
        %248 = sbr.rel (%p246) target = $region32
      $region31: #{pfm_forward.1} parent=5 // pred_region
        // Predicated region
        $region33: #{pfm_forward.1} parent=31 // pred_check
          %p249 = pneg %p40
        $region34: #{pfm_forward.1} parent=31 // pred_check_branch
          %251 = sbr.rel (%p249) target = $region36
        $region35: #{pfm_forward.1} parent=31 // pred_region
          %s252 = sand.u32 %s30, 1
          %s253 = scalar_lea.sflag [#allocation4], %s252
          %s254 = sand.u32 %s30, 1
          %s255 = smul.addr %s254, 256
          %s256 = scalar_lea.vmem [#allocation3], %s255
          %s258 = ssub.s32 4096, 4096
          %259 = vsyncadd %s253, %s258
          %s260 = smul.addr %s20, 32
          %s261 = smul.addr %s260, 128
          %s262 = scalar_lea.hbm %s0, %s261
          %s263 = sshll.u32 %s256, 4
          %s264 = int_to_ptr.vmem [resolvable:$true] %s263
          %269 = dma.hbm_to_vmem [thread:$0]  %s262, 4096, %s264, %s253, 128, 128, 8
        $region36: #{pfm_forward.1} parent=31 // pred_fallthru
          _
        // Predicated region
        $region37: #{pfm_forward.1} parent=31 // pred_check
          %p270 = pneg %p66
        $region38: #{pfm_forward.1} parent=31 // pred_check_branch
          %272 = sbr.rel (%p270) target = $region40
        $region39: #{pfm_forward.1} parent=31 // pred_region
          %p273 = scmp.lt.s32.totalorder %s20, 1
          %s274 = scalar_select %p273, %s20, 1
          %s275 = smul.addr %s274, 32
          %s276 = smul.addr %s275, 8
          %s277 = scalar_lea.vmem %s1, %s276
        $region40: #{pfm_forward.1} parent=31 // pred_fallthru
          _
      $region32: #{pfm_forward.1} parent=5 // pred_fallthru
        _
      %p278 = scmp.le.s32.totalorder 1, %s20
      %p279 = scmp.lt.s32.totalorder %s20, 3
      %p280 = pnand %p278, %p279
      %p281 = pneg %p280
      // Predicated region
      $region41: #{pfm_forward.1} parent=5 // pred_check
        _
      $region42: #{pfm_forward.1} parent=5 // pred_check_branch
        %283 = sbr.rel (%p280) target = $region44
      $region43: #{pfm_forward.1} parent=5 // pred_region
        %s284 = ssub.s32 %s20, 1
        %s285 = sand.u32 %s33, 1
        %s286 = scalar_lea.sflag [#allocation4], %s285
        %s287 = sand.u32 %s33, 1
        %s288 = smul.addr %s287, 256
        %s289 = scalar_lea.vmem [#allocation3], %s288
        // Predicated region
        $region45: #{pfm_forward.1} parent=43 // pred_check
          %p290 = pneg %p46
        $region46: #{pfm_forward.1} parent=43 // pred_check_branch
          %292 = sbr.rel (%p290) target = $region48
        $region47: #{pfm_forward.1} parent=43 // pred_region
          %293 = dma.done %s286, 4096
        $region48: #{pfm_forward.1} parent=43 // pred_fallthru
          _
        // Predicated region
        $region49: #{pfm_forward.1} parent=43 // pred_check
          %p294 = pneg %p93
        $region50: #{pfm_forward.1} parent=43 // pred_check_branch
          %296 = sbr.rel (%p294) target = $region52
        $region51: #{pfm_forward.1} parent=43 // pred_region
          %297 = dma.done [#allocation7], 1024
        $region52: #{pfm_forward.1} parent=43 // pred_fallthru
          _
        // Predicated region
        $region53: #{pfm_forward.1} parent=43 // pred_check
          %p298 = pneg %p114
        $region54: #{pfm_forward.1} parent=43 // pred_check_branch
          %300 = sbr.rel (%p298) target = $region56
        $region55: #{pfm_forward.1} parent=43 // pred_region
          %301 = dma.done [#allocation7], 16
        $region56: #{pfm_forward.1} parent=43 // pred_fallthru
          _
        // Predicated region
        $region57: #{pfm_forward.1} parent=43 // pred_check
          %p302 = pneg %p135
        $region58: #{pfm_forward.1} parent=43 // pred_check_branch
          %304 = sbr.rel (%p302) target = $region60
        $region59: #{pfm_forward.1} parent=43 // pred_region
          %305 = dma.done [#allocation10], 36864
        $region60: #{pfm_forward.1} parent=43 // pred_fallthru
          _
        // Predicated region
        $region61: #{pfm_forward.1} parent=43 // pred_check
          %p306 = pneg %p156
        $region62: #{pfm_forward.1} parent=43 // pred_check_branch
          %308 = sbr.rel (%p306) target = $region64
        $region63: #{pfm_forward.1} parent=43 // pred_region
          %309 = dma.done [#allocation10], 16
        $region64: #{pfm_forward.1} parent=43 // pred_fallthru
          _
        %s310 = sand.u32 %s33, 1
        %s311 = scalar_lea.sflag [#allocation4], %s310
        %s312 = sand.u32 %s33, 1
        %s313 = smul.addr %s312, 256
        %s314 = scalar_lea.vmem [#allocation3], %s313
        %p315 = pneg %p46
        %p316 = pneg %p43
        %p317 = scmp.lt.s32.totalorder %s25, 1
        %s318 = scalar_select %p317, %s25, 1
        %s319 = smul.addr %s318, 32
        %s320 = smul.addr %s319, 8
        %s321 = scalar_lea.vmem %s1, %s320
        %p322 = pneg %p72
        %p323 = pneg %p69
        %p324 = pneg %p93
        %p325 = pneg %p90
        %p326 = pneg %p114
        %p327 = pneg %p111
        %p328 = pneg %p135
        %p329 = pneg %p132
        %p330 = pneg %p156
        %p331 = pneg %p153
        %p332 = pneg %p182
        %p333 = pneg %p179
        %s334 = sand.u32 %s169, 1
        %s335 = scalar_lea.sflag [#allocation5], %s334
        %s336 = sand.u32 %s169, 1
        %s337 = smul.addr %s336, 256
        %s338 = scalar_lea.vmem [#allocation12], %s337
        %p339 = scmp.lt.s32.totalorder %s25, 1
        %s340 = scalar_select %p339, %s25, 1
        %s341 = smul.addr %s340, 32
        %s342 = smul.addr %s341, 8
        %s343 = scalar_lea.vmem %s1, %s342
        %v344 = vlaneseq
        %v345 = vshrl.u32 %v344, 7
        %v346 = vadd.s32 %v345, 8
        %v347 = vadd.s32 %v345, 16
        %v348 = vadd.s32 %v345, 24
        %v349 = vadd.s32 %v345, 32
        %v350 = vadd.s32 %v345, 40
        %v351 = vadd.s32 %v345, 48
        %v352 = vadd.s32 %v345, 56
        %v353 = vadd.s32 %v345, 64
        %v354 = vadd.s32 %v345, 72
        %v355 = vadd.s32 %v345, 80
        %v356 = vadd.s32 %v345, 88
        %v357 = vadd.s32 %v345, 96
        %v358 = vadd.s32 %v345, 104
        %v359 = vadd.s32 %v345, 112
        %v360 = vadd.s32 %v345, 120
        %v361 = vadd.s32 %v345, 128
        %v362 = vadd.s32 %v345, 136
        %v363 = vadd.s32 %v345, 144
        %v364 = vadd.s32 %v345, 152
        %v365 = vadd.s32 %v345, 160
        %v366 = vadd.s32 %v345, 168
        %v367 = vadd.s32 %v345, 176
        %v368 = vadd.s32 %v345, 184
        %v369 = vadd.s32 %v345, 192
        %v370 = vadd.s32 %v345, 200
        %v371 = vadd.s32 %v345, 208
        %v372 = vadd.s32 %v345, 216
        %v373 = vadd.s32 %v345, 224
        %v374 = vadd.s32 %v345, 232
        %v375 = vadd.s32 %v345, 240
        %v376 = vadd.s32 %v345, 248
        %vm377 = vcmp.lt.s32.totalorder %v345, 0
        %v378 = vsub.s32 0, %v345
        %v379 = vsel %vm377, %v378, %v345
        %v380 = vshrl.u32 %v379, 4
        %v381 = vand.u32 %v379, 15
        %v382 = vsub.s32 0, %v381
        %v383 = vsel %vm377, %v382, %v381
        %vm384 = vcmp.lt.s32.totalorder %v346, 0
        %v385 = vsub.s32 0, %v346
        %v386 = vsel %vm384, %v385, %v346
        %v387 = vshrl.u32 %v386, 4
        %v388 = vand.u32 %v386, 15
        %v389 = vsub.s32 0, %v388
        %v390 = vsel %vm384, %v389, %v388
        %vm391 = vcmp.lt.s32.totalorder %v347, 0
        %v392 = vsub.s32 0, %v347
        %v393 = vsel %vm391, %v392, %v347
        %v394 = vshrl.u32 %v393, 4
        %v395 = vand.u32 %v393, 15
        %v396 = vsub.s32 0, %v395
        %v397 = vsel %vm391, %v396, %v395
        %vm398 = vcmp.lt.s32.totalorder %v348, 0
        %v399 = vsub.s32 0, %v348
        %v400 = vsel %vm398, %v399, %v348
        %v401 = vshrl.u32 %v400, 4
        %v402 = vand.u32 %v400, 15
        %v403 = vsub.s32 0, %v402
        %v404 = vsel %vm398, %v403, %v402
        %vm405 = vcmp.lt.s32.totalorder %v349, 0
        %v406 = vsub.s32 0, %v349
        %v407 = vsel %vm405, %v406, %v349
        %v408 = vshrl.u32 %v407, 4
        %v409 = vand.u32 %v407, 15
        %v410 = vsub.s32 0, %v409
        %v411 = vsel %vm405, %v410, %v409
        %vm412 = vcmp.lt.s32.totalorder %v350, 0
        %v413 = vsub.s32 0, %v350
        %v414 = vsel %vm412, %v413, %v350
        %v415 = vshrl.u32 %v414, 4
        %v416 = vand.u32 %v414, 15
        %v417 = vsub.s32 0, %v416
        %v418 = vsel %vm412, %v417, %v416
        %vm419 = vcmp.lt.s32.totalorder %v351, 0
        %v420 = vsub.s32 0, %v351
        %v421 = vsel %vm419, %v420, %v351
        %v422 = vshrl.u32 %v421, 4
        %v423 = vand.u32 %v421, 15
        %v424 = vsub.s32 0, %v423
        %v425 = vsel %vm419, %v424, %v423
        %vm426 = vcmp.lt.s32.totalorder %v352, 0
        %v427 = vsub.s32 0, %v352
        %v428 = vsel %vm426, %v427, %v352
        %v429 = vshrl.u32 %v428, 4
        %v430 = vand.u32 %v428, 15
        %v431 = vsub.s32 0, %v430
        %v432 = vsel %vm426, %v431, %v430
        %vm433 = vcmp.lt.s32.totalorder %v353, 0
        %v434 = vsub.s32 0, %v353
        %v435 = vsel %vm433, %v434, %v353
        %v436 = vshrl.u32 %v435, 4
        %v437 = vand.u32 %v435, 15
        %v438 = vsub.s32 0, %v437
        %v439 = vsel %vm433, %v438, %v437
        %vm440 = vcmp.lt.s32.totalorder %v354, 0
        %v441 = vsub.s32 0, %v354
        %v442 = vsel %vm440, %v441, %v354
        %v443 = vshrl.u32 %v442, 4
        %v444 = vand.u32 %v442, 15
        %v445 = vsub.s32 0, %v444
        %v446 = vsel %vm440, %v445, %v444
        %vm447 = vcmp.lt.s32.totalorder %v355, 0
        %v448 = vsub.s32 0, %v355
        %v449 = vsel %vm447, %v448, %v355
        %v450 = vshrl.u32 %v449, 4
        %v451 = vand.u32 %v449, 15
        %v452 = vsub.s32 0, %v451
        %v453 = vsel %vm447, %v452, %v451
        %vm454 = vcmp.lt.s32.totalorder %v356, 0
        %v455 = vsub.s32 0, %v356
        %v456 = vsel %vm454, %v455, %v356
        %v457 = vshrl.u32 %v456, 4
        %v458 = vand.u32 %v456, 15
        %v459 = vsub.s32 0, %v458
        %v460 = vsel %vm454, %v459, %v458
        %vm461 = vcmp.lt.s32.totalorder %v357, 0
        %v462 = vsub.s32 0, %v357
        %v463 = vsel %vm461, %v462, %v357
        %v464 = vshrl.u32 %v463, 4
        %v465 = vand.u32 %v463, 15
        %v466 = vsub.s32 0, %v465
        %v467 = vsel %vm461, %v466, %v465
        %vm468 = vcmp.lt.s32.totalorder %v358, 0
        %v469 = vsub.s32 0, %v358
        %v470 = vsel %vm468, %v469, %v358
        %v471 = vshrl.u32 %v470, 4
        %v472 = vand.u32 %v470, 15
        %v473 = vsub.s32 0, %v472
        %v474 = vsel %vm468, %v473, %v472
        %vm475 = vcmp.lt.s32.totalorder %v359, 0
        %v476 = vsub.s32 0, %v359
        %v477 = vsel %vm475, %v476, %v359
        %v478 = vshrl.u32 %v477, 4
        %v479 = vand.u32 %v477, 15
        %v480 = vsub.s32 0, %v479
        %v481 = vsel %vm475, %v480, %v479
        %vm482 = vcmp.lt.s32.totalorder %v360, 0
        %v483 = vsub.s32 0, %v360
        %v484 = vsel %vm482, %v483, %v360
        %v485 = vshrl.u32 %v484, 4
        %v486 = vand.u32 %v484, 15
        %v487 = vsub.s32 0, %v486
        %v488 = vsel %vm482, %v487, %v486
        %vm489 = vcmp.lt.s32.totalorder %v361, 0
        %v490 = vsub.s32 0, %v361
        %v491 = vsel %vm489, %v490, %v361
        %v492 = vshrl.u32 %v491, 4
        %v493 = vand.u32 %v491, 15
        %v494 = vsub.s32 0, %v493
        %v495 = vsel %vm489, %v494, %v493
        %vm496 = vcmp.lt.s32.totalorder %v362, 0
        %v497 = vsub.s32 0, %v362
        %v498 = vsel %vm496, %v497, %v362
        %v499 = vshrl.u32 %v498, 4
        %v500 = vand.u32 %v498, 15
        %v501 = vsub.s32 0, %v500
        %v502 = vsel %vm496, %v501, %v500
        %vm503 = vcmp.lt.s32.totalorder %v363, 0
        %v504 = vsub.s32 0, %v363
        %v505 = vsel %vm503, %v504, %v363
        %v506 = vshrl.u32 %v505, 4
        %v507 = vand.u32 %v505, 15
        %v508 = vsub.s32 0, %v507
        %v509 = vsel %vm503, %v508, %v507
        %vm510 = vcmp.lt.s32.totalorder %v364, 0
        %v511 = vsub.s32 0, %v364
        %v512 = vsel %vm510, %v511, %v364
        %v513 = vshrl.u32 %v512, 4
        %v514 = vand.u32 %v512, 15
        %v515 = vsub.s32 0, %v514
        %v516 = vsel %vm510, %v515, %v514
        %vm517 = vcmp.lt.s32.totalorder %v365, 0
        %v518 = vsub.s32 0, %v365
        %v519 = vsel %vm517, %v518, %v365
        %v520 = vshrl.u32 %v519, 4
        %v521 = vand.u32 %v519, 15
        %v522 = vsub.s32 0, %v521
        %v523 = vsel %vm517, %v522, %v521
        %vm524 = vcmp.lt.s32.totalorder %v366, 0
        %v525 = vsub.s32 0, %v366
        %v526 = vsel %vm524, %v525, %v366
        %v527 = vshrl.u32 %v526, 4
        %v528 = vand.u32 %v526, 15
        %v529 = vsub.s32 0, %v528
        %v530 = vsel %vm524, %v529, %v528
        %vm531 = vcmp.lt.s32.totalorder %v367, 0
        %v532 = vsub.s32 0, %v367
        %v533 = vsel %vm531, %v532, %v367
        %v534 = vshrl.u32 %v533, 4
        %v535 = vand.u32 %v533, 15
        %v536 = vsub.s32 0, %v535
        %v537 = vsel %vm531, %v536, %v535
        %vm538 = vcmp.lt.s32.totalorder %v368, 0
        %v539 = vsub.s32 0, %v368
        %v540 = vsel %vm538, %v539, %v368
        %v541 = vshrl.u32 %v540, 4
        %v542 = vand.u32 %v540, 15
        %v543 = vsub.s32 0, %v542
        %v544 = vsel %vm538, %v543, %v542
        %vm545 = vcmp.lt.s32.totalorder %v369, 0
        %v546 = vsub.s32 0, %v369
        %v547 = vsel %vm545, %v546, %v369
        %v548 = vshrl.u32 %v547, 4
        %v549 = vand.u32 %v547, 15
        %v550 = vsub.s32 0, %v549
        %v551 = vsel %vm545, %v550, %v549
        %vm552 = vcmp.lt.s32.totalorder %v370, 0
        %v553 = vsub.s32 0, %v370
        %v554 = vsel %vm552, %v553, %v370
        %v555 = vshrl.u32 %v554, 4
        %v556 = vand.u32 %v554, 15
        %v557 = vsub.s32 0, %v556
        %v558 = vsel %vm552, %v557, %v556
        %vm559 = vcmp.lt.s32.totalorder %v371, 0
        %v560 = vsub.s32 0, %v371
        %v561 = vsel %vm559, %v560, %v371
        %v562 = vshrl.u32 %v561, 4
        %v563 = vand.u32 %v561, 15
        %v564 = vsub.s32 0, %v563
        %v565 = vsel %vm559, %v564, %v563
        %vm566 = vcmp.lt.s32.totalorder %v372, 0
        %v567 = vsub.s32 0, %v372
        %v568 = vsel %vm566, %v567, %v372
        %v569 = vshrl.u32 %v568, 4
        %v570 = vand.u32 %v568, 15
        %v571 = vsub.s32 0, %v570
        %v572 = vsel %vm566, %v571, %v570
        %vm573 = vcmp.lt.s32.totalorder %v373, 0
        %v574 = vsub.s32 0, %v373
        %v575 = vsel %vm573, %v574, %v373
        %v576 = vshrl.u32 %v575, 4
        %v577 = vand.u32 %v575, 15
        %v578 = vsub.s32 0, %v577
        %v579 = vsel %vm573, %v578, %v577
        %vm580 = vcmp.lt.s32.totalorder %v374, 0
        %v581 = vsub.s32 0, %v374
        %v582 = vsel %vm580, %v581, %v374
        %v583 = vshrl.u32 %v582, 4
        %v584 = vand.u32 %v582, 15
        %v585 = vsub.s32 0, %v584
        %v586 = vsel %vm580, %v585, %v584
        %vm587 = vcmp.lt.s32.totalorder %v375, 0
        %v588 = vsub.s32 0, %v375
        %v589 = vsel %vm587, %v588, %v375
        %v590 = vshrl.u32 %v589, 4
        %v591 = vand.u32 %v589, 15
        %v592 = vsub.s32 0, %v591
        %v593 = vsel %vm587, %v592, %v591
        %vm594 = vcmp.lt.s32.totalorder %v376, 0
        %v595 = vsub.s32 0, %v376
        %v596 = vsel %vm594, %v595, %v376
        %v597 = vshrl.u32 %v596, 4
        %v598 = vand.u32 %v596, 15
        %v599 = vsub.s32 0, %v598
        %v600 = vsel %vm594, %v599, %v598
        %vm601 = vcmp.ne.s32.totalorder %v383, 0
        %vm602 = vcmp.ne.s32.totalorder %v390, 0
        %vm603 = vcmp.ne.s32.totalorder %v397, 0
        %vm604 = vcmp.ne.s32.totalorder %v404, 0
        %vm605 = vcmp.ne.s32.totalorder %v411, 0
        %vm606 = vcmp.ne.s32.totalorder %v418, 0
        %vm607 = vcmp.ne.s32.totalorder %v425, 0
        %vm608 = vcmp.ne.s32.totalorder %v432, 0
        %vm609 = vcmp.ne.s32.totalorder %v439, 0
        %vm610 = vcmp.ne.s32.totalorder %v446, 0
        %vm611 = vcmp.ne.s32.totalorder %v453, 0
        %vm612 = vcmp.ne.s32.totalorder %v460, 0
        %vm613 = vcmp.ne.s32.totalorder %v467, 0
        %vm614 = vcmp.ne.s32.totalorder %v474, 0
        %vm615 = vcmp.ne.s32.totalorder %v481, 0
        %vm616 = vcmp.ne.s32.totalorder %v488, 0
        %vm617 = vcmp.ne.s32.totalorder %v495, 0
        %vm618 = vcmp.ne.s32.totalorder %v502, 0
        %vm619 = vcmp.ne.s32.totalorder %v509, 0
        %vm620 = vcmp.ne.s32.totalorder %v516, 0
        %vm621 = vcmp.ne.s32.totalorder %v523, 0
        %vm622 = vcmp.ne.s32.totalorder %v530, 0
        %vm623 = vcmp.ne.s32.totalorder %v537, 0
        %vm624 = vcmp.ne.s32.totalorder %v544, 0
        %vm625 = vcmp.ne.s32.totalorder %v551, 0
        %vm626 = vcmp.ne.s32.totalorder %v558, 0
        %vm627 = vcmp.ne.s32.totalorder %v565, 0
        %vm628 = vcmp.ne.s32.totalorder %v572, 0
        %vm629 = vcmp.ne.s32.totalorder %v579, 0
        %vm630 = vcmp.ne.s32.totalorder %v586, 0
        %vm631 = vcmp.ne.s32.totalorder %v593, 0
        %vm632 = vcmp.ne.s32.totalorder %v600, 0
        %vm633 = vcmp.lt.s32.totalorder %v383, 0
        %vm634 = vcmp.lt.s32.totalorder %v390, 0
        %vm635 = vcmp.lt.s32.totalorder %v397, 0
        %vm636 = vcmp.lt.s32.totalorder %v404, 0
        %vm637 = vcmp.lt.s32.totalorder %v411, 0
        %vm638 = vcmp.lt.s32.totalorder %v418, 0
        %vm639 = vcmp.lt.s32.totalorder %v425, 0
        %vm640 = vcmp.lt.s32.totalorder %v432, 0
        %vm641 = vcmp.lt.s32.totalorder %v439, 0
        %vm642 = vcmp.lt.s32.totalorder %v446, 0
        %vm643 = vcmp.lt.s32.totalorder %v453, 0
        %vm644 = vcmp.lt.s32.totalorder %v460, 0
        %vm645 = vcmp.lt.s32.totalorder %v467, 0
        %vm646 = vcmp.lt.s32.totalorder %v474, 0
        %vm647 = vcmp.lt.s32.totalorder %v481, 0
        %vm648 = vcmp.lt.s32.totalorder %v488, 0
        %vm649 = vcmp.lt.s32.totalorder %v495, 0
        %vm650 = vcmp.lt.s32.totalorder %v502, 0
        %vm651 = vcmp.lt.s32.totalorder %v509, 0
        %vm652 = vcmp.lt.s32.totalorder %v516, 0
        %vm653 = vcmp.lt.s32.totalorder %v523, 0
        %vm654 = vcmp.lt.s32.totalorder %v530, 0
        %vm655 = vcmp.lt.s32.totalorder %v537, 0
        %vm656 = vcmp.lt.s32.totalorder %v544, 0
        %vm657 = vcmp.lt.s32.totalorder %v551, 0
        %vm658 = vcmp.lt.s32.totalorder %v558, 0
        %vm659 = vcmp.lt.s32.totalorder %v565, 0
        %vm660 = vcmp.lt.s32.totalorder %v572, 0
        %vm661 = vcmp.lt.s32.totalorder %v579, 0
        %vm662 = vcmp.lt.s32.totalorder %v586, 0
        %vm663 = vcmp.lt.s32.totalorder %v593, 0
        %vm664 = vcmp.lt.s32.totalorder %v600, 0
        %vm665 = vmand %vm633, %vm601
        %vm666 = vmand %vm634, %vm602
        %vm667 = vmand %vm635, %vm603
        %vm668 = vmand %vm636, %vm604
        %vm669 = vmand %vm637, %vm605
        %vm670 = vmand %vm638, %vm606
        %vm671 = vmand %vm639, %vm607
        %vm672 = vmand %vm640, %vm608
        %vm673 = vmand %vm641, %vm609
        %vm674 = vmand %vm642, %vm610
        %vm675 = vmand %vm643, %vm611
        %vm676 = vmand %vm644, %vm612
        %vm677 = vmand %vm645, %vm613
        %vm678 = vmand %vm646, %vm614
        %vm679 = vmand %vm647, %vm615
        %vm680 = vmand %vm648, %vm616
        %vm681 = vmand %vm649, %vm617
        %vm682 = vmand %vm650, %vm618
        %vm683 = vmand %vm651, %vm619
        %vm684 = vmand %vm652, %vm620
        %vm685 = vmand %vm653, %vm621
        %vm686 = vmand %vm654, %vm622
        %vm687 = vmand %vm655, %vm623
        %vm688 = vmand %vm656, %vm624
        %vm689 = vmand %vm657, %vm625
        %vm690 = vmand %vm658, %vm626
        %vm691 = vmand %vm659, %vm627
        %vm692 = vmand %vm660, %vm628
        %vm693 = vmand %vm661, %vm629
        %vm694 = vmand %vm662, %vm630
        %vm695 = vmand %vm663, %vm631
        %vm696 = vmand %vm664, %vm632
        %v697 = vadd.s32 %v383, 16
        %v698 = vadd.s32 %v390, 16
        %v699 = vadd.s32 %v397, 16
        %v700 = vadd.s32 %v404, 16
        %v701 = vadd.s32 %v411, 16
        %v702 = vadd.s32 %v418, 16
        %v703 = vadd.s32 %v425, 16
        %v704 = vadd.s32 %v432, 16
        %v705 = vadd.s32 %v439, 16
        %v706 = vadd.s32 %v446, 16
        %v707 = vadd.s32 %v453, 16
        %v708 = vadd.s32 %v460, 16
        %v709 = vadd.s32 %v467, 16
        %v710 = vadd.s32 %v474, 16
        %v711 = vadd.s32 %v481, 16
        %v712 = vadd.s32 %v488, 16
        %v713 = vadd.s32 %v495, 16
        %v714 = vadd.s32 %v502, 16
        %v715 = vadd.s32 %v509, 16
        %v716 = vadd.s32 %v516, 16
        %v717 = vadd.s32 %v523, 16
        %v718 = vadd.s32 %v530, 16
        %v719 = vadd.s32 %v537, 16
        %v720 = vadd.s32 %v544, 16
        %v721 = vadd.s32 %v551, 16
        %v722 = vadd.s32 %v558, 16
        %v723 = vadd.s32 %v565, 16
        %v724 = vadd.s32 %v572, 16
        %v725 = vadd.s32 %v579, 16
        %v726 = vadd.s32 %v586, 16
        %v727 = vadd.s32 %v593, 16
        %v728 = vadd.s32 %v600, 16
        %v729 = vsel %vm665, %v697, %v383
        %v730 = vsel %vm666, %v698, %v390
        %v731 = vsel %vm667, %v699, %v397
        %v732 = vsel %vm668, %v700, %v404
        %v733 = vsel %vm669, %v701, %v411
        %v734 = vsel %vm670, %v702, %v418
        %v735 = vsel %vm671, %v703, %v425
        %v736 = vsel %vm672, %v704, %v432
        %v737 = vsel %vm673, %v705, %v439
        %v738 = vsel %vm674, %v706, %v446
        %v739 = vsel %vm675, %v707, %v453
        %v740 = vsel %vm676, %v708, %v460
        %v741 = vsel %vm677, %v709, %v467
        %v742 = vsel %vm678, %v710, %v474
        %v743 = vsel %vm679, %v711, %v481
        %v744 = vsel %vm680, %v712, %v488
        %v745 = vsel %vm681, %v713, %v495
        %v746 = vsel %vm682, %v714, %v502
        %v747 = vsel %vm683, %v715, %v509
        %v748 = vsel %vm684, %v716, %v516
        %v749 = vsel %vm685, %v717, %v523
        %v750 = vsel %vm686, %v718, %v530
        %v751 = vsel %vm687, %v719, %v537
        %v752 = vsel %vm688, %v720, %v544
        %v753 = vsel %vm689, %v721, %v551
        %v754 = vsel %vm690, %v722, %v558
        %v755 = vsel %vm691, %v723, %v565
        %v756 = vsel %vm692, %v724, %v572
        %v757 = vsel %vm693, %v725, %v579
        %v758 = vsel %vm694, %v726, %v586
        %v759 = vsel %vm695, %v727, %v593
        %v760 = vsel %vm696, %v728, %v600
        %vm761 = vcmp.ne.s32.totalorder %v729, 15
        %vm762 = vcmp.ne.s32.totalorder %v730, 15
        %vm763 = vcmp.ne.s32.totalorder %v731, 15
        %vm764 = vcmp.ne.s32.totalorder %v732, 15
        %vm765 = vcmp.ne.s32.totalorder %v733, 15
        %vm766 = vcmp.ne.s32.totalorder %v734, 15
        %vm767 = vcmp.ne.s32.totalorder %v735, 15
        %vm768 = vcmp.ne.s32.totalorder %v736, 15
        %vm769 = vcmp.ne.s32.totalorder %v737, 15
        %vm770 = vcmp.ne.s32.totalorder %v738, 15
        %vm771 = vcmp.ne.s32.totalorder %v739, 15
        %vm772 = vcmp.ne.s32.totalorder %v740, 15
        %vm773 = vcmp.ne.s32.totalorder %v741, 15
        %vm774 = vcmp.ne.s32.totalorder %v742, 15
        %vm775 = vcmp.ne.s32.totalorder %v743, 15
        %vm776 = vcmp.ne.s32.totalorder %v744, 15
        %vm777 = vcmp.ne.s32.totalorder %v745, 15
        %vm778 = vcmp.ne.s32.totalorder %v746, 15
        %vm779 = vcmp.ne.s32.totalorder %v747, 15
        %vm780 = vcmp.ne.s32.totalorder %v748, 15
        %vm781 = vcmp.ne.s32.totalorder %v749, 15
        %vm782 = vcmp.ne.s32.totalorder %v750, 15
        %vm783 = vcmp.ne.s32.totalorder %v751, 15
        %vm784 = vcmp.ne.s32.totalorder %v752, 15
        %vm785 = vcmp.ne.s32.totalorder %v753, 15
        %vm786 = vcmp.ne.s32.totalorder %v754, 15
        %vm787 = vcmp.ne.s32.totalorder %v755, 15
        %vm788 = vcmp.ne.s32.totalorder %v756, 15
        %vm789 = vcmp.ne.s32.totalorder %v757, 15
        %vm790 = vcmp.ne.s32.totalorder %v758, 15
        %vm791 = vcmp.ne.s32.totalorder %v759, 15
        %vm792 = vcmp.ne.s32.totalorder %v760, 15
        %vm793 = vcmp.ne.s32.totalorder %v729, 0
        %vm794 = vcmp.ne.s32.totalorder %v730, 0
        %vm795 = vcmp.ne.s32.totalorder %v731, 0
        %vm796 = vcmp.ne.s32.totalorder %v732, 0
        %vm797 = vcmp.ne.s32.totalorder %v733, 0
        %vm798 = vcmp.ne.s32.totalorder %v734, 0
        %vm799 = vcmp.ne.s32.totalorder %v735, 0
        %vm800 = vcmp.ne.s32.totalorder %v736, 0
        %vm801 = vcmp.ne.s32.totalorder %v737, 0
        %vm802 = vcmp.ne.s32.totalorder %v738, 0
        %vm803 = vcmp.ne.s32.totalorder %v739, 0
        %vm804 = vcmp.ne.s32.totalorder %v740, 0
        %vm805 = vcmp.ne.s32.totalorder %v741, 0
        %vm806 = vcmp.ne.s32.totalorder %v742, 0
        %vm807 = vcmp.ne.s32.totalorder %v743, 0
        %vm808 = vcmp.ne.s32.totalorder %v744, 0
        %vm809 = vcmp.ne.s32.totalorder %v745, 0
        %vm810 = vcmp.ne.s32.totalorder %v746, 0
        %vm811 = vcmp.ne.s32.totalorder %v747, 0
        %vm812 = vcmp.ne.s32.totalorder %v748, 0
        %vm813 = vcmp.ne.s32.totalorder %v749, 0
        %vm814 = vcmp.ne.s32.totalorder %v750, 0
        %vm815 = vcmp.ne.s32.totalorder %v751, 0
        %vm816 = vcmp.ne.s32.totalorder %v752, 0
        %vm817 = vcmp.ne.s32.totalorder %v753, 0
        %vm818 = vcmp.ne.s32.totalorder %v754, 0
        %vm819 = vcmp.ne.s32.totalorder %v755, 0
        %vm820 = vcmp.ne.s32.totalorder %v756, 0
        %vm821 = vcmp.ne.s32.totalorder %v757, 0
        %vm822 = vcmp.ne.s32.totalorder %v758, 0
        %vm823 = vcmp.ne.s32.totalorder %v759, 0
        %vm824 = vcmp.ne.s32.totalorder %v760, 0
        %v825 = vld [vmem:[%s289] sm:$0xff]
        %v826 = vld [vmem:[%s289 + $0x8] sm:$0xff]
        %v827 = vld [vmem:[%s289 + $0x10] sm:$0xff]
        %v828 = vld [vmem:[%s289 + $0x18] sm:$0xff]
        %v829 = vld [vmem:[%s289 + $0x20] sm:$0xff]
        %v830 = vld [vmem:[%s289 + $0x28] sm:$0xff]
        %v831 = vld [vmem:[%s289 + $0x30] sm:$0xff]
        %v832 = vld [vmem:[%s289 + $0x38] sm:$0xff]
        %v833 = vld [vmem:[%s289 + $0x40] sm:$0xff]
        %v834 = vld [vmem:[%s289 + $0x48] sm:$0xff]
        %v835 = vld [vmem:[%s289 + $0x50] sm:$0xff]
        %v836 = vld [vmem:[%s289 + $0x58] sm:$0xff]
        %v837 = vld [vmem:[%s289 + $0x60] sm:$0xff]
        %v838 = vld [vmem:[%s289 + $0x68] sm:$0xff]
        %v839 = vld [vmem:[%s289 + $0x70] sm:$0xff]
        %v840 = vld [vmem:[%s289 + $0x78] sm:$0xff]
        %v841 = vld [vmem:[%s289 + $0x80] sm:$0xff]
        %v842 = vld [vmem:[%s289 + $0x88] sm:$0xff]
        %v843 = vld [vmem:[%s289 + $0x90] sm:$0xff]
        %v844 = vld [vmem:[%s289 + $0x98] sm:$0xff]
        %v845 = vld [vmem:[%s289 + $0xa0] sm:$0xff]
        %v846 = vld [vmem:[%s289 + $0xa8] sm:$0xff]
        %v847 = vld [vmem:[%s289 + $0xb0] sm:$0xff]
        %v848 = vld [vmem:[%s289 + $0xb8] sm:$0xff]
        %v849 = vld [vmem:[%s289 + $0xc0] sm:$0xff]
        %v850 = vld [vmem:[%s289 + $0xc8] sm:$0xff]
        %v851 = vld [vmem:[%s289 + $0xd0] sm:$0xff]
        %v852 = vld [vmem:[%s289 + $0xd8] sm:$0xff]
        %v853 = vld [vmem:[%s289 + $0xe0] sm:$0xff]
        %v854 = vld [vmem:[%s289 + $0xe8] sm:$0xff]
        %v855 = vld [vmem:[%s289 + $0xf0] sm:$0xff]
        %v856 = vld [vmem:[%s289 + $0xf8] sm:$0xff]
        %v857 = vld [vmem:[#allocation6] sm:$0xff]
        %v858 = vld [vmem:[#allocation6 + $0x8] sm:$0xff]
        %v859 = vld [vmem:[#allocation6 + $0x10] sm:$0xff]
        %v860 = vld [vmem:[#allocation6 + $0x18] sm:$0xff]
        %v861 = vld [vmem:[#allocation6 + $0x20] sm:$0xff]
        %v862 = vld [vmem:[#allocation6 + $0x28] sm:$0xff]
        %v863 = vld [vmem:[#allocation6 + $0x30] sm:$0xff]
        %v864 = vld [vmem:[#allocation6 + $0x38] sm:$0xff]
        %v865 = vld [vmem:[#allocation8] sm:$0x1]
        %v867 = vlaneseq
        %v868 = vshrl.u32 %v867, 7
        %v869 = vsub.s32 0, %v868
        %v870 = vrot.slane %v865, %v869
        %vm872 = vcmask 523264
        %v874 = vsel %vm872, %v825, 0
        %v877 = vsel %vm872, %v826, 0
        %v880 = vsel %vm872, %v827, 0
        %v883 = vsel %vm872, %v828, 0
        %v886 = vsel %vm872, %v829, 0
        %v889 = vsel %vm872, %v830, 0
        %v892 = vsel %vm872, %v831, 0
        %v895 = vsel %vm872, %v832, 0
        %v898 = vsel %vm872, %v833, 0
        %v901 = vsel %vm872, %v834, 0
        %v904 = vsel %vm872, %v835, 0
        %v907 = vsel %vm872, %v836, 0
        %v910 = vsel %vm872, %v837, 0
        %v913 = vsel %vm872, %v838, 0
        %v916 = vsel %vm872, %v839, 0
        %v919 = vsel %vm872, %v840, 0
        %v922 = vsel %vm872, %v841, 0
        %v925 = vsel %vm872, %v842, 0
        %v928 = vsel %vm872, %v843, 0
        %v931 = vsel %vm872, %v844, 0
        %v934 = vsel %vm872, %v845, 0
        %v937 = vsel %vm872, %v846, 0
        %v940 = vsel %vm872, %v847, 0
        %v943 = vsel %vm872, %v848, 0
        %v946 = vsel %vm872, %v849, 0
        %v949 = vsel %vm872, %v850, 0
        %v952 = vsel %vm872, %v851, 0
        %v955 = vsel %vm872, %v852, 0
        %v958 = vsel %vm872, %v853, 0
        %v961 = vsel %vm872, %v854, 0
        %v964 = vsel %vm872, %v855, 0
        %v967 = vsel %vm872, %v856, 0
        %969 = vmatprep.subr.mxu0 0.0
        %970 = vmatpush1.msra.mxu0 %v857
        %971 = vmatprep.subr.mxu0 0.0
        %972 = vmatpush1.msra.mxu0 %v858
        %973 = vmatprep.subr.mxu0 0.0
        %974 = vmatpush1.msra.mxu0 %v859
        %975 = vmatprep.subr.mxu0 0.0
        %976 = vmatpush1.msra.mxu0 %v860
        %977 = vmatprep.subr.mxu0 0.0
        %978 = vmatpush1.msra.mxu0 %v861
        %979 = vmatprep.subr.mxu0 0.0
        %980 = vmatpush1.msra.mxu0 %v862
        %981 = vmatprep.subr.mxu0 0.0
        %982 = vmatpush1.msra.mxu0 %v863
        %983 = vmatprep.subr.mxu0 0.0
        %984 = vmatpush1.msra.mxu0 %v864
        %985 = vmatprep.subr.mxu0 0.0
        %986 = vmatpush1.msra.mxu0 0.0
        %987 = vmatprep.subr.mxu0 0.0
        %988 = vmatpush1.msra.mxu0 0.0
        %989 = vmatprep.subr.mxu0 0.0
        %990 = vmatpush1.msra.mxu0 0.0
        %991 = vmatprep.subr.mxu0 0.0
        %992 = vmatpush1.msra.mxu0 0.0
        %993 = vmatprep.subr.mxu0 0.0
        %994 = vmatpush1.msra.mxu0 0.0
        %995 = vmatprep.subr.mxu0 0.0
        %996 = vmatpush1.msra.mxu0 0.0
        %997 = vmatprep.subr.mxu0 0.0
        %998 = vmatpush1.msra.mxu0 0.0
        %999 = vmatprep.subr.mxu0 0.0
        %1000 = vmatpush1.msra.mxu0 0.0
        %1001 = vmatprep.subr.mxu0 0.0
        %1002 = vmatpush1.msra.mxu0 0.0
        %1003 = vmatprep.subr.mxu0 0.0
        %1004 = vmatpush1.msra.mxu0 0.0
        %1005 = vmatprep.subr.mxu0 0.0
        %1006 = vmatpush1.msra.mxu0 0.0
        %1007 = vmatprep.subr.mxu0 0.0
        %1008 = vmatpush1.msra.mxu0 0.0
        %1009 = vmatprep.subr.mxu0 0.0
        %1010 = vmatpush1.msra.mxu0 0.0
        %1011 = vmatprep.subr.mxu0 0.0
        %1012 = vmatpush1.msra.mxu0 0.0
        %1013 = vmatprep.subr.mxu0 0.0
        %1014 = vmatpush1.msra.mxu0 0.0
        %1015 = vmatprep.subr.mxu0 0.0
        %1016 = vmatpush1.msra.mxu0 0.0
        %1017 = vmatprep.subr.mxu0 0.0
        %1018 = vmatpush1.msra.mxu0 0.0
        %1019 = vmatprep.subr.mxu0 0.0
        %1020 = vmatpush1.msra.mxu0 0.0
        %1021 = vmatprep.subr.mxu0 0.0
        %1022 = vmatpush1.msra.mxu0 0.0
        %1023 = vmatprep.subr.mxu0 0.0
        %1024 = vmatpush1.msra.mxu0 0.0
        %1025 = vmatprep.subr.mxu0 0.0
        %1026 = vmatpush1.msra.mxu0 0.0
        %1027 = vmatprep.subr.mxu0 0.0
        %1028 = vmatpush1.msra.mxu0 0.0
        %1029 = vmatprep.subr.mxu0 0.0
        %1030 = vmatpush1.msra.mxu0 0.0
        %1031 = vmatprep.subr.mxu0 0.0
        %1032 = vmatpush1.msra.mxu0 0.0
        %1033 = vmatprep.mubr.f32.mxu0 0.0
        %1034 = vmatmul.mubr.f32.gmra.mrb[0].mxu0 %v874
        %v1035 = vpop.f32.mrb[0].mxu0
        %v1036 = vadd.f32 %v870, %v1035
        %v1037 = vpop.f32.mrb[0].mxu0
        %1038 = vmatprep.mubr.f32.mxu0 0.0
        %1039 = vmatmul.mubr.f32.gmra.mrb[0].mxu0 %v877
        %v1040 = vpop.f32.mrb[0].mxu0
        %v1041 = vadd.f32 %v870, %v1040
        %v1042 = vpop.f32.mrb[0].mxu0
        %1043 = vmatprep.mubr.f32.mxu0 0.0
        %1044 = vmatmul.mubr.f32.gmra.mrb[0].mxu0 %v880
        %v1045 = vpop.f32.mrb[0].mxu0
        %v1046 = vadd.f32 %v870, %v1045
        %v1047 = vpop.f32.mrb[0].mxu0
        %1048 = vmatprep.mubr.f32.mxu0 0.0
        %1049 = vmatmul.mubr.f32.gmra.mrb[0].mxu0 %v883
        %v1050 = vpop.f32.mrb[0].mxu0
        %v1051 = vadd.f32 %v870, %v1050
        %v1052 = vpop.f32.mrb[0].mxu0
        %1053 = vmatprep.mubr.f32.mxu0 0.0
        %1054 = vmatmul.mubr.f32.gmra.mrb[0].mxu0 %v886
        %v1055 = vpop.f32.mrb[0].mxu0
        %v1056 = vadd.f32 %v870, %v1055
        %v1057 = vpop.f32.mrb[0].mxu0
        %1058 = vmatprep.mubr.f32.mxu0 0.0
        %1059 = vmatmul.mubr.f32.gmra.mrb[0].mxu0 %v889
        %v1060 = vpop.f32.mrb[0].mxu0
        %v1061 = vadd.f32 %v870, %v1060
        %v1062 = vpop.f32.mrb[0].mxu0
        %1063 = vmatprep.mubr.f32.mxu0 0.0
        %1064 = vmatmul.mubr.f32.gmra.mrb[0].mxu0 %v892
        %v1065 = vpop.f32.mrb[0].mxu0
        %v1066 = vadd.f32 %v870, %v1065
        %v1067 = vpop.f32.mrb[0].mxu0
        %1068 = vmatprep.mubr.f32.mxu0 0.0
        %1069 = vmatmul.mubr.f32.gmra.mrb[0].mxu0 %v895
        %v1070 = vpop.f32.mrb[0].mxu0
        %v1071 = vadd.f32 %v870, %v1070
        %v1072 = vpop.f32.mrb[0].mxu0
        %1073 = vmatprep.mubr.f32.mxu0 0.0
        %1074 = vmatmul.mubr.f32.gmra.mrb[0].mxu0 %v898
        %v1075 = vpop.f32.mrb[0].mxu0
        %v1076 = vadd.f32 %v870, %v1075
        %v1077 = vpop.f32.mrb[0].mxu0
        %1078 = vmatprep.mubr.f32.mxu0 0.0
        %1079 = vmatmul.mubr.f32.gmra.mrb[0].mxu0 %v901
        %v1080 = vpop.f32.mrb[0].mxu0
        %v1081 = vadd.f32 %v870, %v1080
        %v1082 = vpop.f32.mrb[0].mxu0
        %1083 = vmatprep.mubr.f32.mxu0 0.0
        %1084 = vmatmul.mubr.f32.gmra.mrb[0].mxu0 %v904
        %v1085 = vpop.f32.mrb[0].mxu0
        %v1086 = vadd.f32 %v870, %v1085
        %v1087 = vpop.f32.mrb[0].mxu0
        %1088 = vmatprep.mubr.f32.mxu0 0.0
        %1089 = vmatmul.mubr.f32.gmra.mrb[0].mxu0 %v907
        %v1090 = vpop.f32.mrb[0].mxu0
        %v1091 = vadd.f32 %v870, %v1090
        %v1092 = vpop.f32.mrb[0].mxu0
        %1093 = vmatprep.mubr.f32.mxu0 0.0
        %1094 = vmatmul.mubr.f32.gmra.mrb[0].mxu0 %v910
        %v1095 = vpop.f32.mrb[0].mxu0
        %v1096 = vadd.f32 %v870, %v1095
        %v1097 = vpop.f32.mrb[0].mxu0
        %1098 = vmatprep.mubr.f32.mxu0 0.0
        %1099 = vmatmul.mubr.f32.gmra.mrb[0].mxu0 %v913
        %v1100 = vpop.f32.mrb[0].mxu0
        %v1101 = vadd.f32 %v870, %v1100
        %v1102 = vpop.f32.mrb[0].mxu0
        %1103 = vmatprep.mubr.f32.mxu0 0.0
        %1104 = vmatmul.mubr.f32.gmra.mrb[0].mxu0 %v916
        %v1105 = vpop.f32.mrb[0].mxu0
        %v1106 = vadd.f32 %v870, %v1105
        %v1107 = vpop.f32.mrb[0].mxu0
        %1108 = vmatprep.mubr.f32.mxu0 0.0
        %1109 = vmatmul.mubr.f32.gmra.mrb[0].mxu0 %v919
        %v1110 = vpop.f32.mrb[0].mxu0
        %v1111 = vadd.f32 %v870, %v1110
        %v1112 = vpop.f32.mrb[0].mxu0
        %1113 = vmatprep.mubr.f32.mxu0 0.0
        %1114 = vmatmul.mubr.f32.gmra.mrb[0].mxu0 %v922
        %v1115 = vpop.f32.mrb[0].mxu0
        %v1116 = vadd.f32 %v870, %v1115
        %v1117 = vpop.f32.mrb[0].mxu0
        %1118 = vmatprep.mubr.f32.mxu0 0.0
        %1119 = vmatmul.mubr.f32.gmra.mrb[0].mxu0 %v925
        %v1120 = vpop.f32.mrb[0].mxu0
        %v1121 = vadd.f32 %v870, %v1120
        %v1122 = vpop.f32.mrb[0].mxu0
        %1123 = vmatprep.mubr.f32.mxu0 0.0
        %1124 = vmatmul.mubr.f32.gmra.mrb[0].mxu0 %v928
        %v1125 = vpop.f32.mrb[0].mxu0
        %v1126 = vadd.f32 %v870, %v1125
        %v1127 = vpop.f32.mrb[0].mxu0
        %1128 = vmatprep.mubr.f32.mxu0 0.0
        %1129 = vmatmul.mubr.f32.gmra.mrb[0].mxu0 %v931
        %v1130 = vpop.f32.mrb[0].mxu0
        %v1131 = vadd.f32 %v870, %v1130
        %v1132 = vpop.f32.mrb[0].mxu0
        %1133 = vmatprep.mubr.f32.mxu0 0.0
        %1134 = vmatmul.mubr.f32.gmra.mrb[0].mxu0 %v934
        %v1135 = vpop.f32.mrb[0].mxu0
        %v1136 = vadd.f32 %v870, %v1135
        %v1137 = vpop.f32.mrb[0].mxu0
        %1138 = vmatprep.mubr.f32.mxu0 0.0
        %1139 = vmatmul.mubr.f32.gmra.mrb[0].mxu0 %v937
        %v1140 = vpop.f32.mrb[0].mxu0
        %v1141 = vadd.f32 %v870, %v1140
        %v1142 = vpop.f32.mrb[0].mxu0
        %1143 = vmatprep.mubr.f32.mxu0 0.0
        %1144 = vmatmul.mubr.f32.gmra.mrb[0].mxu0 %v940
        %v1145 = vpop.f32.mrb[0].mxu0
        %v1146 = vadd.f32 %v870, %v1145
        %v1147 = vpop.f32.mrb[0].mxu0
        %1148 = vmatprep.mubr.f32.mxu0 0.0
        %1149 = vmatmul.mubr.f32.gmra.mrb[0].mxu0 %v943
        %v1150 = vpop.f32.mrb[0].mxu0
        %v1151 = vadd.f32 %v870, %v1150
        %v1152 = vpop.f32.mrb[0].mxu0
        %1153 = vmatprep.mubr.f32.mxu0 0.0
        %1154 = vmatmul.mubr.f32.gmra.mrb[0].mxu0 %v946
        %v1155 = vpop.f32.mrb[0].mxu0
        %v1156 = vadd.f32 %v870, %v1155
        %v1157 = vpop.f32.mrb[0].mxu0
        %1158 = vmatprep.mubr.f32.mxu0 0.0
        %1159 = vmatmul.mubr.f32.gmra.mrb[0].mxu0 %v949
        %v1160 = vpop.f32.mrb[0].mxu0
        %v1161 = vadd.f32 %v870, %v1160
        %v1162 = vpop.f32.mrb[0].mxu0
        %1163 = vmatprep.mubr.f32.mxu0 0.0
        %1164 = vmatmul.mubr.f32.gmra.mrb[0].mxu0 %v952
        %v1165 = vpop.f32.mrb[0].mxu0
        %v1166 = vadd.f32 %v870, %v1165
        %v1167 = vpop.f32.mrb[0].mxu0
        %1168 = vmatprep.mubr.f32.mxu0 0.0
        %1169 = vmatmul.mubr.f32.gmra.mrb[0].mxu0 %v955
        %v1170 = vpop.f32.mrb[0].mxu0
        %v1171 = vadd.f32 %v870, %v1170
        %v1172 = vpop.f32.mrb[0].mxu0
        %1173 = vmatprep.mubr.f32.mxu0 0.0
        %1174 = vmatmul.mubr.f32.gmra.mrb[0].mxu0 %v958
        %v1175 = vpop.f32.mrb[0].mxu0
        %v1176 = vadd.f32 %v870, %v1175
        %v1177 = vpop.f32.mrb[0].mxu0
        %1178 = vmatprep.mubr.f32.mxu0 0.0
        %1179 = vmatmul.mubr.f32.gmra.mrb[0].mxu0 %v961
        %v1180 = vpop.f32.mrb[0].mxu0
        %v1181 = vadd.f32 %v870, %v1180
        %v1182 = vpop.f32.mrb[0].mxu0
        %1183 = vmatprep.mubr.f32.mxu0 0.0
        %1184 = vmatmul.mubr.f32.gmra.mrb[0].mxu0 %v964
        %v1185 = vpop.f32.mrb[0].mxu0
        %v1186 = vadd.f32 %v870, %v1185
        %v1187 = vpop.f32.mrb[0].mxu0
        %1188 = vmatprep.mubr.f32.mxu0 0.0
        %1189 = vmatmul.mubr.f32.gmra.mrb[0].mxu0 %v967
        %v1190 = vpop.f32.mrb[0].mxu0
        %v1191 = vadd.f32 %v870, %v1190
        %v1192 = vpop.f32.mrb[0].mxu0
        %1193 = vdwg.mxu0
        %v1194 = vld [vmem:[%s343] sm:$0xff]
        %v1195 = vld [vmem:[%s343 + $0x8] sm:$0xff]
        %v1196 = vld [vmem:[%s343 + $0x10] sm:$0xff]
        %v1197 = vld [vmem:[%s343 + $0x18] sm:$0xff]
        %v1198 = vld [vmem:[%s343 + $0x20] sm:$0xff]
        %v1199 = vld [vmem:[%s343 + $0x28] sm:$0xff]
        %v1200 = vld [vmem:[%s343 + $0x30] sm:$0xff]
        %v1201 = vld [vmem:[%s343 + $0x38] sm:$0xff]
        %v1202 = vld [vmem:[%s343 + $0x40] sm:$0xff]
        %v1203 = vld [vmem:[%s343 + $0x48] sm:$0xff]
        %v1204 = vld [vmem:[%s343 + $0x50] sm:$0xff]
        %v1205 = vld [vmem:[%s343 + $0x58] sm:$0xff]
        %v1206 = vld [vmem:[%s343 + $0x60] sm:$0xff]
        %v1207 = vld [vmem:[%s343 + $0x68] sm:$0xff]
        %v1208 = vld [vmem:[%s343 + $0x70] sm:$0xff]
        %v1209 = vld [vmem:[%s343 + $0x78] sm:$0xff]
        %v1210 = vld [vmem:[%s343 + $0x80] sm:$0xff]
        %v1211 = vld [vmem:[%s343 + $0x88] sm:$0xff]
        %v1212 = vld [vmem:[%s343 + $0x90] sm:$0xff]
        %v1213 = vld [vmem:[%s343 + $0x98] sm:$0xff]
        %v1214 = vld [vmem:[%s343 + $0xa0] sm:$0xff]
        %v1215 = vld [vmem:[%s343 + $0xa8] sm:$0xff]
        %v1216 = vld [vmem:[%s343 + $0xb0] sm:$0xff]
        %v1217 = vld [vmem:[%s343 + $0xb8] sm:$0xff]
        %v1218 = vld [vmem:[%s343 + $0xc0] sm:$0xff]
        %v1219 = vld [vmem:[%s343 + $0xc8] sm:$0xff]
        %v1220 = vld [vmem:[%s343 + $0xd0] sm:$0xff]
        %v1221 = vld [vmem:[%s343 + $0xd8] sm:$0xff]
        %v1222 = vld [vmem:[%s343 + $0xe0] sm:$0xff]
        %v1223 = vld [vmem:[%s343 + $0xe8] sm:$0xff]
        %v1224 = vld [vmem:[%s343 + $0xf0] sm:$0xff]
        %v1225 = vld [vmem:[%s343 + $0xf8] sm:$0xff]
        %1226 = vst [vmem:[#allocation2] sm:$0xff] 0.0
        %1227 = vst [vmem:[#allocation2 + $0x8] sm:$0xff] 0.0
        %1228 = vst [vmem:[#allocation2 + $0x10] sm:$0xff] 0.0
        %1229 = vst [vmem:[#allocation2 + $0x18] sm:$0xff] 0.0
        %1230 = vst [vmem:[#allocation2 + $0x20] sm:$0xff] 0.0
        %1231 = vst [vmem:[#allocation2 + $0x28] sm:$0xff] 0.0
        %1232 = vst [vmem:[#allocation2 + $0x30] sm:$0xff] 0.0
        %1233 = vst [vmem:[#allocation2 + $0x38] sm:$0xff] 0.0
        %1234 = vst [vmem:[#allocation2 + $0x40] sm:$0xff] 0.0
        %1235 = vst [vmem:[#allocation2 + $0x48] sm:$0xff] 0.0
        %1236 = vst [vmem:[#allocation2 + $0x50] sm:$0xff] 0.0
        %1237 = vst [vmem:[#allocation2 + $0x58] sm:$0xff] 0.0
        %1238 = vst [vmem:[#allocation2 + $0x60] sm:$0x1] 0.0
        %1239 = vst [vmem:[#allocation2 + $0x68] sm:$0x1] 0.0
        %1240 = vst [vmem:[#allocation2 + $0x70] sm:$0x1] 0.0
        %1241 = vst [vmem:[#allocation2 + $0x78] sm:$0x1] 0.0
        %1242 = vst [vmem:[#allocation2 + $0x80] sm:$0x1] 0.0
        %1243 = vst [vmem:[#allocation2 + $0x88] sm:$0x1] 0.0
        %1244 = vst [vmem:[#allocation2 + $0x630] sm:$0x80] 0.0
        %1245 = vst [vmem:[#allocation2 + $0x638] sm:$0x80] 0.0
        %1246 = vst [vmem:[#allocation2 + $0x640] sm:$0x80] 0.0
        %1247 = vst [vmem:[#allocation2 + $0x648] sm:$0x80] 0.0
        %1248 = vst [vmem:[#allocation2 + $0x650] sm:$0x80] 0.0
        %1249 = vst [vmem:[#allocation2 + $0x658] sm:$0x80] 0.0
        %1250 = vst [vmem:[#allocation2 + $0x660] sm:$0xff] 0.0
        %1251 = vst [vmem:[#allocation2 + $0x668] sm:$0xff] 0.0
        %1252 = vst [vmem:[#allocation2 + $0x670] sm:$0xff] 0.0
        %1253 = vst [vmem:[#allocation2 + $0x678] sm:$0xff] 0.0
        %1254 = vst [vmem:[#allocation2 + $0x680] sm:$0xff] 0.0
        %1255 = vst [vmem:[#allocation2 + $0x688] sm:$0xff] 0.0
        %1256 = vst [vmem:[#allocation2 + $0x690] sm:$0xff] 0.0
        %1257 = vst [vmem:[#allocation2 + $0x698] sm:$0xff] 0.0
        %1258 = vst [vmem:[#allocation2 + $0x6a0] sm:$0xff] 0.0
        %1259 = vst [vmem:[#allocation2 + $0x6a8] sm:$0xff] 0.0
        %1260 = vst [vmem:[#allocation2 + $0x6b0] sm:$0xff] 0.0
        %1261 = vst [vmem:[#allocation2 + $0x6b8] sm:$0xff] 0.0
        %1262 = vst [vmem:[#allocation2 + $0x60] sm:$0xff] %v1036
        %1263 = vst [vmem:[#allocation2 + $0x90] sm:$0xff] %v1041
        %1264 = vst [vmem:[#allocation2 + $0xc0] sm:$0xff] %v1046
        %1265 = vst [vmem:[#allocation2 + $0xf0] sm:$0xff] %v1051
        %1266 = vst [vmem:[#allocation2 + $0x120] sm:$0xff] %v1056
        %1267 = vst [vmem:[#allocation2 + $0x150] sm:$0xff] %v1061
        %1268 = vst [vmem:[#allocation2 + $0x180] sm:$0xff] %v1066
        %1269 = vst [vmem:[#allocation2 + $0x1b0] sm:$0xff] %v1071
        %1270 = vst [vmem:[#allocation2 + $0x1e0] sm:$0xff] %v1076
        %1271 = vst [vmem:[#allocation2 + $0x210] sm:$0xff] %v1081
        %1272 = vst [vmem:[#allocation2 + $0x240] sm:$0xff] %v1086
        %1273 = vst [vmem:[#allocation2 + $0x270] sm:$0xff] %v1091
        %1274 = vst [vmem:[#allocation2 + $0x2a0] sm:$0xff] %v1096
        %1275 = vst [vmem:[#allocation2 + $0x2d0] sm:$0xff] %v1101
        %1276 = vst [vmem:[#allocation2 + $0x300] sm:$0xff] %v1106
        %1277 = vst [vmem:[#allocation2 + $0x330] sm:$0xff] %v1111
        %1278 = vst [vmem:[#allocation2 + $0x360] sm:$0xff] %v1116
        %1279 = vst [vmem:[#allocation2 + $0x390] sm:$0xff] %v1121
        %1280 = vst [vmem:[#allocation2 + $0x3c0] sm:$0xff] %v1126
        %1281 = vst [vmem:[#allocation2 + $0x3f0] sm:$0xff] %v1131
        %1282 = vst [vmem:[#allocation2 + $0x420] sm:$0xff] %v1136
        %1283 = vst [vmem:[#allocation2 + $0x450] sm:$0xff] %v1141
        %1284 = vst [vmem:[#allocation2 + $0x480] sm:$0xff] %v1146
        %1285 = vst [vmem:[#allocation2 + $0x4b0] sm:$0xff] %v1151
        %1286 = vst [vmem:[#allocation2 + $0x4e0] sm:$0xff] %v1156
        %1287 = vst [vmem:[#allocation2 + $0x510] sm:$0xff] %v1161
        %1288 = vst [vmem:[#allocation2 + $0x540] sm:$0xff] %v1166
        %1289 = vst [vmem:[#allocation2 + $0x570] sm:$0xff] %v1171
        %1290 = vst [vmem:[#allocation2 + $0x5a0] sm:$0xff] %v1176
        %1291 = vst [vmem:[#allocation2 + $0x5d0] sm:$0xff] %v1181
        %1292 = vst [vmem:[#allocation2 + $0x600] sm:$0xff] %v1186
        %1293 = vst [vmem:[#allocation2 + $0x630] sm:$0xff] %v1191
        %1294 = vst [vmem:[#allocation2 + $0x68] sm:$0xff] %v1194
        %1295 = vst [vmem:[#allocation2 + $0x98] sm:$0xff] %v1195
        %1296 = vst [vmem:[#allocation2 + $0xc8] sm:$0xff] %v1196
        %1297 = vst [vmem:[#allocation2 + $0xf8] sm:$0xff] %v1197
        %1298 = vst [vmem:[#allocation2 + $0x128] sm:$0xff] %v1198
        %1299 = vst [vmem:[#allocation2 + $0x158] sm:$0xff] %v1199
        %1300 = vst [vmem:[#allocation2 + $0x188] sm:$0xff] %v1200
        %1301 = vst [vmem:[#allocation2 + $0x1b8] sm:$0xff] %v1201
        %1302 = vst [vmem:[#allocation2 + $0x1e8] sm:$0xff] %v1202
        %1303 = vst [vmem:[#allocation2 + $0x218] sm:$0xff] %v1203
        %1304 = vst [vmem:[#allocation2 + $0x248] sm:$0xff] %v1204
        %1305 = vst [vmem:[#allocation2 + $0x278] sm:$0xff] %v1205
        %1306 = vst [vmem:[#allocation2 + $0x2a8] sm:$0xff] %v1206
        %1307 = vst [vmem:[#allocation2 + $0x2d8] sm:$0xff] %v1207
        %1308 = vst [vmem:[#allocation2 + $0x308] sm:$0xff] %v1208
        %1309 = vst [vmem:[#allocation2 + $0x338] sm:$0xff] %v1209
        %1310 = vst [vmem:[#allocation2 + $0x368] sm:$0xff] %v1210
        %1311 = vst [vmem:[#allocation2 + $0x398] sm:$0xff] %v1211
        %1312 = vst [vmem:[#allocation2 + $0x3c8] sm:$0xff] %v1212
        %1313 = vst [vmem:[#allocation2 + $0x3f8] sm:$0xff] %v1213
        %1314 = vst [vmem:[#allocation2 + $0x428] sm:$0xff] %v1214
        %1315 = vst [vmem:[#allocation2 + $0x458] sm:$0xff] %v1215
        %1316 = vst [vmem:[#allocation2 + $0x488] sm:$0xff] %v1216
        %1317 = vst [vmem:[#allocation2 + $0x4b8] sm:$0xff] %v1217
        %1318 = vst [vmem:[#allocation2 + $0x4e8] sm:$0xff] %v1218
        %1319 = vst [vmem:[#allocation2 + $0x518] sm:$0xff] %v1219
        %1320 = vst [vmem:[#allocation2 + $0x548] sm:$0xff] %v1220
        %1321 = vst [vmem:[#allocation2 + $0x578] sm:$0xff] %v1221
        %1322 = vst [vmem:[#allocation2 + $0x5a8] sm:$0xff] %v1222
        %1323 = vst [vmem:[#allocation2 + $0x5d8] sm:$0xff] %v1223
        %1324 = vst [vmem:[#allocation2 + $0x608] sm:$0xff] %v1224
        %1325 = vst [vmem:[#allocation2 + $0x638] sm:$0xff] %v1225
        %v1326 = vsel %vm761, 1, 0
        %v1327 = vsel %vm762, 1, 0
        %v1328 = vsel %vm763, 1, 0
        %v1329 = vsel %vm764, 1, 0
        %v1330 = vsel %vm765, 1, 0
        %v1331 = vsel %vm766, 1, 0
        %v1332 = vsel %vm767, 1, 0
        %v1333 = vsel %vm768, 1, 0
        %v1334 = vsel %vm769, 1, 0
        %v1335 = vsel %vm770, 1, 0
        %v1336 = vsel %vm771, 1, 0
        %v1337 = vsel %vm772, 1, 0
        %v1338 = vsel %vm773, 1, 0
        %v1339 = vsel %vm774, 1, 0
        %v1340 = vsel %vm775, 1, 0
        %v1341 = vsel %vm776, 1, 0
        %v1342 = vsel %vm777, 1, 0
        %v1343 = vsel %vm778, 1, 0
        %v1344 = vsel %vm779, 1, 0
        %v1345 = vsel %vm780, 1, 0
        %v1346 = vsel %vm781, 1, 0
        %v1347 = vsel %vm782, 1, 0
        %v1348 = vsel %vm783, 1, 0
        %v1349 = vsel %vm784, 1, 0
        %v1350 = vsel %vm785, 1, 0
        %v1351 = vsel %vm786, 1, 0
        %v1352 = vsel %vm787, 1, 0
        %v1353 = vsel %vm788, 1, 0
        %v1354 = vsel %vm789, 1, 0
        %v1355 = vsel %vm790, 1, 0
        %v1356 = vsel %vm791, 1, 0
        %v1357 = vsel %vm792, 1, 0
        %vm1358 = vcmp.eq.s32.totalorder %v1326, 1
        %vm1359 = vcmp.eq.s32.totalorder %v1327, 1
        %vm1360 = vcmp.eq.s32.totalorder %v1328, 1
        %vm1361 = vcmp.eq.s32.totalorder %v1329, 1
        %vm1362 = vcmp.eq.s32.totalorder %v1330, 1
        %vm1363 = vcmp.eq.s32.totalorder %v1331, 1
        %vm1364 = vcmp.eq.s32.totalorder %v1332, 1
        %vm1365 = vcmp.eq.s32.totalorder %v1333, 1
        %vm1366 = vcmp.eq.s32.totalorder %v1334, 1
        %vm1367 = vcmp.eq.s32.totalorder %v1335, 1
        %vm1368 = vcmp.eq.s32.totalorder %v1336, 1
        %vm1369 = vcmp.eq.s32.totalorder %v1337, 1
        %vm1370 = vcmp.eq.s32.totalorder %v1338, 1
        %vm1371 = vcmp.eq.s32.totalorder %v1339, 1
        %vm1372 = vcmp.eq.s32.totalorder %v1340, 1
        %vm1373 = vcmp.eq.s32.totalorder %v1341, 1
        %vm1374 = vcmp.eq.s32.totalorder %v1342, 1
        %vm1375 = vcmp.eq.s32.totalorder %v1343, 1
        %vm1376 = vcmp.eq.s32.totalorder %v1344, 1
        %vm1377 = vcmp.eq.s32.totalorder %v1345, 1
        %vm1378 = vcmp.eq.s32.totalorder %v1346, 1
        %vm1379 = vcmp.eq.s32.totalorder %v1347, 1
        %vm1380 = vcmp.eq.s32.totalorder %v1348, 1
        %vm1381 = vcmp.eq.s32.totalorder %v1349, 1
        %vm1382 = vcmp.eq.s32.totalorder %v1350, 1
        %vm1383 = vcmp.eq.s32.totalorder %v1351, 1
        %vm1384 = vcmp.eq.s32.totalorder %v1352, 1
        %vm1385 = vcmp.eq.s32.totalorder %v1353, 1
        %vm1386 = vcmp.eq.s32.totalorder %v1354, 1
        %vm1387 = vcmp.eq.s32.totalorder %v1355, 1
        %vm1388 = vcmp.eq.s32.totalorder %v1356, 1
        %vm1389 = vcmp.eq.s32.totalorder %v1357, 1
        %v1390 = vsel %vm1358, %v1036, 0.0
        %v1391 = vsel %vm1359, %v1041, 0.0
        %v1392 = vsel %vm1360, %v1046, 0.0
        %v1393 = vsel %vm1361, %v1051, 0.0
        %v1394 = vsel %vm1362, %v1056, 0.0
        %v1395 = vsel %vm1363, %v1061, 0.0
        %v1396 = vsel %vm1364, %v1066, 0.0
        %v1397 = vsel %vm1365, %v1071, 0.0
        %v1398 = vsel %vm1366, %v1076, 0.0
        %v1399 = vsel %vm1367, %v1081, 0.0
        %v1400 = vsel %vm1368, %v1086, 0.0
        %v1401 = vsel %vm1369, %v1091, 0.0
        %v1402 = vsel %vm1370, %v1096, 0.0
        %v1403 = vsel %vm1371, %v1101, 0.0
        %v1404 = vsel %vm1372, %v1106, 0.0
        %v1405 = vsel %vm1373, %v1111, 0.0
        %v1406 = vsel %vm1374, %v1116, 0.0
        %v1407 = vsel %vm1375, %v1121, 0.0
        %v1408 = vsel %vm1376, %v1126, 0.0
        %v1409 = vsel %vm1377, %v1131, 0.0
        %v1410 = vsel %vm1378, %v1136, 0.0
        %v1411 = vsel %vm1379, %v1141, 0.0
        %v1412 = vsel %vm1380, %v1146, 0.0
        %v1413 = vsel %vm1381, %v1151, 0.0
        %v1414 = vsel %vm1382, %v1156, 0.0
        %v1415 = vsel %vm1383, %v1161, 0.0
        %v1416 = vsel %vm1384, %v1166, 0.0
        %v1417 = vsel %vm1385, %v1171, 0.0
        %v1418 = vsel %vm1386, %v1176, 0.0
        %v1419 = vsel %vm1387, %v1181, 0.0
        %v1420 = vsel %vm1388, %v1186, 0.0
        %v1421 = vsel %vm1389, %v1191, 0.0
        %vm1454 = vcmask 1040384
        %v1455 = vrot.slane %v1390, 7
        %v1456 = vrot.slane %v1391, 7
        %v1457 = vsel %vm1454, %v1455, %v1456
        %v1458 = vrot.slane %v1392, 7
        %v1459 = vsel %vm1454, %v1456, %v1458
        %v1460 = vrot.slane %v1393, 7
        %v1461 = vsel %vm1454, %v1458, %v1460
        %v1462 = vrot.slane %v1394, 7
        %v1463 = vsel %vm1454, %v1460, %v1462
        %v1464 = vrot.slane %v1395, 7
        %v1465 = vsel %vm1454, %v1462, %v1464
        %v1466 = vrot.slane %v1396, 7
        %v1467 = vsel %vm1454, %v1464, %v1466
        %v1468 = vrot.slane %v1397, 7
        %v1469 = vsel %vm1454, %v1466, %v1468
        %v1470 = vrot.slane %v1398, 7
        %v1471 = vsel %vm1454, %v1468, %v1470
        %v1472 = vrot.slane %v1399, 7
        %v1473 = vsel %vm1454, %v1470, %v1472
        %v1474 = vrot.slane %v1400, 7
        %v1475 = vsel %vm1454, %v1472, %v1474
        %v1476 = vrot.slane %v1401, 7
        %v1477 = vsel %vm1454, %v1474, %v1476
        %v1478 = vrot.slane %v1402, 7
        %v1479 = vsel %vm1454, %v1476, %v1478
        %v1480 = vrot.slane %v1403, 7
        %v1481 = vsel %vm1454, %v1478, %v1480
        %v1482 = vrot.slane %v1404, 7
        %v1483 = vsel %vm1454, %v1480, %v1482
        %v1484 = vrot.slane %v1405, 7
        %v1485 = vsel %vm1454, %v1482, %v1484
        %v1486 = vrot.slane %v1406, 7
        %v1487 = vsel %vm1454, %v1484, %v1486
        %v1488 = vrot.slane %v1407, 7
        %v1489 = vsel %vm1454, %v1486, %v1488
        %v1490 = vrot.slane %v1408, 7
        %v1491 = vsel %vm1454, %v1488, %v1490
        %v1492 = vrot.slane %v1409, 7
        %v1493 = vsel %vm1454, %v1490, %v1492
        %v1494 = vrot.slane %v1410, 7
        %v1495 = vsel %vm1454, %v1492, %v1494
        %v1496 = vrot.slane %v1411, 7
        %v1497 = vsel %vm1454, %v1494, %v1496
        %v1498 = vrot.slane %v1412, 7
        %v1499 = vsel %vm1454, %v1496, %v1498
        %v1500 = vrot.slane %v1413, 7
        %v1501 = vsel %vm1454, %v1498, %v1500
        %v1502 = vrot.slane %v1414, 7
        %v1503 = vsel %vm1454, %v1500, %v1502
        %v1504 = vrot.slane %v1415, 7
        %v1505 = vsel %vm1454, %v1502, %v1504
        %v1506 = vrot.slane %v1416, 7
        %v1507 = vsel %vm1454, %v1504, %v1506
        %v1508 = vrot.slane %v1417, 7
        %v1509 = vsel %vm1454, %v1506, %v1508
        %v1510 = vrot.slane %v1418, 7
        %v1511 = vsel %vm1454, %v1508, %v1510
        %v1512 = vrot.slane %v1419, 7
        %v1513 = vsel %vm1454, %v1510, %v1512
        %v1514 = vrot.slane %v1420, 7
        %v1515 = vsel %vm1454, %v1512, %v1514
        %v1516 = vrot.slane %v1421, 7
        %v1517 = vsel %vm1454, %v1514, %v1516
        %1551 = vst [vmem:[#allocation2 + $0x70] sm:$0xfe] %v1455
        %1552 = vst [vmem:[#allocation2 + $0xa0] sm:$0xff] %v1457
        %1553 = vst [vmem:[#allocation2 + $0xd0] sm:$0xff] %v1459
        %1554 = vst [vmem:[#allocation2 + $0x100] sm:$0xff] %v1461
        %1555 = vst [vmem:[#allocation2 + $0x130] sm:$0xff] %v1463
        %1556 = vst [vmem:[#allocation2 + $0x160] sm:$0xff] %v1465
        %1557 = vst [vmem:[#allocation2 + $0x190] sm:$0xff] %v1467
        %1558 = vst [vmem:[#allocation2 + $0x1c0] sm:$0xff] %v1469
        %1559 = vst [vmem:[#allocation2 + $0x1f0] sm:$0xff] %v1471
        %1560 = vst [vmem:[#allocation2 + $0x220] sm:$0xff] %v1473
        %1561 = vst [vmem:[#allocation2 + $0x250] sm:$0xff] %v1475
        %1562 = vst [vmem:[#allocation2 + $0x280] sm:$0xff] %v1477
        %1563 = vst [vmem:[#allocation2 + $0x2b0] sm:$0xff] %v1479
        %1564 = vst [vmem:[#allocation2 + $0x2e0] sm:$0xff] %v1481
        %1565 = vst [vmem:[#allocation2 + $0x310] sm:$0xff] %v1483
        %1566 = vst [vmem:[#allocation2 + $0x340] sm:$0xff] %v1485
        %1567 = vst [vmem:[#allocation2 + $0x370] sm:$0xff] %v1487
        %1568 = vst [vmem:[#allocation2 + $0x3a0] sm:$0xff] %v1489
        %1569 = vst [vmem:[#allocation2 + $0x3d0] sm:$0xff] %v1491
        %1570 = vst [vmem:[#allocation2 + $0x400] sm:$0xff] %v1493
        %1571 = vst [vmem:[#allocation2 + $0x430] sm:$0xff] %v1495
        %1572 = vst [vmem:[#allocation2 + $0x460] sm:$0xff] %v1497
        %1573 = vst [vmem:[#allocation2 + $0x490] sm:$0xff] %v1499
        %1574 = vst [vmem:[#allocation2 + $0x4c0] sm:$0xff] %v1501
        %1575 = vst [vmem:[#allocation2 + $0x4f0] sm:$0xff] %v1503
        %1576 = vst [vmem:[#allocation2 + $0x520] sm:$0xff] %v1505
        %1577 = vst [vmem:[#allocation2 + $0x550] sm:$0xff] %v1507
        %1578 = vst [vmem:[#allocation2 + $0x580] sm:$0xff] %v1509
        %1579 = vst [vmem:[#allocation2 + $0x5b0] sm:$0xff] %v1511
        %1580 = vst [vmem:[#allocation2 + $0x5e0] sm:$0xff] %v1513
        %1581 = vst [vmem:[#allocation2 + $0x610] sm:$0xff] %v1515
        %1582 = vst [vmem:[#allocation2 + $0x640] sm:$0xff] %v1517
        %1583 = vst [vmem:[#allocation2 + $0x670] sm:$0x1] %v1516
        %v1584 = vsel %vm1358, %v1194, 0.0
        %v1585 = vsel %vm1359, %v1195, 0.0
        %v1586 = vsel %vm1360, %v1196, 0.0
        %v1587 = vsel %vm1361, %v1197, 0.0
        %v1588 = vsel %vm1362, %v1198, 0.0
        %v1589 = vsel %vm1363, %v1199, 0.0
        %v1590 = vsel %vm1364, %v1200, 0.0
        %v1591 = vsel %vm1365, %v1201, 0.0
        %v1592 = vsel %vm1366, %v1202, 0.0
        %v1593 = vsel %vm1367, %v1203, 0.0
        %v1594 = vsel %vm1368, %v1204, 0.0
        %v1595 = vsel %vm1369, %v1205, 0.0
        %v1596 = vsel %vm1370, %v1206, 0.0
        %v1597 = vsel %vm1371, %v1207, 0.0
        %v1598 = vsel %vm1372, %v1208, 0.0
        %v1599 = vsel %vm1373, %v1209, 0.0
        %v1600 = vsel %vm1374, %v1210, 0.0
        %v1601 = vsel %vm1375, %v1211, 0.0
        %v1602 = vsel %vm1376, %v1212, 0.0
        %v1603 = vsel %vm1377, %v1213, 0.0
        %v1604 = vsel %vm1378, %v1214, 0.0
        %v1605 = vsel %vm1379, %v1215, 0.0
        %v1606 = vsel %vm1380, %v1216, 0.0
        %v1607 = vsel %vm1381, %v1217, 0.0
        %v1608 = vsel %vm1382, %v1218, 0.0
        %v1609 = vsel %vm1383, %v1219, 0.0
        %v1610 = vsel %vm1384, %v1220, 0.0
        %v1611 = vsel %vm1385, %v1221, 0.0
        %v1612 = vsel %vm1386, %v1222, 0.0
        %v1613 = vsel %vm1387, %v1223, 0.0
        %v1614 = vsel %vm1388, %v1224, 0.0
        %v1615 = vsel %vm1389, %v1225, 0.0
        %v1648 = vrot.slane %v1584, 7
        %v1649 = vrot.slane %v1585, 7
        %v1650 = vsel %vm1454, %v1648, %v1649
        %v1651 = vrot.slane %v1586, 7
        %v1652 = vsel %vm1454, %v1649, %v1651
        %v1653 = vrot.slane %v1587, 7
        %v1654 = vsel %vm1454, %v1651, %v1653
        %v1655 = vrot.slane %v1588, 7
        %v1656 = vsel %vm1454, %v1653, %v1655
        %v1657 = vrot.slane %v1589, 7
        %v1658 = vsel %vm1454, %v1655, %v1657
        %v1659 = vrot.slane %v1590, 7
        %v1660 = vsel %vm1454, %v1657, %v1659
        %v1661 = vrot.slane %v1591, 7
        %v1662 = vsel %vm1454, %v1659, %v1661
        %v1663 = vrot.slane %v1592, 7
        %v1664 = vsel %vm1454, %v1661, %v1663
        %v1665 = vrot.slane %v1593, 7
        %v1666 = vsel %vm1454, %v1663, %v1665
        %v1667 = vrot.slane %v1594, 7
        %v1668 = vsel %vm1454, %v1665, %v1667
        %v1669 = vrot.slane %v1595, 7
        %v1670 = vsel %vm1454, %v1667, %v1669
        %v1671 = vrot.slane %v1596, 7
        %v1672 = vsel %vm1454, %v1669, %v1671
        %v1673 = vrot.slane %v1597, 7
        %v1674 = vsel %vm1454, %v1671, %v1673
        %v1675 = vrot.slane %v1598, 7
        %v1676 = vsel %vm1454, %v1673, %v1675
        %v1677 = vrot.slane %v1599, 7
        %v1678 = vsel %vm1454, %v1675, %v1677
        %v1679 = vrot.slane %v1600, 7
        %v1680 = vsel %vm1454, %v1677, %v1679
        %v1681 = vrot.slane %v1601, 7
        %v1682 = vsel %vm1454, %v1679, %v1681
        %v1683 = vrot.slane %v1602, 7
        %v1684 = vsel %vm1454, %v1681, %v1683
        %v1685 = vrot.slane %v1603, 7
        %v1686 = vsel %vm1454, %v1683, %v1685
        %v1687 = vrot.slane %v1604, 7
        %v1688 = vsel %vm1454, %v1685, %v1687
        %v1689 = vrot.slane %v1605, 7
        %v1690 = vsel %vm1454, %v1687, %v1689
        %v1691 = vrot.slane %v1606, 7
        %v1692 = vsel %vm1454, %v1689, %v1691
        %v1693 = vrot.slane %v1607, 7
        %v1694 = vsel %vm1454, %v1691, %v1693
        %v1695 = vrot.slane %v1608, 7
        %v1696 = vsel %vm1454, %v1693, %v1695
        %v1697 = vrot.slane %v1609, 7
        %v1698 = vsel %vm1454, %v1695, %v1697
        %v1699 = vrot.slane %v1610, 7
        %v1700 = vsel %vm1454, %v1697, %v1699
        %v1701 = vrot.slane %v1611, 7
        %v1702 = vsel %vm1454, %v1699, %v1701
        %v1703 = vrot.slane %v1612, 7
        %v1704 = vsel %vm1454, %v1701, %v1703
        %v1705 = vrot.slane %v1613, 7
        %v1706 = vsel %vm1454, %v1703, %v1705
        %v1707 = vrot.slane %v1614, 7
        %v1708 = vsel %vm1454, %v1705, %v1707
        %v1709 = vrot.slane %v1615, 7
        %v1710 = vsel %vm1454, %v1707, %v1709
        %1744 = vst [vmem:[#allocation2 + $0x78] sm:$0xfe] %v1648
        %1745 = vst [vmem:[#allocation2 + $0xa8] sm:$0xff] %v1650
        %1746 = vst [vmem:[#allocation2 + $0xd8] sm:$0xff] %v1652
        %1747 = vst [vmem:[#allocation2 + $0x108] sm:$0xff] %v1654
        %1748 = vst [vmem:[#allocation2 + $0x138] sm:$0xff] %v1656
        %1749 = vst [vmem:[#allocation2 + $0x168] sm:$0xff] %v1658
        %1750 = vst [vmem:[#allocation2 + $0x198] sm:$0xff] %v1660
        %1751 = vst [vmem:[#allocation2 + $0x1c8] sm:$0xff] %v1662
        %1752 = vst [vmem:[#allocation2 + $0x1f8] sm:$0xff] %v1664
        %1753 = vst [vmem:[#allocation2 + $0x228] sm:$0xff] %v1666
        %1754 = vst [vmem:[#allocation2 + $0x258] sm:$0xff] %v1668
        %1755 = vst [vmem:[#allocation2 + $0x288] sm:$0xff] %v1670
        %1756 = vst [vmem:[#allocation2 + $0x2b8] sm:$0xff] %v1672
        %1757 = vst [vmem:[#allocation2 + $0x2e8] sm:$0xff] %v1674
        %1758 = vst [vmem:[#allocation2 + $0x318] sm:$0xff] %v1676
        %1759 = vst [vmem:[#allocation2 + $0x348] sm:$0xff] %v1678
        %1760 = vst [vmem:[#allocation2 + $0x378] sm:$0xff] %v1680
        %1761 = vst [vmem:[#allocation2 + $0x3a8] sm:$0xff] %v1682
        %1762 = vst [vmem:[#allocation2 + $0x3d8] sm:$0xff] %v1684
        %1763 = vst [vmem:[#allocation2 + $0x408] sm:$0xff] %v1686
        %1764 = vst [vmem:[#allocation2 + $0x438] sm:$0xff] %v1688
        %1765 = vst [vmem:[#allocation2 + $0x468] sm:$0xff] %v1690
        %1766 = vst [vmem:[#allocation2 + $0x498] sm:$0xff] %v1692
        %1767 = vst [vmem:[#allocation2 + $0x4c8] sm:$0xff] %v1694
        %1768 = vst [vmem:[#allocation2 + $0x4f8] sm:$0xff] %v1696
        %1769 = vst [vmem:[#allocation2 + $0x528] sm:$0xff] %v1698
        %1770 = vst [vmem:[#allocation2 + $0x558] sm:$0xff] %v1700
        %1771 = vst [vmem:[#allocation2 + $0x588] sm:$0xff] %v1702
        %1772 = vst [vmem:[#allocation2 + $0x5b8] sm:$0xff] %v1704
        %1773 = vst [vmem:[#allocation2 + $0x5e8] sm:$0xff] %v1706
        %1774 = vst [vmem:[#allocation2 + $0x618] sm:$0xff] %v1708
        %1775 = vst [vmem:[#allocation2 + $0x648] sm:$0xff] %v1710
        %1776 = vst [vmem:[#allocation2 + $0x678] sm:$0x1] %v1709
        %v1777 = vsel %vm793, 1, 0
        %v1778 = vsel %vm794, 1, 0
        %v1779 = vsel %vm795, 1, 0
        %v1780 = vsel %vm796, 1, 0
        %v1781 = vsel %vm797, 1, 0
        %v1782 = vsel %vm798, 1, 0
        %v1783 = vsel %vm799, 1, 0
        %v1784 = vsel %vm800, 1, 0
        %v1785 = vsel %vm801, 1, 0
        %v1786 = vsel %vm802, 1, 0
        %v1787 = vsel %vm803, 1, 0
        %v1788 = vsel %vm804, 1, 0
        %v1789 = vsel %vm805, 1, 0
        %v1790 = vsel %vm806, 1, 0
        %v1791 = vsel %vm807, 1, 0
        %v1792 = vsel %vm808, 1, 0
        %v1793 = vsel %vm809, 1, 0
        %v1794 = vsel %vm810, 1, 0
        %v1795 = vsel %vm811, 1, 0
        %v1796 = vsel %vm812, 1, 0
        %v1797 = vsel %vm813, 1, 0
        %v1798 = vsel %vm814, 1, 0
        %v1799 = vsel %vm815, 1, 0
        %v1800 = vsel %vm816, 1, 0
        %v1801 = vsel %vm817, 1, 0
        %v1802 = vsel %vm818, 1, 0
        %v1803 = vsel %vm819, 1, 0
        %v1804 = vsel %vm820, 1, 0
        %v1805 = vsel %vm821, 1, 0
        %v1806 = vsel %vm822, 1, 0
        %v1807 = vsel %vm823, 1, 0
        %v1808 = vsel %vm824, 1, 0
        %vm1809 = vcmp.eq.s32.totalorder %v1777, 1
        %vm1810 = vcmp.eq.s32.totalorder %v1778, 1
        %vm1811 = vcmp.eq.s32.totalorder %v1779, 1
        %vm1812 = vcmp.eq.s32.totalorder %v1780, 1
        %vm1813 = vcmp.eq.s32.totalorder %v1781, 1
        %vm1814 = vcmp.eq.s32.totalorder %v1782, 1
        %vm1815 = vcmp.eq.s32.totalorder %v1783, 1
        %vm1816 = vcmp.eq.s32.totalorder %v1784, 1
        %vm1817 = vcmp.eq.s32.totalorder %v1785, 1
        %vm1818 = vcmp.eq.s32.totalorder %v1786, 1
        %vm1819 = vcmp.eq.s32.totalorder %v1787, 1
        %vm1820 = vcmp.eq.s32.totalorder %v1788, 1
        %vm1821 = vcmp.eq.s32.totalorder %v1789, 1
        %vm1822 = vcmp.eq.s32.totalorder %v1790, 1
        %vm1823 = vcmp.eq.s32.totalorder %v1791, 1
        %vm1824 = vcmp.eq.s32.totalorder %v1792, 1
        %vm1825 = vcmp.eq.s32.totalorder %v1793, 1
        %vm1826 = vcmp.eq.s32.totalorder %v1794, 1
        %vm1827 = vcmp.eq.s32.totalorder %v1795, 1
        %vm1828 = vcmp.eq.s32.totalorder %v1796, 1
        %vm1829 = vcmp.eq.s32.totalorder %v1797, 1
        %vm1830 = vcmp.eq.s32.totalorder %v1798, 1
        %vm1831 = vcmp.eq.s32.totalorder %v1799, 1
        %vm1832 = vcmp.eq.s32.totalorder %v1800, 1
        %vm1833 = vcmp.eq.s32.totalorder %v1801, 1
        %vm1834 = vcmp.eq.s32.totalorder %v1802, 1
        %vm1835 = vcmp.eq.s32.totalorder %v1803, 1
        %vm1836 = vcmp.eq.s32.totalorder %v1804, 1
        %vm1837 = vcmp.eq.s32.totalorder %v1805, 1
        %vm1838 = vcmp.eq.s32.totalorder %v1806, 1
        %vm1839 = vcmp.eq.s32.totalorder %v1807, 1
        %vm1840 = vcmp.eq.s32.totalorder %v1808, 1
        %v1841 = vsel %vm1809, %v1036, 0.0
        %v1842 = vsel %vm1810, %v1041, 0.0
        %v1843 = vsel %vm1811, %v1046, 0.0
        %v1844 = vsel %vm1812, %v1051, 0.0
        %v1845 = vsel %vm1813, %v1056, 0.0
        %v1846 = vsel %vm1814, %v1061, 0.0
        %v1847 = vsel %vm1815, %v1066, 0.0
        %v1848 = vsel %vm1816, %v1071, 0.0
        %v1849 = vsel %vm1817, %v1076, 0.0
        %v1850 = vsel %vm1818, %v1081, 0.0
        %v1851 = vsel %vm1819, %v1086, 0.0
        %v1852 = vsel %vm1820, %v1091, 0.0
        %v1853 = vsel %vm1821, %v1096, 0.0
        %v1854 = vsel %vm1822, %v1101, 0.0
        %v1855 = vsel %vm1823, %v1106, 0.0
        %v1856 = vsel %vm1824, %v1111, 0.0
        %v1857 = vsel %vm1825, %v1116, 0.0
        %v1858 = vsel %vm1826, %v1121, 0.0
        %v1859 = vsel %vm1827, %v1126, 0.0
        %v1860 = vsel %vm1828, %v1131, 0.0
        %v1861 = vsel %vm1829, %v1136, 0.0
        %v1862 = vsel %vm1830, %v1141, 0.0
        %v1863 = vsel %vm1831, %v1146, 0.0
        %v1864 = vsel %vm1832, %v1151, 0.0
        %v1865 = vsel %vm1833, %v1156, 0.0
        %v1866 = vsel %vm1834, %v1161, 0.0
        %v1867 = vsel %vm1835, %v1166, 0.0
        %v1868 = vsel %vm1836, %v1171, 0.0
        %v1869 = vsel %vm1837, %v1176, 0.0
        %v1870 = vsel %vm1838, %v1181, 0.0
        %v1871 = vsel %vm1839, %v1186, 0.0
        %v1872 = vsel %vm1840, %v1191, 0.0
        %vm1905 = vcmask 1046528
        %v1906 = vrot.slane %v1841, 1
        %v1907 = vrot.slane %v1842, 1
        %v1908 = vsel %vm1905, %v1906, %v1907
        %v1909 = vrot.slane %v1843, 1
        %v1910 = vsel %vm1905, %v1907, %v1909
        %v1911 = vrot.slane %v1844, 1
        %v1912 = vsel %vm1905, %v1909, %v1911
        %v1913 = vrot.slane %v1845, 1
        %v1914 = vsel %vm1905, %v1911, %v1913
        %v1915 = vrot.slane %v1846, 1
        %v1916 = vsel %vm1905, %v1913, %v1915
        %v1917 = vrot.slane %v1847, 1
        %v1918 = vsel %vm1905, %v1915, %v1917
        %v1919 = vrot.slane %v1848, 1
        %v1920 = vsel %vm1905, %v1917, %v1919
        %v1921 = vrot.slane %v1849, 1
        %v1922 = vsel %vm1905, %v1919, %v1921
        %v1923 = vrot.slane %v1850, 1
        %v1924 = vsel %vm1905, %v1921, %v1923
        %v1925 = vrot.slane %v1851, 1
        %v1926 = vsel %vm1905, %v1923, %v1925
        %v1927 = vrot.slane %v1852, 1
        %v1928 = vsel %vm1905, %v1925, %v1927
        %v1929 = vrot.slane %v1853, 1
        %v1930 = vsel %vm1905, %v1927, %v1929
        %v1931 = vrot.slane %v1854, 1
        %v1932 = vsel %vm1905, %v1929, %v1931
        %v1933 = vrot.slane %v1855, 1
        %v1934 = vsel %vm1905, %v1931, %v1933
        %v1935 = vrot.slane %v1856, 1
        %v1936 = vsel %vm1905, %v1933, %v1935
        %v1937 = vrot.slane %v1857, 1
        %v1938 = vsel %vm1905, %v1935, %v1937
        %v1939 = vrot.slane %v1858, 1
        %v1940 = vsel %vm1905, %v1937, %v1939
        %v1941 = vrot.slane %v1859, 1
        %v1942 = vsel %vm1905, %v1939, %v1941
        %v1943 = vrot.slane %v1860, 1
        %v1944 = vsel %vm1905, %v1941, %v1943
        %v1945 = vrot.slane %v1861, 1
        %v1946 = vsel %vm1905, %v1943, %v1945
        %v1947 = vrot.slane %v1862, 1
        %v1948 = vsel %vm1905, %v1945, %v1947
        %v1949 = vrot.slane %v1863, 1
        %v1950 = vsel %vm1905, %v1947, %v1949
        %v1951 = vrot.slane %v1864, 1
        %v1952 = vsel %vm1905, %v1949, %v1951
        %v1953 = vrot.slane %v1865, 1
        %v1954 = vsel %vm1905, %v1951, %v1953
        %v1955 = vrot.slane %v1866, 1
        %v1956 = vsel %vm1905, %v1953, %v1955
        %v1957 = vrot.slane %v1867, 1
        %v1958 = vsel %vm1905, %v1955, %v1957
        %v1959 = vrot.slane %v1868, 1
        %v1960 = vsel %vm1905, %v1957, %v1959
        %v1961 = vrot.slane %v1869, 1
        %v1962 = vsel %vm1905, %v1959, %v1961
        %v1963 = vrot.slane %v1870, 1
        %v1964 = vsel %vm1905, %v1961, %v1963
        %v1965 = vrot.slane %v1871, 1
        %v1966 = vsel %vm1905, %v1963, %v1965
        %v1967 = vrot.slane %v1872, 1
        %v1968 = vsel %vm1905, %v1965, %v1967
        %2002 = vst [vmem:[#allocation2 + $0x50] sm:$0x80] %v1906
        %2003 = vst [vmem:[#allocation2 + $0x80] sm:$0xff] %v1908
        %2004 = vst [vmem:[#allocation2 + $0xb0] sm:$0xff] %v1910
        %2005 = vst [vmem:[#allocation2 + $0xe0] sm:$0xff] %v1912
        %2006 = vst [vmem:[#allocation2 + $0x110] sm:$0xff] %v1914
        %2007 = vst [vmem:[#allocation2 + $0x140] sm:$0xff] %v1916
        %2008 = vst [vmem:[#allocation2 + $0x170] sm:$0xff] %v1918
        %2009 = vst [vmem:[#allocation2 + $0x1a0] sm:$0xff] %v1920
        %2010 = vst [vmem:[#allocation2 + $0x1d0] sm:$0xff] %v1922
        %2011 = vst [vmem:[#allocation2 + $0x200] sm:$0xff] %v1924
        %2012 = vst [vmem:[#allocation2 + $0x230] sm:$0xff] %v1926
        %2013 = vst [vmem:[#allocation2 + $0x260] sm:$0xff] %v1928
        %2014 = vst [vmem:[#allocation2 + $0x290] sm:$0xff] %v1930
        %2015 = vst [vmem:[#allocation2 + $0x2c0] sm:$0xff] %v1932
        %2016 = vst [vmem:[#allocation2 + $0x2f0] sm:$0xff] %v1934
        %2017 = vst [vmem:[#allocation2 + $0x320] sm:$0xff] %v1936
        %2018 = vst [vmem:[#allocation2 + $0x350] sm:$0xff] %v1938
        %2019 = vst [vmem:[#allocation2 + $0x380] sm:$0xff] %v1940
        %2020 = vst [vmem:[#allocation2 + $0x3b0] sm:$0xff] %v1942
        %2021 = vst [vmem:[#allocation2 + $0x3e0] sm:$0xff] %v1944
        %2022 = vst [vmem:[#allocation2 + $0x410] sm:$0xff] %v1946
        %2023 = vst [vmem:[#allocation2 + $0x440] sm:$0xff] %v1948
        %2024 = vst [vmem:[#allocation2 + $0x470] sm:$0xff] %v1950
        %2025 = vst [vmem:[#allocation2 + $0x4a0] sm:$0xff] %v1952
        %2026 = vst [vmem:[#allocation2 + $0x4d0] sm:$0xff] %v1954
        %2027 = vst [vmem:[#allocation2 + $0x500] sm:$0xff] %v1956
        %2028 = vst [vmem:[#allocation2 + $0x530] sm:$0xff] %v1958
        %2029 = vst [vmem:[#allocation2 + $0x560] sm:$0xff] %v1960
        %2030 = vst [vmem:[#allocation2 + $0x590] sm:$0xff] %v1962
        %2031 = vst [vmem:[#allocation2 + $0x5c0] sm:$0xff] %v1964
        %2032 = vst [vmem:[#allocation2 + $0x5f0] sm:$0xff] %v1966
        %2033 = vst [vmem:[#allocation2 + $0x620] sm:$0xff] %v1968
        %2034 = vst [vmem:[#allocation2 + $0x650] sm:$0x7f] %v1967
        %v2035 = vsel %vm1809, %v1194, 0.0
        %v2036 = vsel %vm1810, %v1195, 0.0
        %v2037 = vsel %vm1811, %v1196, 0.0
        %v2038 = vsel %vm1812, %v1197, 0.0
        %v2039 = vsel %vm1813, %v1198, 0.0
        %v2040 = vsel %vm1814, %v1199, 0.0
        %v2041 = vsel %vm1815, %v1200, 0.0
        %v2042 = vsel %vm1816, %v1201, 0.0
        %v2043 = vsel %vm1817, %v1202, 0.0
        %v2044 = vsel %vm1818, %v1203, 0.0
        %v2045 = vsel %vm1819, %v1204, 0.0
        %v2046 = vsel %vm1820, %v1205, 0.0
        %v2047 = vsel %vm1821, %v1206, 0.0
        %v2048 = vsel %vm1822, %v1207, 0.0
        %v2049 = vsel %vm1823, %v1208, 0.0
        %v2050 = vsel %vm1824, %v1209, 0.0
        %v2051 = vsel %vm1825, %v1210, 0.0
        %v2052 = vsel %vm1826, %v1211, 0.0
        %v2053 = vsel %vm1827, %v1212, 0.0
        %v2054 = vsel %vm1828, %v1213, 0.0
        %v2055 = vsel %vm1829, %v1214, 0.0
        %v2056 = vsel %vm1830, %v1215, 0.0
        %v2057 = vsel %vm1831, %v1216, 0.0
        %v2058 = vsel %vm1832, %v1217, 0.0
        %v2059 = vsel %vm1833, %v1218, 0.0
        %v2060 = vsel %vm1834, %v1219, 0.0
        %v2061 = vsel %vm1835, %v1220, 0.0
        %v2062 = vsel %vm1836, %v1221, 0.0
        %v2063 = vsel %vm1837, %v1222, 0.0
        %v2064 = vsel %vm1838, %v1223, 0.0
        %v2065 = vsel %vm1839, %v1224, 0.0
        %v2066 = vsel %vm1840, %v1225, 0.0
        %v2099 = vrot.slane %v2035, 1
        %v2100 = vrot.slane %v2036, 1
        %v2101 = vsel %vm1905, %v2099, %v2100
        %v2102 = vrot.slane %v2037, 1
        %v2103 = vsel %vm1905, %v2100, %v2102
        %v2104 = vrot.slane %v2038, 1
        %v2105 = vsel %vm1905, %v2102, %v2104
        %v2106 = vrot.slane %v2039, 1
        %v2107 = vsel %vm1905, %v2104, %v2106
        %v2108 = vrot.slane %v2040, 1
        %v2109 = vsel %vm1905, %v2106, %v2108
        %v2110 = vrot.slane %v2041, 1
        %v2111 = vsel %vm1905, %v2108, %v2110
        %v2112 = vrot.slane %v2042, 1
        %v2113 = vsel %vm1905, %v2110, %v2112
        %v2114 = vrot.slane %v2043, 1
        %v2115 = vsel %vm1905, %v2112, %v2114
        %v2116 = vrot.slane %v2044, 1
        %v2117 = vsel %vm1905, %v2114, %v2116
        %v2118 = vrot.slane %v2045, 1
        %v2119 = vsel %vm1905, %v2116, %v2118
        %v2120 = vrot.slane %v2046, 1
        %v2121 = vsel %vm1905, %v2118, %v2120
        %v2122 = vrot.slane %v2047, 1
        %v2123 = vsel %vm1905, %v2120, %v2122
        %v2124 = vrot.slane %v2048, 1
        %v2125 = vsel %vm1905, %v2122, %v2124
        %v2126 = vrot.slane %v2049, 1
        %v2127 = vsel %vm1905, %v2124, %v2126
        %v2128 = vrot.slane %v2050, 1
        %v2129 = vsel %vm1905, %v2126, %v2128
        %v2130 = vrot.slane %v2051, 1
        %v2131 = vsel %vm1905, %v2128, %v2130
        %v2132 = vrot.slane %v2052, 1
        %v2133 = vsel %vm1905, %v2130, %v2132
        %v2134 = vrot.slane %v2053, 1
        %v2135 = vsel %vm1905, %v2132, %v2134
        %v2136 = vrot.slane %v2054, 1
        %v2137 = vsel %vm1905, %v2134, %v2136
        %v2138 = vrot.slane %v2055, 1
        %v2139 = vsel %vm1905, %v2136, %v2138
        %v2140 = vrot.slane %v2056, 1
        %v2141 = vsel %vm1905, %v2138, %v2140
        %v2142 = vrot.slane %v2057, 1
        %v2143 = vsel %vm1905, %v2140, %v2142
        %v2144 = vrot.slane %v2058, 1
        %v2145 = vsel %vm1905, %v2142, %v2144
        %v2146 = vrot.slane %v2059, 1
        %v2147 = vsel %vm1905, %v2144, %v2146
        %v2148 = vrot.slane %v2060, 1
        %v2149 = vsel %vm1905, %v2146, %v2148
        %v2150 = vrot.slane %v2061, 1
        %v2151 = vsel %vm1905, %v2148, %v2150
        %v2152 = vrot.slane %v2062, 1
        %v2153 = vsel %vm1905, %v2150, %v2152
        %v2154 = vrot.slane %v2063, 1
        %v2155 = vsel %vm1905, %v2152, %v2154
        %v2156 = vrot.slane %v2064, 1
        %v2157 = vsel %vm1905, %v2154, %v2156
        %v2158 = vrot.slane %v2065, 1
        %v2159 = vsel %vm1905, %v2156, %v2158
        %v2160 = vrot.slane %v2066, 1
        %v2161 = vsel %vm1905, %v2158, %v2160
        %2195 = vst [vmem:[#allocation2 + $0x58] sm:$0x80] %v2099
        %2196 = vst [vmem:[#allocation2 + $0x88] sm:$0xff] %v2101
        %2197 = vst [vmem:[#allocation2 + $0xb8] sm:$0xff] %v2103
        %2198 = vst [vmem:[#allocation2 + $0xe8] sm:$0xff] %v2105
        %2199 = vst [vmem:[#allocation2 + $0x118] sm:$0xff] %v2107
        %2200 = vst [vmem:[#allocation2 + $0x148] sm:$0xff] %v2109
        %2201 = vst [vmem:[#allocation2 + $0x178] sm:$0xff] %v2111
        %2202 = vst [vmem:[#allocation2 + $0x1a8] sm:$0xff] %v2113
        %2203 = vst [vmem:[#allocation2 + $0x1d8] sm:$0xff] %v2115
        %2204 = vst [vmem:[#allocation2 + $0x208] sm:$0xff] %v2117
        %2205 = vst [vmem:[#allocation2 + $0x238] sm:$0xff] %v2119
        %2206 = vst [vmem:[#allocation2 + $0x268] sm:$0xff] %v2121
        %2207 = vst [vmem:[#allocation2 + $0x298] sm:$0xff] %v2123
        %2208 = vst [vmem:[#allocation2 + $0x2c8] sm:$0xff] %v2125
        %2209 = vst [vmem:[#allocation2 + $0x2f8] sm:$0xff] %v2127
        %2210 = vst [vmem:[#allocation2 + $0x328] sm:$0xff] %v2129
        %2211 = vst [vmem:[#allocation2 + $0x358] sm:$0xff] %v2131
        %2212 = vst [vmem:[#allocation2 + $0x388] sm:$0xff] %v2133
        %2213 = vst [vmem:[#allocation2 + $0x3b8] sm:$0xff] %v2135
        %2214 = vst [vmem:[#allocation2 + $0x3e8] sm:$0xff] %v2137
        %2215 = vst [vmem:[#allocation2 + $0x418] sm:$0xff] %v2139
        %2216 = vst [vmem:[#allocation2 + $0x448] sm:$0xff] %v2141
        %2217 = vst [vmem:[#allocation2 + $0x478] sm:$0xff] %v2143
        %2218 = vst [vmem:[#allocation2 + $0x4a8] sm:$0xff] %v2145
        %2219 = vst [vmem:[#allocation2 + $0x4d8] sm:$0xff] %v2147
        %2220 = vst [vmem:[#allocation2 + $0x508] sm:$0xff] %v2149
        %2221 = vst [vmem:[#allocation2 + $0x538] sm:$0xff] %v2151
        %2222 = vst [vmem:[#allocation2 + $0x568] sm:$0xff] %v2153
        %2223 = vst [vmem:[#allocation2 + $0x598] sm:$0xff] %v2155
        %2224 = vst [vmem:[#allocation2 + $0x5c8] sm:$0xff] %v2157
        %2225 = vst [vmem:[#allocation2 + $0x5f8] sm:$0xff] %v2159
        %2226 = vst [vmem:[#allocation2 + $0x628] sm:$0xff] %v2161
        %2227 = vst [vmem:[#allocation2 + $0x658] sm:$0x7f] %v2160
        %v2228 = vld [vmem:[#allocation2] sm:$0xff]
        %v2229 = vld [vmem:[#allocation2 + $0x8] sm:$0xff]
        %v2230 = vld [vmem:[#allocation2 + $0x10] sm:$0xff]
        %v2231 = vld [vmem:[#allocation2 + $0x18] sm:$0xff]
        %v2232 = vld [vmem:[#allocation2 + $0x20] sm:$0xff]
        %v2233 = vld [vmem:[#allocation2 + $0x28] sm:$0xff]
        %v2234 = vld [vmem:[#allocation2 + $0x30] sm:$0xff]
        %v2235 = vld [vmem:[#allocation2 + $0x38] sm:$0xff]
        %v2236 = vld [vmem:[#allocation2 + $0x40] sm:$0xff]
        %v2237 = vld [vmem:[#allocation2 + $0x48] sm:$0xff]
        %v2238 = vld [vmem:[#allocation2 + $0x50] sm:$0xff]
        %v2239 = vld [vmem:[#allocation2 + $0x58] sm:$0xff]
        %v2240 = vld [vmem:[#allocation2 + $0x60] sm:$0xff]
        %v2241 = vld [vmem:[#allocation2 + $0x68] sm:$0xff]
        %v2242 = vld [vmem:[#allocation2 + $0x70] sm:$0xff]
        %v2243 = vld [vmem:[#allocation2 + $0x78] sm:$0xff]
        %v2244 = vld [vmem:[#allocation2 + $0x80] sm:$0xff]
        %v2245 = vld [vmem:[#allocation2 + $0x88] sm:$0xff]
        %v2246 = vld [vmem:[#allocation2 + $0x90] sm:$0xff]
        %v2247 = vld [vmem:[#allocation2 + $0x98] sm:$0xff]
        %v2248 = vld [vmem:[#allocation2 + $0xa0] sm:$0xff]
        %v2249 = vld [vmem:[#allocation2 + $0xa8] sm:$0xff]
        %v2250 = vld [vmem:[#allocation2 + $0xb0] sm:$0xff]
        %v2251 = vld [vmem:[#allocation2 + $0xb8] sm:$0xff]
        %v2252 = vld [vmem:[#allocation2 + $0xc0] sm:$0xff]
        %v2253 = vld [vmem:[#allocation2 + $0xc8] sm:$0xff]
        %v2254 = vld [vmem:[#allocation2 + $0xd0] sm:$0xff]
        %v2255 = vld [vmem:[#allocation2 + $0xd8] sm:$0xff]
        %v2256 = vld [vmem:[#allocation2 + $0xe0] sm:$0xff]
        %v2257 = vld [vmem:[#allocation2 + $0xe8] sm:$0xff]
        %v2258 = vld [vmem:[#allocation2 + $0xf0] sm:$0xff]
        %v2259 = vld [vmem:[#allocation2 + $0xf8] sm:$0xff]
        %v2260 = vld [vmem:[#allocation2 + $0x100] sm:$0xff]
        %v2261 = vld [vmem:[#allocation2 + $0x108] sm:$0xff]
        %v2262 = vld [vmem:[#allocation2 + $0x110] sm:$0xff]
        %v2263 = vld [vmem:[#allocation2 + $0x118] sm:$0xff]
        %v2264 = vld [vmem:[#allocation2 + $0x120] sm:$0xff]
        %v2265 = vld [vmem:[#allocation2 + $0x128] sm:$0xff]
        %v2266 = vld [vmem:[#allocation2 + $0x130] sm:$0xff]
        %v2267 = vld [vmem:[#allocation2 + $0x138] sm:$0xff]
        %v2268 = vld [vmem:[#allocation2 + $0x140] sm:$0xff]
        %v2269 = vld [vmem:[#allocation2 + $0x148] sm:$0xff]
        %v2270 = vld [vmem:[#allocation2 + $0x150] sm:$0xff]
        %v2271 = vld [vmem:[#allocation2 + $0x158] sm:$0xff]
        %v2272 = vld [vmem:[#allocation2 + $0x160] sm:$0xff]
        %v2273 = vld [vmem:[#allocation2 + $0x168] sm:$0xff]
        %v2274 = vld [vmem:[#allocation2 + $0x170] sm:$0xff]
        %v2275 = vld [vmem:[#allocation2 + $0x178] sm:$0xff]
        %v2276 = vld [vmem:[#allocation2 + $0x180] sm:$0xff]
        %v2277 = vld [vmem:[#allocation2 + $0x188] sm:$0xff]
        %v2278 = vld [vmem:[#allocation2 + $0x190] sm:$0xff]
        %v2279 = vld [vmem:[#allocation2 + $0x198] sm:$0xff]
        %v2280 = vld [vmem:[#allocation2 + $0x1a0] sm:$0xff]
        %v2281 = vld [vmem:[#allocation2 + $0x1a8] sm:$0xff]
        %v2282 = vld [vmem:[#allocation2 + $0x1b0] sm:$0xff]
        %v2283 = vld [vmem:[#allocation2 + $0x1b8] sm:$0xff]
        %v2284 = vld [vmem:[#allocation2 + $0x1c0] sm:$0xff]
        %v2285 = vld [vmem:[#allocation2 + $0x1c8] sm:$0xff]
        %v2286 = vld [vmem:[#allocation2 + $0x1d0] sm:$0xff]
        %v2287 = vld [vmem:[#allocation2 + $0x1d8] sm:$0xff]
        %v2288 = vld [vmem:[#allocation2 + $0x1e0] sm:$0xff]
        %v2289 = vld [vmem:[#allocation2 + $0x1e8] sm:$0xff]
        %v2290 = vld [vmem:[#allocation2 + $0x1f0] sm:$0xff]
        %v2291 = vld [vmem:[#allocation2 + $0x1f8] sm:$0xff]
        %v2292 = vld [vmem:[#allocation2 + $0x200] sm:$0xff]
        %v2293 = vld [vmem:[#allocation2 + $0x208] sm:$0xff]
        %v2294 = vld [vmem:[#allocation2 + $0x210] sm:$0xff]
        %v2295 = vld [vmem:[#allocation2 + $0x218] sm:$0xff]
        %v2296 = vld [vmem:[#allocation2 + $0x220] sm:$0xff]
        %v2297 = vld [vmem:[#allocation2 + $0x228] sm:$0xff]
        %v2298 = vld [vmem:[#allocation2 + $0x230] sm:$0xff]
        %v2299 = vld [vmem:[#allocation2 + $0x238] sm:$0xff]
        %v2300 = vld [vmem:[#allocation2 + $0x240] sm:$0xff]
        %v2301 = vld [vmem:[#allocation2 + $0x248] sm:$0xff]
        %v2302 = vld [vmem:[#allocation2 + $0x250] sm:$0xff]
        %v2303 = vld [vmem:[#allocation2 + $0x258] sm:$0xff]
        %v2304 = vld [vmem:[#allocation2 + $0x260] sm:$0xff]
        %v2305 = vld [vmem:[#allocation2 + $0x268] sm:$0xff]
        %v2306 = vld [vmem:[#allocation2 + $0x270] sm:$0xff]
        %v2307 = vld [vmem:[#allocation2 + $0x278] sm:$0xff]
        %v2308 = vld [vmem:[#allocation2 + $0x280] sm:$0xff]
        %v2309 = vld [vmem:[#allocation2 + $0x288] sm:$0xff]
        %v2310 = vld [vmem:[#allocation2 + $0x290] sm:$0xff]
        %v2311 = vld [vmem:[#allocation2 + $0x298] sm:$0xff]
        %v2312 = vld [vmem:[#allocation2 + $0x2a0] sm:$0xff]
        %v2313 = vld [vmem:[#allocation2 + $0x2a8] sm:$0xff]
        %v2314 = vld [vmem:[#allocation2 + $0x2b0] sm:$0xff]
        %v2315 = vld [vmem:[#allocation2 + $0x2b8] sm:$0xff]
        %v2316 = vld [vmem:[#allocation2 + $0x2c0] sm:$0xff]
        %v2317 = vld [vmem:[#allocation2 + $0x2c8] sm:$0xff]
        %v2318 = vld [vmem:[#allocation2 + $0x2d0] sm:$0xff]
        %v2319 = vld [vmem:[#allocation2 + $0x2d8] sm:$0xff]
        %v2320 = vld [vmem:[#allocation2 + $0x2e0] sm:$0xff]
        %v2321 = vld [vmem:[#allocation2 + $0x2e8] sm:$0xff]
        %v2322 = vld [vmem:[#allocation2 + $0x2f0] sm:$0xff]
        %v2323 = vld [vmem:[#allocation2 + $0x2f8] sm:$0xff]
        %v2324 = vld [vmem:[#allocation2 + $0x300] sm:$0xff]
        %v2325 = vld [vmem:[#allocation2 + $0x308] sm:$0xff]
        %v2326 = vld [vmem:[#allocation2 + $0x310] sm:$0xff]
        %v2327 = vld [vmem:[#allocation2 + $0x318] sm:$0xff]
        %v2328 = vld [vmem:[#allocation2 + $0x320] sm:$0xff]
        %v2329 = vld [vmem:[#allocation2 + $0x328] sm:$0xff]
        %v2330 = vld [vmem:[#allocation2 + $0x330] sm:$0xff]
        %v2331 = vld [vmem:[#allocation2 + $0x338] sm:$0xff]
        %v2332 = vld [vmem:[#allocation2 + $0x340] sm:$0xff]
        %v2333 = vld [vmem:[#allocation2 + $0x348] sm:$0xff]
        %v2334 = vld [vmem:[#allocation2 + $0x350] sm:$0xff]
        %v2335 = vld [vmem:[#allocation2 + $0x358] sm:$0xff]
        %v2336 = vld [vmem:[#allocation2 + $0x360] sm:$0xff]
        %v2337 = vld [vmem:[#allocation2 + $0x368] sm:$0xff]
        %v2338 = vld [vmem:[#allocation2 + $0x370] sm:$0xff]
        %v2339 = vld [vmem:[#allocation2 + $0x378] sm:$0xff]
        %v2340 = vld [vmem:[#allocation2 + $0x380] sm:$0xff]
        %v2341 = vld [vmem:[#allocation2 + $0x388] sm:$0xff]
        %v2342 = vld [vmem:[#allocation2 + $0x390] sm:$0xff]
        %v2343 = vld [vmem:[#allocation2 + $0x398] sm:$0xff]
        %v2344 = vld [vmem:[#allocation2 + $0x3a0] sm:$0xff]
        %v2345 = vld [vmem:[#allocation2 + $0x3a8] sm:$0xff]
        %v2346 = vld [vmem:[#allocation2 + $0x3b0] sm:$0xff]
        %v2347 = vld [vmem:[#allocation2 + $0x3b8] sm:$0xff]
        %v2348 = vld [vmem:[#allocation2 + $0x3c0] sm:$0xff]
        %v2349 = vld [vmem:[#allocation2 + $0x3c8] sm:$0xff]
        %v2350 = vld [vmem:[#allocation2 + $0x3d0] sm:$0xff]
        %v2351 = vld [vmem:[#allocation2 + $0x3d8] sm:$0xff]
        %v2352 = vld [vmem:[#allocation2 + $0x3e0] sm:$0xff]
        %v2353 = vld [vmem:[#allocation2 + $0x3e8] sm:$0xff]
        %v2354 = vld [vmem:[#allocation2 + $0x3f0] sm:$0xff]
        %v2355 = vld [vmem:[#allocation2 + $0x3f8] sm:$0xff]
        %v2356 = vld [vmem:[#allocation2 + $0x400] sm:$0xff]
        %v2357 = vld [vmem:[#allocation2 + $0x408] sm:$0xff]
        %v2358 = vld [vmem:[#allocation2 + $0x410] sm:$0xff]
        %v2359 = vld [vmem:[#allocation2 + $0x418] sm:$0xff]
        %v2360 = vld [vmem:[#allocation2 + $0x420] sm:$0xff]
        %v2361 = vld [vmem:[#allocation2 + $0x428] sm:$0xff]
        %v2362 = vld [vmem:[#allocation2 + $0x430] sm:$0xff]
        %v2363 = vld [vmem:[#allocation2 + $0x438] sm:$0xff]
        %v2364 = vld [vmem:[#allocation2 + $0x440] sm:$0xff]
        %v2365 = vld [vmem:[#allocation2 + $0x448] sm:$0xff]
        %v2366 = vld [vmem:[#allocation2 + $0x450] sm:$0xff]
        %v2367 = vld [vmem:[#allocation2 + $0x458] sm:$0xff]
        %v2368 = vld [vmem:[#allocation2 + $0x460] sm:$0xff]
        %v2369 = vld [vmem:[#allocation2 + $0x468] sm:$0xff]
        %v2370 = vld [vmem:[#allocation2 + $0x470] sm:$0xff]
        %v2371 = vld [vmem:[#allocation2 + $0x478] sm:$0xff]
        %v2372 = vld [vmem:[#allocation2 + $0x480] sm:$0xff]
        %v2373 = vld [vmem:[#allocation2 + $0x488] sm:$0xff]
        %v2374 = vld [vmem:[#allocation2 + $0x490] sm:$0xff]
        %v2375 = vld [vmem:[#allocation2 + $0x498] sm:$0xff]
        %v2376 = vld [vmem:[#allocation2 + $0x4a0] sm:$0xff]
        %v2377 = vld [vmem:[#allocation2 + $0x4a8] sm:$0xff]
        %v2378 = vld [vmem:[#allocation2 + $0x4b0] sm:$0xff]
        %v2379 = vld [vmem:[#allocation2 + $0x4b8] sm:$0xff]
        %v2380 = vld [vmem:[#allocation2 + $0x4c0] sm:$0xff]
        %v2381 = vld [vmem:[#allocation2 + $0x4c8] sm:$0xff]
        %v2382 = vld [vmem:[#allocation2 + $0x4d0] sm:$0xff]
        %v2383 = vld [vmem:[#allocation2 + $0x4d8] sm:$0xff]
        %v2384 = vld [vmem:[#allocation2 + $0x4e0] sm:$0xff]
        %v2385 = vld [vmem:[#allocation2 + $0x4e8] sm:$0xff]
        %v2386 = vld [vmem:[#allocation2 + $0x4f0] sm:$0xff]
        %v2387 = vld [vmem:[#allocation2 + $0x4f8] sm:$0xff]
        %v2388 = vld [vmem:[#allocation2 + $0x500] sm:$0xff]
        %v2389 = vld [vmem:[#allocation2 + $0x508] sm:$0xff]
        %v2390 = vld [vmem:[#allocation2 + $0x510] sm:$0xff]
        %v2391 = vld [vmem:[#allocation2 + $0x518] sm:$0xff]
        %v2392 = vld [vmem:[#allocation2 + $0x520] sm:$0xff]
        %v2393 = vld [vmem:[#allocation2 + $0x528] sm:$0xff]
        %v2394 = vld [vmem:[#allocation2 + $0x530] sm:$0xff]
        %v2395 = vld [vmem:[#allocation2 + $0x538] sm:$0xff]
        %v2396 = vld [vmem:[#allocation2 + $0x540] sm:$0xff]
        %v2397 = vld [vmem:[#allocation2 + $0x548] sm:$0xff]
        %v2398 = vld [vmem:[#allocation2 + $0x550] sm:$0xff]
        %v2399 = vld [vmem:[#allocation2 + $0x558] sm:$0xff]
        %v2400 = vld [vmem:[#allocation2 + $0x560] sm:$0xff]
        %v2401 = vld [vmem:[#allocation2 + $0x568] sm:$0xff]
        %v2402 = vld [vmem:[#allocation2 + $0x570] sm:$0xff]
        %v2403 = vld [vmem:[#allocation2 + $0x578] sm:$0xff]
        %v2404 = vld [vmem:[#allocation2 + $0x580] sm:$0xff]
        %v2405 = vld [vmem:[#allocation2 + $0x588] sm:$0xff]
        %v2406 = vld [vmem:[#allocation2 + $0x590] sm:$0xff]
        %v2407 = vld [vmem:[#allocation2 + $0x598] sm:$0xff]
        %v2408 = vld [vmem:[#allocation2 + $0x5a0] sm:$0xff]
        %v2409 = vld [vmem:[#allocation2 + $0x5a8] sm:$0xff]
        %v2410 = vld [vmem:[#allocation2 + $0x5b0] sm:$0xff]
        %v2411 = vld [vmem:[#allocation2 + $0x5b8] sm:$0xff]
        %v2412 = vld [vmem:[#allocation2 + $0x5c0] sm:$0xff]
        %v2413 = vld [vmem:[#allocation2 + $0x5c8] sm:$0xff]
        %v2414 = vld [vmem:[#allocation2 + $0x5d0] sm:$0xff]
        %v2415 = vld [vmem:[#allocation2 + $0x5d8] sm:$0xff]
        %v2416 = vld [vmem:[#allocation2 + $0x5e0] sm:$0xff]
        %v2417 = vld [vmem:[#allocation2 + $0x5e8] sm:$0xff]
        %v2418 = vld [vmem:[#allocation2 + $0x5f0] sm:$0xff]
        %v2419 = vld [vmem:[#allocation2 + $0x5f8] sm:$0xff]
        %v2420 = vld [vmem:[#allocation9] sm:$0xff]
        %v2421 = vld [vmem:[#allocation9 + $0x8] sm:$0xff]
        %v2422 = vld [vmem:[#allocation9 + $0x10] sm:$0xff]
        %v2423 = vld [vmem:[#allocation9 + $0x18] sm:$0xff]
        %v2424 = vld [vmem:[#allocation9 + $0x20] sm:$0xff]
        %v2425 = vld [vmem:[#allocation9 + $0x28] sm:$0xff]
        %v2426 = vld [vmem:[#allocation9 + $0x30] sm:$0xff]
        %v2427 = vld [vmem:[#allocation9 + $0x38] sm:$0xff]
        %v2428 = vld [vmem:[#allocation9 + $0x40] sm:$0xff]
        %v2429 = vld [vmem:[#allocation9 + $0x48] sm:$0xff]
        %v2430 = vld [vmem:[#allocation9 + $0x50] sm:$0xff]
        %v2431 = vld [vmem:[#allocation9 + $0x58] sm:$0xff]
        %v2432 = vld [vmem:[#allocation9 + $0x60] sm:$0xff]
        %v2433 = vld [vmem:[#allocation9 + $0x68] sm:$0xff]
        %v2434 = vld [vmem:[#allocation9 + $0x70] sm:$0xff]
        %v2435 = vld [vmem:[#allocation9 + $0x78] sm:$0xff]
        %v2436 = vld [vmem:[#allocation9 + $0x80] sm:$0xff]
        %v2437 = vld [vmem:[#allocation9 + $0x88] sm:$0xff]
        %v2438 = vld [vmem:[#allocation9 + $0x90] sm:$0xff]
        %v2439 = vld [vmem:[#allocation9 + $0x98] sm:$0xff]
        %v2440 = vld [vmem:[#allocation9 + $0xa0] sm:$0xff]
        %v2441 = vld [vmem:[#allocation9 + $0xa8] sm:$0xff]
        %v2442 = vld [vmem:[#allocation9 + $0xb0] sm:$0xff]
        %v2443 = vld [vmem:[#allocation9 + $0xb8] sm:$0xff]
        %v2444 = vld [vmem:[#allocation9 + $0xc0] sm:$0xff]
        %v2445 = vld [vmem:[#allocation9 + $0xc8] sm:$0xff]
        %v2446 = vld [vmem:[#allocation9 + $0xd0] sm:$0xff]
        %v2447 = vld [vmem:[#allocation9 + $0xd8] sm:$0xff]
        %v2448 = vld [vmem:[#allocation9 + $0xe0] sm:$0xff]
        %v2449 = vld [vmem:[#allocation9 + $0xe8] sm:$0xff]
        %v2450 = vld [vmem:[#allocation9 + $0xf0] sm:$0xff]
        %v2451 = vld [vmem:[#allocation9 + $0xf8] sm:$0xff]
        %v2452 = vld [vmem:[#allocation9 + $0x100] sm:$0xff]
        %v2453 = vld [vmem:[#allocation9 + $0x108] sm:$0xff]
        %v2454 = vld [vmem:[#allocation9 + $0x110] sm:$0xff]
        %v2455 = vld [vmem:[#allocation9 + $0x118] sm:$0xff]
        %v2456 = vld [vmem:[#allocation9 + $0x120] sm:$0xff]
        %v2457 = vld [vmem:[#allocation9 + $0x128] sm:$0xff]
        %v2458 = vld [vmem:[#allocation9 + $0x130] sm:$0xff]
        %v2459 = vld [vmem:[#allocation9 + $0x138] sm:$0xff]
        %v2460 = vld [vmem:[#allocation9 + $0x140] sm:$0xff]
        %v2461 = vld [vmem:[#allocation9 + $0x148] sm:$0xff]
        %v2462 = vld [vmem:[#allocation9 + $0x150] sm:$0xff]
        %v2463 = vld [vmem:[#allocation9 + $0x158] sm:$0xff]
        %v2464 = vld [vmem:[#allocation9 + $0x160] sm:$0xff]
        %v2465 = vld [vmem:[#allocation9 + $0x168] sm:$0xff]
        %v2466 = vld [vmem:[#allocation9 + $0x170] sm:$0xff]
        %v2467 = vld [vmem:[#allocation9 + $0x178] sm:$0xff]
        %v2468 = vld [vmem:[#allocation9 + $0x180] sm:$0xff]
        %v2469 = vld [vmem:[#allocation9 + $0x188] sm:$0xff]
        %v2470 = vld [vmem:[#allocation9 + $0x190] sm:$0xff]
        %v2471 = vld [vmem:[#allocation9 + $0x198] sm:$0xff]
        %v2472 = vld [vmem:[#allocation9 + $0x1a0] sm:$0xff]
        %v2473 = vld [vmem:[#allocation9 + $0x1a8] sm:$0xff]
        %v2474 = vld [vmem:[#allocation9 + $0x1b0] sm:$0xff]
        %v2475 = vld [vmem:[#allocation9 + $0x1b8] sm:$0xff]
        %v2476 = vld [vmem:[#allocation9 + $0x1c0] sm:$0xff]
        %v2477 = vld [vmem:[#allocation9 + $0x1c8] sm:$0xff]
        %v2478 = vld [vmem:[#allocation9 + $0x1d0] sm:$0xff]
        %v2479 = vld [vmem:[#allocation9 + $0x1d8] sm:$0xff]
        %v2480 = vld [vmem:[#allocation9 + $0x1e0] sm:$0xff]
        %v2481 = vld [vmem:[#allocation9 + $0x1e8] sm:$0xff]
        %v2482 = vld [vmem:[#allocation9 + $0x1f0] sm:$0xff]
        %v2483 = vld [vmem:[#allocation9 + $0x1f8] sm:$0xff]
        %v2484 = vld [vmem:[#allocation9 + $0x200] sm:$0xff]
        %v2485 = vld [vmem:[#allocation9 + $0x208] sm:$0xff]
        %v2486 = vld [vmem:[#allocation9 + $0x210] sm:$0xff]
        %v2487 = vld [vmem:[#allocation9 + $0x218] sm:$0xff]
        %v2488 = vld [vmem:[#allocation9 + $0x220] sm:$0xff]
        %v2489 = vld [vmem:[#allocation9 + $0x228] sm:$0xff]
        %v2490 = vld [vmem:[#allocation9 + $0x230] sm:$0xff]
        %v2491 = vld [vmem:[#allocation9 + $0x238] sm:$0xff]
        %v2492 = vld [vmem:[#allocation9 + $0x240] sm:$0xff]
        %v2493 = vld [vmem:[#allocation9 + $0x248] sm:$0xff]
        %v2494 = vld [vmem:[#allocation9 + $0x250] sm:$0xff]
        %v2495 = vld [vmem:[#allocation9 + $0x258] sm:$0xff]
        %v2496 = vld [vmem:[#allocation9 + $0x260] sm:$0xff]
        %v2497 = vld [vmem:[#allocation9 + $0x268] sm:$0xff]
        %v2498 = vld [vmem:[#allocation9 + $0x270] sm:$0xff]
        %v2499 = vld [vmem:[#allocation9 + $0x278] sm:$0xff]
        %v2500 = vld [vmem:[#allocation9 + $0x280] sm:$0xff]
        %v2501 = vld [vmem:[#allocation9 + $0x288] sm:$0xff]
        %v2502 = vld [vmem:[#allocation9 + $0x290] sm:$0xff]
        %v2503 = vld [vmem:[#allocation9 + $0x298] sm:$0xff]
        %v2504 = vld [vmem:[#allocation9 + $0x2a0] sm:$0xff]
        %v2505 = vld [vmem:[#allocation9 + $0x2a8] sm:$0xff]
        %v2506 = vld [vmem:[#allocation9 + $0x2b0] sm:$0xff]
        %v2507 = vld [vmem:[#allocation9 + $0x2b8] sm:$0xff]
        %v2508 = vld [vmem:[#allocation9 + $0x2c0] sm:$0xff]
        %v2509 = vld [vmem:[#allocation9 + $0x2c8] sm:$0xff]
        %v2510 = vld [vmem:[#allocation9 + $0x2d0] sm:$0xff]
        %v2511 = vld [vmem:[#allocation9 + $0x2d8] sm:$0xff]
        %v2512 = vld [vmem:[#allocation9 + $0x2e0] sm:$0xff]
        %v2513 = vld [vmem:[#allocation9 + $0x2e8] sm:$0xff]
        %v2514 = vld [vmem:[#allocation9 + $0x2f0] sm:$0xff]
        %v2515 = vld [vmem:[#allocation9 + $0x2f8] sm:$0xff]
        %v2516 = vld [vmem:[#allocation2 + $0x600] sm:$0xff]
        %v2517 = vld [vmem:[#allocation2 + $0x608] sm:$0xff]
        %v2518 = vld [vmem:[#allocation2 + $0x610] sm:$0xff]
        %v2519 = vld [vmem:[#allocation2 + $0x618] sm:$0xff]
        %v2520 = vld [vmem:[#allocation2 + $0x620] sm:$0xff]
        %v2521 = vld [vmem:[#allocation2 + $0x628] sm:$0xff]
        %v2522 = vld [vmem:[#allocation2 + $0x630] sm:$0xff]
        %v2523 = vld [vmem:[#allocation2 + $0x638] sm:$0xff]
        %v2524 = vld [vmem:[#allocation2 + $0x640] sm:$0xff]
        %v2525 = vld [vmem:[#allocation2 + $0x648] sm:$0xff]
        %v2526 = vld [vmem:[#allocation2 + $0x650] sm:$0xff]
        %v2527 = vld [vmem:[#allocation2 + $0x658] sm:$0xff]
        %s2528 = scalar_lea.vmem [#allocation9], 768
        %v2529 = vld [vmem:[%s2528] sm:$0xff]
        %v2530 = vld [vmem:[%s2528 + $0x8] sm:$0xff]
        %v2531 = vld [vmem:[%s2528 + $0x10] sm:$0xff]
        %v2532 = vld [vmem:[%s2528 + $0x18] sm:$0xff]
        %v2533 = vld [vmem:[%s2528 + $0x20] sm:$0xff]
        %v2534 = vld [vmem:[%s2528 + $0x28] sm:$0xff]
        %v2535 = vld [vmem:[%s2528 + $0x30] sm:$0xff]
        %v2536 = vld [vmem:[%s2528 + $0x38] sm:$0xff]
        %v2537 = vld [vmem:[%s2528 + $0x40] sm:$0xff]
        %v2538 = vld [vmem:[%s2528 + $0x48] sm:$0xff]
        %v2539 = vld [vmem:[%s2528 + $0x50] sm:$0xff]
        %v2540 = vld [vmem:[%s2528 + $0x58] sm:$0xff]
        %v2541 = vld [vmem:[%s2528 + $0x60] sm:$0xff]
        %v2542 = vld [vmem:[%s2528 + $0x68] sm:$0xff]
        %v2543 = vld [vmem:[%s2528 + $0x70] sm:$0xff]
        %v2544 = vld [vmem:[%s2528 + $0x78] sm:$0xff]
        %v2545 = vld [vmem:[%s2528 + $0x80] sm:$0xff]
        %v2546 = vld [vmem:[%s2528 + $0x88] sm:$0xff]
        %v2547 = vld [vmem:[%s2528 + $0x90] sm:$0xff]
        %v2548 = vld [vmem:[%s2528 + $0x98] sm:$0xff]
        %v2549 = vld [vmem:[%s2528 + $0xa0] sm:$0xff]
        %v2550 = vld [vmem:[%s2528 + $0xa8] sm:$0xff]
        %v2551 = vld [vmem:[%s2528 + $0xb0] sm:$0xff]
        %v2552 = vld [vmem:[%s2528 + $0xb8] sm:$0xff]
        %v2553 = vld [vmem:[%s2528 + $0xc0] sm:$0xff]
        %v2554 = vld [vmem:[%s2528 + $0xc8] sm:$0xff]
        %v2555 = vld [vmem:[%s2528 + $0xd0] sm:$0xff]
        %v2556 = vld [vmem:[%s2528 + $0xd8] sm:$0xff]
        %v2557 = vld [vmem:[%s2528 + $0xe0] sm:$0xff]
        %v2558 = vld [vmem:[%s2528 + $0xe8] sm:$0xff]
        %v2559 = vld [vmem:[%s2528 + $0xf0] sm:$0xff]
        %v2560 = vld [vmem:[%s2528 + $0xf8] sm:$0xff]
        %v2561 = vld [vmem:[%s2528 + $0x100] sm:$0xff]
        %v2562 = vld [vmem:[%s2528 + $0x108] sm:$0xff]
        %v2563 = vld [vmem:[%s2528 + $0x110] sm:$0xff]
        %v2564 = vld [vmem:[%s2528 + $0x118] sm:$0xff]
        %v2565 = vld [vmem:[%s2528 + $0x120] sm:$0xff]
        %v2566 = vld [vmem:[%s2528 + $0x128] sm:$0xff]
        %v2567 = vld [vmem:[%s2528 + $0x130] sm:$0xff]
        %v2568 = vld [vmem:[%s2528 + $0x138] sm:$0xff]
        %v2569 = vld [vmem:[%s2528 + $0x140] sm:$0xff]
        %v2570 = vld [vmem:[%s2528 + $0x148] sm:$0xff]
        %v2571 = vld [vmem:[%s2528 + $0x150] sm:$0xff]
        %v2572 = vld [vmem:[%s2528 + $0x158] sm:$0xff]
        %v2573 = vld [vmem:[%s2528 + $0x160] sm:$0xff]
        %v2574 = vld [vmem:[%s2528 + $0x168] sm:$0xff]
        %v2575 = vld [vmem:[%s2528 + $0x170] sm:$0xff]
        %v2576 = vld [vmem:[%s2528 + $0x178] sm:$0xff]
        %v2577 = vld [vmem:[%s2528 + $0x180] sm:$0xff]
        %v2578 = vld [vmem:[%s2528 + $0x188] sm:$0xff]
        %v2579 = vld [vmem:[%s2528 + $0x190] sm:$0xff]
        %v2580 = vld [vmem:[%s2528 + $0x198] sm:$0xff]
        %v2581 = vld [vmem:[%s2528 + $0x1a0] sm:$0xff]
        %v2582 = vld [vmem:[%s2528 + $0x1a8] sm:$0xff]
        %v2583 = vld [vmem:[%s2528 + $0x1b0] sm:$0xff]
        %v2584 = vld [vmem:[%s2528 + $0x1b8] sm:$0xff]
        %v2585 = vld [vmem:[%s2528 + $0x1c0] sm:$0xff]
        %v2586 = vld [vmem:[%s2528 + $0x1c8] sm:$0xff]
        %v2587 = vld [vmem:[%s2528 + $0x1d0] sm:$0xff]
        %v2588 = vld [vmem:[%s2528 + $0x1d8] sm:$0xff]
        %v2589 = vld [vmem:[%s2528 + $0x1e0] sm:$0xff]
        %v2590 = vld [vmem:[%s2528 + $0x1e8] sm:$0xff]
        %v2591 = vld [vmem:[%s2528 + $0x1f0] sm:$0xff]
        %v2592 = vld [vmem:[%s2528 + $0x1f8] sm:$0xff]
        %v2593 = vld [vmem:[%s2528 + $0x200] sm:$0xff]
        %v2594 = vld [vmem:[%s2528 + $0x208] sm:$0xff]
        %v2595 = vld [vmem:[%s2528 + $0x210] sm:$0xff]
        %v2596 = vld [vmem:[%s2528 + $0x218] sm:$0xff]
        %v2597 = vld [vmem:[%s2528 + $0x220] sm:$0xff]
        %v2598 = vld [vmem:[%s2528 + $0x228] sm:$0xff]
        %v2599 = vld [vmem:[%s2528 + $0x230] sm:$0xff]
        %v2600 = vld [vmem:[%s2528 + $0x238] sm:$0xff]
        %v2601 = vld [vmem:[%s2528 + $0x240] sm:$0xff]
        %v2602 = vld [vmem:[%s2528 + $0x248] sm:$0xff]
        %v2603 = vld [vmem:[%s2528 + $0x250] sm:$0xff]
        %v2604 = vld [vmem:[%s2528 + $0x258] sm:$0xff]
        %v2605 = vld [vmem:[%s2528 + $0x260] sm:$0xff]
        %v2606 = vld [vmem:[%s2528 + $0x268] sm:$0xff]
        %v2607 = vld [vmem:[%s2528 + $0x270] sm:$0xff]
        %v2608 = vld [vmem:[%s2528 + $0x278] sm:$0xff]
        %v2609 = vld [vmem:[%s2528 + $0x280] sm:$0xff]
        %v2610 = vld [vmem:[%s2528 + $0x288] sm:$0xff]
        %v2611 = vld [vmem:[%s2528 + $0x290] sm:$0xff]
        %v2612 = vld [vmem:[%s2528 + $0x298] sm:$0xff]
        %v2613 = vld [vmem:[%s2528 + $0x2a0] sm:$0xff]
        %v2614 = vld [vmem:[%s2528 + $0x2a8] sm:$0xff]
        %v2615 = vld [vmem:[%s2528 + $0x2b0] sm:$0xff]
        %v2616 = vld [vmem:[%s2528 + $0x2b8] sm:$0xff]
        %v2617 = vld [vmem:[%s2528 + $0x2c0] sm:$0xff]
        %v2618 = vld [vmem:[%s2528 + $0x2c8] sm:$0xff]
        %v2619 = vld [vmem:[%s2528 + $0x2d0] sm:$0xff]
        %v2620 = vld [vmem:[%s2528 + $0x2d8] sm:$0xff]
        %v2621 = vld [vmem:[%s2528 + $0x2e0] sm:$0xff]
        %v2622 = vld [vmem:[%s2528 + $0x2e8] sm:$0xff]
        %v2623 = vld [vmem:[%s2528 + $0x2f0] sm:$0xff]
        %v2624 = vld [vmem:[%s2528 + $0x2f8] sm:$0xff]
        %2625 = vmatprep.subr.mxu0 0.0
        %2626 = vmatpush1.msra.mxu0 %v2529
        %2627 = vmatprep.subr.mxu0 0.0
        %2628 = vmatpush1.msra.mxu0 %v2530
        %2629 = vmatprep.subr.mxu0 0.0
        %2630 = vmatpush1.msra.mxu0 %v2531
        %2631 = vmatprep.subr.mxu0 0.0
        %2632 = vmatpush1.msra.mxu0 %v2532
        %2633 = vmatprep.subr.mxu0 0.0
        %2634 = vmatpush1.msra.mxu0 %v2533
        %2635 = vmatprep.subr.mxu0 0.0
        %2636 = vmatpush1.msra.mxu0 %v2534
        %2637 = vmatprep.subr.mxu0 0.0
        %2638 = vmatpush1.msra.mxu0 %v2535
        %2639 = vmatprep.subr.mxu0 0.0
        %2640 = vmatpush1.msra.mxu0 %v2536
        %2641 = vmatprep.subr.mxu0 0.0
        %2642 = vmatpush1.msra.mxu0 %v2537
        %2643 = vmatprep.subr.mxu0 0.0
        %2644 = vmatpush1.msra.mxu0 %v2538
        %2645 = vmatprep.subr.mxu0 0.0
        %2646 = vmatpush1.msra.mxu0 %v2539
        %2647 = vmatprep.subr.mxu0 0.0
        %2648 = vmatpush1.msra.mxu0 %v2540
        %2649 = vmatprep.subr.mxu0 0.0
        %2650 = vmatpush1.msra.mxu0 %v2541
        %2651 = vmatprep.subr.mxu0 0.0
        %2652 = vmatpush1.msra.mxu0 %v2542
        %2653 = vmatprep.subr.mxu0 0.0
        %2654 = vmatpush1.msra.mxu0 %v2543
        %2655 = vmatprep.subr.mxu0 0.0
        %2656 = vmatpush1.msra.mxu0 %v2544
        %2657 = vmatprep.subr.mxu0 0.0
        %2658 = vmatpush1.msra.mxu0 %v2545
        %2659 = vmatprep.subr.mxu0 0.0
        %2660 = vmatpush1.msra.mxu0 %v2546
        %2661 = vmatprep.subr.mxu0 0.0
        %2662 = vmatpush1.msra.mxu0 %v2547
        %2663 = vmatprep.subr.mxu0 0.0
        %2664 = vmatpush1.msra.mxu0 %v2548
        %2665 = vmatprep.subr.mxu0 0.0
        %2666 = vmatpush1.msra.mxu0 %v2549
        %2667 = vmatprep.subr.mxu0 0.0
        %2668 = vmatpush1.msra.mxu0 %v2550
        %2669 = vmatprep.subr.mxu0 0.0
        %2670 = vmatpush1.msra.mxu0 %v2551
        %2671 = vmatprep.subr.mxu0 0.0
        %2672 = vmatpush1.msra.mxu0 %v2552
        %2673 = vmatprep.subr.mxu0 0.0
        %2674 = vmatpush1.msra.mxu0 %v2553
        %2675 = vmatprep.subr.mxu0 0.0
        %2676 = vmatpush1.msra.mxu0 %v2554
        %2677 = vmatprep.subr.mxu0 0.0
        %2678 = vmatpush1.msra.mxu0 %v2555
        %2679 = vmatprep.subr.mxu0 0.0
        %2680 = vmatpush1.msra.mxu0 %v2556
        %2681 = vmatprep.subr.mxu0 0.0
        %2682 = vmatpush1.msra.mxu0 %v2557
        %2683 = vmatprep.subr.mxu0 0.0
        %2684 = vmatpush1.msra.mxu0 %v2558
        %2685 = vmatprep.subr.mxu0 0.0
        %2686 = vmatpush1.msra.mxu0 %v2559
        %2687 = vmatprep.subr.mxu0 0.0
        %2688 = vmatpush1.msra.mxu0 %v2560
        %2689 = vmatprep.mubr.f32.mxu0 %v2241
        %2690 = vmatmul.mubr.f32.gmra.mrb[0].mxu0 %v2240
        %v2691 = vpop.f32.mrb[0].mxu0
        %v2692 = vadd.f32 0.0, %v2691
        %v2693 = vpop.f32.mrb[0].mxu0
        %2694 = vmatprep.mubr.f32.mxu0 %v2247
        %2695 = vmatmul.mubr.f32.gmra.mrb[0].mxu0 %v2246
        %v2696 = vpop.f32.mrb[0].mxu0
        %v2697 = vadd.f32 0.0, %v2696
        %v2698 = vpop.f32.mrb[0].mxu0
        %2699 = vmatprep.mubr.f32.mxu0 %v2253
        %2700 = vmatmul.mubr.f32.gmra.mrb[0].mxu0 %v2252
        %v2701 = vpop.f32.mrb[0].mxu0
        %v2702 = vadd.f32 0.0, %v2701
        %v2703 = vpop.f32.mrb[0].mxu0
        %2704 = vmatprep.mubr.f32.mxu0 %v2259
        %2705 = vmatmul.mubr.f32.gmra.mrb[0].mxu0 %v2258
        %v2706 = vpop.f32.mrb[0].mxu0
        %v2707 = vadd.f32 0.0, %v2706
        %v2708 = vpop.f32.mrb[0].mxu0
        %2709 = vmatprep.mubr.f32.mxu0 %v2265
        %2710 = vmatmul.mubr.f32.gmra.mrb[0].mxu0 %v2264
        %v2711 = vpop.f32.mrb[0].mxu0
        %v2712 = vadd.f32 0.0, %v2711
        %v2713 = vpop.f32.mrb[0].mxu0
        %2714 = vmatprep.mubr.f32.mxu0 %v2271
        %2715 = vmatmul.mubr.f32.gmra.mrb[0].mxu0 %v2270
        %v2716 = vpop.f32.mrb[0].mxu0
        %v2717 = vadd.f32 0.0, %v2716
        %v2718 = vpop.f32.mrb[0].mxu0
        %2719 = vmatprep.mubr.f32.mxu0 %v2277
        %2720 = vmatmul.mubr.f32.gmra.mrb[0].mxu0 %v2276
        %v2721 = vpop.f32.mrb[0].mxu0
        %v2722 = vadd.f32 0.0, %v2721
        %v2723 = vpop.f32.mrb[0].mxu0
        %2724 = vmatprep.mubr.f32.mxu0 %v2283
        %2725 = vmatmul.mubr.f32.gmra.mrb[0].mxu0 %v2282
        %v2726 = vpop.f32.mrb[0].mxu0
        %v2727 = vadd.f32 0.0, %v2726
        %v2728 = vpop.f32.mrb[0].mxu0
        %2729 = vmatprep.mubr.f32.mxu0 %v2289
        %2730 = vmatmul.mubr.f32.gmra.mrb[0].mxu0 %v2288
        %v2731 = vpop.f32.mrb[0].mxu0
        %v2732 = vadd.f32 0.0, %v2731
        %v2733 = vpop.f32.mrb[0].mxu0
        %2734 = vmatprep.mubr.f32.mxu0 %v2295
        %2735 = vmatmul.mubr.f32.gmra.mrb[0].mxu0 %v2294
        %v2736 = vpop.f32.mrb[0].mxu0
        %v2737 = vadd.f32 0.0, %v2736
        %v2738 = vpop.f32.mrb[0].mxu0
        %2739 = vmatprep.mubr.f32.mxu0 %v2301
        %2740 = vmatmul.mubr.f32.gmra.mrb[0].mxu0 %v2300
        %v2741 = vpop.f32.mrb[0].mxu0
        %v2742 = vadd.f32 0.0, %v2741
        %v2743 = vpop.f32.mrb[0].mxu0
        %2744 = vmatprep.mubr.f32.mxu0 %v2307
        %2745 = vmatmul.mubr.f32.gmra.mrb[0].mxu0 %v2306
        %v2746 = vpop.f32.mrb[0].mxu0
        %v2747 = vadd.f32 0.0, %v2746
        %v2748 = vpop.f32.mrb[0].mxu0
        %2749 = vmatprep.mubr.f32.mxu0 %v2313
        %2750 = vmatmul.mubr.f32.gmra.mrb[0].mxu0 %v2312
        %v2751 = vpop.f32.mrb[0].mxu0
        %v2752 = vadd.f32 0.0, %v2751
        %v2753 = vpop.f32.mrb[0].mxu0
        %2754 = vmatprep.mubr.f32.mxu0 %v2319
        %2755 = vmatmul.mubr.f32.gmra.mrb[0].mxu0 %v2318
        %v2756 = vpop.f32.mrb[0].mxu0
        %v2757 = vadd.f32 0.0, %v2756
        %v2758 = vpop.f32.mrb[0].mxu0
        %2759 = vmatprep.mubr.f32.mxu0 %v2325
        %2760 = vmatmul.mubr.f32.gmra.mrb[0].mxu0 %v2324
        %v2761 = vpop.f32.mrb[0].mxu0
        %v2762 = vadd.f32 0.0, %v2761
        %v2763 = vpop.f32.mrb[0].mxu0
        %2764 = vmatprep.mubr.f32.mxu0 %v2331
        %2765 = vmatmul.mubr.f32.gmra.mrb[0].mxu0 %v2330
        %v2766 = vpop.f32.mrb[0].mxu0
        %v2767 = vadd.f32 0.0, %v2766
        %v2768 = vpop.f32.mrb[0].mxu0
        %2769 = vmatprep.mubr.f32.mxu0 %v2337
        %2770 = vmatmul.mubr.f32.gmra.mrb[0].mxu0 %v2336
        %v2771 = vpop.f32.mrb[0].mxu0
        %v2772 = vadd.f32 0.0, %v2771
        %v2773 = vpop.f32.mrb[0].mxu0
        %2774 = vmatprep.mubr.f32.mxu0 %v2343
        %2775 = vmatmul.mubr.f32.gmra.mrb[0].mxu0 %v2342
        %v2776 = vpop.f32.mrb[0].mxu0
        %v2777 = vadd.f32 0.0, %v2776
        %v2778 = vpop.f32.mrb[0].mxu0
        %2779 = vmatprep.mubr.f32.mxu0 %v2349
        %2780 = vmatmul.mubr.f32.gmra.mrb[0].mxu0 %v2348
        %v2781 = vpop.f32.mrb[0].mxu0
        %v2782 = vadd.f32 0.0, %v2781
        %v2783 = vpop.f32.mrb[0].mxu0
        %2784 = vmatprep.mubr.f32.mxu0 %v2355
        %2785 = vmatmul.mubr.f32.gmra.mrb[0].mxu0 %v2354
        %v2786 = vpop.f32.mrb[0].mxu0
        %v2787 = vadd.f32 0.0, %v2786
        %v2788 = vpop.f32.mrb[0].mxu0
        %2789 = vmatprep.mubr.f32.mxu0 %v2361
        %2790 = vmatmul.mubr.f32.gmra.mrb[0].mxu0 %v2360
        %v2791 = vpop.f32.mrb[0].mxu0
        %v2792 = vadd.f32 0.0, %v2791
        %v2793 = vpop.f32.mrb[0].mxu0
        %2794 = vmatprep.mubr.f32.mxu0 %v2367
        %2795 = vmatmul.mubr.f32.gmra.mrb[0].mxu0 %v2366
        %v2796 = vpop.f32.mrb[0].mxu0
        %v2797 = vadd.f32 0.0, %v2796
        %v2798 = vpop.f32.mrb[0].mxu0
        %2799 = vmatprep.mubr.f32.mxu0 %v2373
        %2800 = vmatmul.mubr.f32.gmra.mrb[0].mxu0 %v2372
        %v2801 = vpop.f32.mrb[0].mxu0
        %v2802 = vadd.f32 0.0, %v2801
        %v2803 = vpop.f32.mrb[0].mxu0
        %2804 = vmatprep.mubr.f32.mxu0 %v2379
        %2805 = vmatmul.mubr.f32.gmra.mrb[0].mxu0 %v2378
        %v2806 = vpop.f32.mrb[0].mxu0
        %v2807 = vadd.f32 0.0, %v2806
        %v2808 = vpop.f32.mrb[0].mxu0
        %2809 = vmatprep.mubr.f32.mxu0 %v2385
        %2810 = vmatmul.mubr.f32.gmra.mrb[0].mxu0 %v2384
        %v2811 = vpop.f32.mrb[0].mxu0
        %v2812 = vadd.f32 0.0, %v2811
        %v2813 = vpop.f32.mrb[0].mxu0
        %2814 = vmatprep.mubr.f32.mxu0 %v2391
        %2815 = vmatmul.mubr.f32.gmra.mrb[0].mxu0 %v2390
        %v2816 = vpop.f32.mrb[0].mxu0
        %v2817 = vadd.f32 0.0, %v2816
        %v2818 = vpop.f32.mrb[0].mxu0
        %2819 = vmatprep.mubr.f32.mxu0 %v2397
        %2820 = vmatmul.mubr.f32.gmra.mrb[0].mxu0 %v2396
        %v2821 = vpop.f32.mrb[0].mxu0
        %v2822 = vadd.f32 0.0, %v2821
        %v2823 = vpop.f32.mrb[0].mxu0
        %2824 = vmatprep.mubr.f32.mxu0 %v2403
        %2825 = vmatmul.mubr.f32.gmra.mrb[0].mxu0 %v2402
        %v2826 = vpop.f32.mrb[0].mxu0
        %v2827 = vadd.f32 0.0, %v2826
        %v2828 = vpop.f32.mrb[0].mxu0
        %2829 = vmatprep.mubr.f32.mxu0 %v2409
        %2830 = vmatmul.mubr.f32.gmra.mrb[0].mxu0 %v2408
        %v2831 = vpop.f32.mrb[0].mxu0
        %v2832 = vadd.f32 0.0, %v2831
        %v2833 = vpop.f32.mrb[0].mxu0
        %2834 = vmatprep.mubr.f32.mxu0 %v2415
        %2835 = vmatmul.mubr.f32.gmra.mrb[0].mxu0 %v2414
        %v2836 = vpop.f32.mrb[0].mxu0
        %v2837 = vadd.f32 0.0, %v2836
        %v2838 = vpop.f32.mrb[0].mxu0
        %2839 = vmatprep.mubr.f32.mxu0 %v2517
        %2840 = vmatmul.mubr.f32.gmra.mrb[0].mxu0 %v2516
        %v2841 = vpop.f32.mrb[0].mxu0
        %v2842 = vadd.f32 0.0, %v2841
        %v2843 = vpop.f32.mrb[0].mxu0
        %2844 = vmatprep.mubr.f32.mxu0 %v2523
        %2845 = vmatmul.mubr.f32.gmra.mrb[0].mxu0 %v2522
        %v2846 = vpop.f32.mrb[0].mxu0
        %v2847 = vadd.f32 0.0, %v2846
        %v2848 = vpop.f32.mrb[0].mxu0
        %2849 = vdwg.mxu0
        %2850 = vmatprep.subr.mxu0 0.0
        %2851 = vmatpush1.msra.mxu0 %v2561
        %2852 = vmatprep.subr.mxu0 0.0
        %2853 = vmatpush1.msra.mxu0 %v2562
        %2854 = vmatprep.subr.mxu0 0.0
        %2855 = vmatpush1.msra.mxu0 %v2563
        %2856 = vmatprep.subr.mxu0 0.0
        %2857 = vmatpush1.msra.mxu0 %v2564
        %2858 = vmatprep.subr.mxu0 0.0
        %2859 = vmatpush1.msra.mxu0 %v2565
        %2860 = vmatprep.subr.mxu0 0.0
        %2861 = vmatpush1.msra.mxu0 %v2566
        %2862 = vmatprep.subr.mxu0 0.0
        %2863 = vmatpush1.msra.mxu0 %v2567
        %2864 = vmatprep.subr.mxu0 0.0
        %2865 = vmatpush1.msra.mxu0 %v2568
        %2866 = vmatprep.subr.mxu0 0.0
        %2867 = vmatpush1.msra.mxu0 %v2569
        %2868 = vmatprep.subr.mxu0 0.0
        %2869 = vmatpush1.msra.mxu0 %v2570
        %2870 = vmatprep.subr.mxu0 0.0
        %2871 = vmatpush1.msra.mxu0 %v2571
        %2872 = vmatprep.subr.mxu0 0.0
        %2873 = vmatpush1.msra.mxu0 %v2572
        %2874 = vmatprep.subr.mxu0 0.0
        %2875 = vmatpush1.msra.mxu0 %v2573
        %2876 = vmatprep.subr.mxu0 0.0
        %2877 = vmatpush1.msra.mxu0 %v2574
        %2878 = vmatprep.subr.mxu0 0.0
        %2879 = vmatpush1.msra.mxu0 %v2575
        %2880 = vmatprep.subr.mxu0 0.0
        %2881 = vmatpush1.msra.mxu0 %v2576
        %2882 = vmatprep.subr.mxu0 0.0
        %2883 = vmatpush1.msra.mxu0 %v2577
        %2884 = vmatprep.subr.mxu0 0.0
        %2885 = vmatpush1.msra.mxu0 %v2578
        %2886 = vmatprep.subr.mxu0 0.0
        %2887 = vmatpush1.msra.mxu0 %v2579
        %2888 = vmatprep.subr.mxu0 0.0
        %2889 = vmatpush1.msra.mxu0 %v2580
        %2890 = vmatprep.subr.mxu0 0.0
        %2891 = vmatpush1.msra.mxu0 %v2581
        %2892 = vmatprep.subr.mxu0 0.0
        %2893 = vmatpush1.msra.mxu0 %v2582
        %2894 = vmatprep.subr.mxu0 0.0
        %2895 = vmatpush1.msra.mxu0 %v2583
        %2896 = vmatprep.subr.mxu0 0.0
        %2897 = vmatpush1.msra.mxu0 %v2584
        %2898 = vmatprep.subr.mxu0 0.0
        %2899 = vmatpush1.msra.mxu0 %v2585
        %2900 = vmatprep.subr.mxu0 0.0
        %2901 = vmatpush1.msra.mxu0 %v2586
        %2902 = vmatprep.subr.mxu0 0.0
        %2903 = vmatpush1.msra.mxu0 %v2587
        %2904 = vmatprep.subr.mxu0 0.0
        %2905 = vmatpush1.msra.mxu0 %v2588
        %2906 = vmatprep.subr.mxu0 0.0
        %2907 = vmatpush1.msra.mxu0 %v2589
        %2908 = vmatprep.subr.mxu0 0.0
        %2909 = vmatpush1.msra.mxu0 %v2590
        %2910 = vmatprep.subr.mxu0 0.0
        %2911 = vmatpush1.msra.mxu0 %v2591
        %2912 = vmatprep.subr.mxu0 0.0
        %2913 = vmatpush1.msra.mxu0 %v2592
        %2914 = vmatprep.mubr.f32.mxu0 %v2243
        %2915 = vmatmul.mubr.f32.gmra.mrb[0].mxu0 %v2242
        %v2916 = vpop.f32.mrb[0].mxu0
        %v2917 = vadd.f32 %v2692, %v2916
        %v2918 = vpop.f32.mrb[0].mxu0
        %2919 = vmatprep.mubr.f32.mxu0 %v2249
        %2920 = vmatmul.mubr.f32.gmra.mrb[0].mxu0 %v2248
        %v2921 = vpop.f32.mrb[0].mxu0
        %v2922 = vadd.f32 %v2697, %v2921
        %v2923 = vpop.f32.mrb[0].mxu0
        %2924 = vmatprep.mubr.f32.mxu0 %v2255
        %2925 = vmatmul.mubr.f32.gmra.mrb[0].mxu0 %v2254
        %v2926 = vpop.f32.mrb[0].mxu0
        %v2927 = vadd.f32 %v2702, %v2926
        %v2928 = vpop.f32.mrb[0].mxu0
        %2929 = vmatprep.mubr.f32.mxu0 %v2261
        %2930 = vmatmul.mubr.f32.gmra.mrb[0].mxu0 %v2260
        %v2931 = vpop.f32.mrb[0].mxu0
        %v2932 = vadd.f32 %v2707, %v2931
        %v2933 = vpop.f32.mrb[0].mxu0
        %2934 = vmatprep.mubr.f32.mxu0 %v2267
        %2935 = vmatmul.mubr.f32.gmra.mrb[0].mxu0 %v2266
        %v2936 = vpop.f32.mrb[0].mxu0
        %v2937 = vadd.f32 %v2712, %v2936
        %v2938 = vpop.f32.mrb[0].mxu0
        %2939 = vmatprep.mubr.f32.mxu0 %v2273
        %2940 = vmatmul.mubr.f32.gmra.mrb[0].mxu0 %v2272
        %v2941 = vpop.f32.mrb[0].mxu0
        %v2942 = vadd.f32 %v2717, %v2941
        %v2943 = vpop.f32.mrb[0].mxu0
        %2944 = vmatprep.mubr.f32.mxu0 %v2279
        %2945 = vmatmul.mubr.f32.gmra.mrb[0].mxu0 %v2278
        %v2946 = vpop.f32.mrb[0].mxu0
        %v2947 = vadd.f32 %v2722, %v2946
        %v2948 = vpop.f32.mrb[0].mxu0
        %2949 = vmatprep.mubr.f32.mxu0 %v2285
        %2950 = vmatmul.mubr.f32.gmra.mrb[0].mxu0 %v2284
        %v2951 = vpop.f32.mrb[0].mxu0
        %v2952 = vadd.f32 %v2727, %v2951
        %v2953 = vpop.f32.mrb[0].mxu0
        %2954 = vmatprep.mubr.f32.mxu0 %v2291
        %2955 = vmatmul.mubr.f32.gmra.mrb[0].mxu0 %v2290
        %v2956 = vpop.f32.mrb[0].mxu0
        %v2957 = vadd.f32 %v2732, %v2956
        %v2958 = vpop.f32.mrb[0].mxu0
        %2959 = vmatprep.mubr.f32.mxu0 %v2297
        %2960 = vmatmul.mubr.f32.gmra.mrb[0].mxu0 %v2296
        %v2961 = vpop.f32.mrb[0].mxu0
        %v2962 = vadd.f32 %v2737, %v2961
        %v2963 = vpop.f32.mrb[0].mxu0
        %2964 = vmatprep.mubr.f32.mxu0 %v2303
        %2965 = vmatmul.mubr.f32.gmra.mrb[0].mxu0 %v2302
        %v2966 = vpop.f32.mrb[0].mxu0
        %v2967 = vadd.f32 %v2742, %v2966
        %v2968 = vpop.f32.mrb[0].mxu0
        %2969 = vmatprep.mubr.f32.mxu0 %v2309
        %2970 = vmatmul.mubr.f32.gmra.mrb[0].mxu0 %v2308
        %v2971 = vpop.f32.mrb[0].mxu0
        %v2972 = vadd.f32 %v2747, %v2971
        %v2973 = vpop.f32.mrb[0].mxu0
        %2974 = vmatprep.mubr.f32.mxu0 %v2315
        %2975 = vmatmul.mubr.f32.gmra.mrb[0].mxu0 %v2314
        %v2976 = vpop.f32.mrb[0].mxu0
        %v2977 = vadd.f32 %v2752, %v2976
        %v2978 = vpop.f32.mrb[0].mxu0
        %2979 = vmatprep.mubr.f32.mxu0 %v2321
        %2980 = vmatmul.mubr.f32.gmra.mrb[0].mxu0 %v2320
        %v2981 = vpop.f32.mrb[0].mxu0
        %v2982 = vadd.f32 %v2757, %v2981
        %v2983 = vpop.f32.mrb[0].mxu0
        %2984 = vmatprep.mubr.f32.mxu0 %v2327
        %2985 = vmatmul.mubr.f32.gmra.mrb[0].mxu0 %v2326
        %v2986 = vpop.f32.mrb[0].mxu0
        %v2987 = vadd.f32 %v2762, %v2986
        %v2988 = vpop.f32.mrb[0].mxu0
        %2989 = vmatprep.mubr.f32.mxu0 %v2333
        %2990 = vmatmul.mubr.f32.gmra.mrb[0].mxu0 %v2332
        %v2991 = vpop.f32.mrb[0].mxu0
        %v2992 = vadd.f32 %v2767, %v2991
        %v2993 = vpop.f32.mrb[0].mxu0
        %2994 = vmatprep.mubr.f32.mxu0 %v2339
        %2995 = vmatmul.mubr.f32.gmra.mrb[0].mxu0 %v2338
        %v2996 = vpop.f32.mrb[0].mxu0
        %v2997 = vadd.f32 %v2772, %v2996
        %v2998 = vpop.f32.mrb[0].mxu0
        %2999 = vmatprep.mubr.f32.mxu0 %v2345
        %3000 = vmatmul.mubr.f32.gmra.mrb[0].mxu0 %v2344
        %v3001 = vpop.f32.mrb[0].mxu0
        %v3002 = vadd.f32 %v2777, %v3001
        %v3003 = vpop.f32.mrb[0].mxu0
        %3004 = vmatprep.mubr.f32.mxu0 %v2351
        %3005 = vmatmul.mubr.f32.gmra.mrb[0].mxu0 %v2350
        %v3006 = vpop.f32.mrb[0].mxu0
        %v3007 = vadd.f32 %v2782, %v3006
        %v3008 = vpop.f32.mrb[0].mxu0
        %3009 = vmatprep.mubr.f32.mxu0 %v2357
        %3010 = vmatmul.mubr.f32.gmra.mrb[0].mxu0 %v2356
        %v3011 = vpop.f32.mrb[0].mxu0
        %v3012 = vadd.f32 %v2787, %v3011
        %v3013 = vpop.f32.mrb[0].mxu0
        %3014 = vmatprep.mubr.f32.mxu0 %v2363
        %3015 = vmatmul.mubr.f32.gmra.mrb[0].mxu0 %v2362
        %v3016 = vpop.f32.mrb[0].mxu0
        %v3017 = vadd.f32 %v2792, %v3016
        %v3018 = vpop.f32.mrb[0].mxu0
        %3019 = vmatprep.mubr.f32.mxu0 %v2369
        %3020 = vmatmul.mubr.f32.gmra.mrb[0].mxu0 %v2368
        %v3021 = vpop.f32.mrb[0].mxu0
        %v3022 = vadd.f32 %v2797, %v3021
        %v3023 = vpop.f32.mrb[0].mxu0
        %3024 = vmatprep.mubr.f32.mxu0 %v2375
        %3025 = vmatmul.mubr.f32.gmra.mrb[0].mxu0 %v2374
        %v3026 = vpop.f32.mrb[0].mxu0
        %v3027 = vadd.f32 %v2802, %v3026
        %v3028 = vpop.f32.mrb[0].mxu0
        %3029 = vmatprep.mubr.f32.mxu0 %v2381
        %3030 = vmatmul.mubr.f32.gmra.mrb[0].mxu0 %v2380
        %v3031 = vpop.f32.mrb[0].mxu0
        %v3032 = vadd.f32 %v2807, %v3031
        %v3033 = vpop.f32.mrb[0].mxu0
        %3034 = vmatprep.mubr.f32.mxu0 %v2387
        %3035 = vmatmul.mubr.f32.gmra.mrb[0].mxu0 %v2386
        %v3036 = vpop.f32.mrb[0].mxu0
        %v3037 = vadd.f32 %v2812, %v3036
        %v3038 = vpop.f32.mrb[0].mxu0
        %3039 = vmatprep.mubr.f32.mxu0 %v2393
        %3040 = vmatmul.mubr.f32.gmra.mrb[0].mxu0 %v2392
        %v3041 = vpop.f32.mrb[0].mxu0
        %v3042 = vadd.f32 %v2817, %v3041
        %v3043 = vpop.f32.mrb[0].mxu0
        %3044 = vmatprep.mubr.f32.mxu0 %v2399
        %3045 = vmatmul.mubr.f32.gmra.mrb[0].mxu0 %v2398
        %v3046 = vpop.f32.mrb[0].mxu0
        %v3047 = vadd.f32 %v2822, %v3046
        %v3048 = vpop.f32.mrb[0].mxu0
        %3049 = vmatprep.mubr.f32.mxu0 %v2405
        %3050 = vmatmul.mubr.f32.gmra.mrb[0].mxu0 %v2404
        %v3051 = vpop.f32.mrb[0].mxu0
        %v3052 = vadd.f32 %v2827, %v3051
        %v3053 = vpop.f32.mrb[0].mxu0
        %3054 = vmatprep.mubr.f32.mxu0 %v2411
        %3055 = vmatmul.mubr.f32.gmra.mrb[0].mxu0 %v2410
        %v3056 = vpop.f32.mrb[0].mxu0
        %v3057 = vadd.f32 %v2832, %v3056
        %v3058 = vpop.f32.mrb[0].mxu0
        %3059 = vmatprep.mubr.f32.mxu0 %v2417
        %3060 = vmatmul.mubr.f32.gmra.mrb[0].mxu0 %v2416
        %v3061 = vpop.f32.mrb[0].mxu0
        %v3062 = vadd.f32 %v2837, %v3061
        %v3063 = vpop.f32.mrb[0].mxu0
        %3064 = vmatprep.mubr.f32.mxu0 %v2519
        %3065 = vmatmul.mubr.f32.gmra.mrb[0].mxu0 %v2518
        %v3066 = vpop.f32.mrb[0].mxu0
        %v3067 = vadd.f32 %v2842, %v3066
        %v3068 = vpop.f32.mrb[0].mxu0
        %3069 = vmatprep.mubr.f32.mxu0 %v2525
        %3070 = vmatmul.mubr.f32.gmra.mrb[0].mxu0 %v2524
        %v3071 = vpop.f32.mrb[0].mxu0
        %v3072 = vadd.f32 %v2847, %v3071
        %v3073 = vpop.f32.mrb[0].mxu0
        %3074 = vdwg.mxu0
        %3075 = vmatprep.subr.mxu0 0.0
        %3076 = vmatpush1.msra.mxu0 %v2593
        %3077 = vmatprep.subr.mxu0 0.0
        %3078 = vmatpush1.msra.mxu0 %v2594
        %3079 = vmatprep.subr.mxu0 0.0
        %3080 = vmatpush1.msra.mxu0 %v2595
        %3081 = vmatprep.subr.mxu0 0.0
        %3082 = vmatpush1.msra.mxu0 %v2596
        %3083 = vmatprep.subr.mxu0 0.0
        %3084 = vmatpush1.msra.mxu0 %v2597
        %3085 = vmatprep.subr.mxu0 0.0
        %3086 = vmatpush1.msra.mxu0 %v2598
        %3087 = vmatprep.subr.mxu0 0.0
        %3088 = vmatpush1.msra.mxu0 %v2599
        %3089 = vmatprep.subr.mxu0 0.0
        %3090 = vmatpush1.msra.mxu0 %v2600
        %3091 = vmatprep.subr.mxu0 0.0
        %3092 = vmatpush1.msra.mxu0 %v2601
        %3093 = vmatprep.subr.mxu0 0.0
        %3094 = vmatpush1.msra.mxu0 %v2602
        %3095 = vmatprep.subr.mxu0 0.0
        %3096 = vmatpush1.msra.mxu0 %v2603
        %3097 = vmatprep.subr.mxu0 0.0
        %3098 = vmatpush1.msra.mxu0 %v2604
        %3099 = vmatprep.subr.mxu0 0.0
        %3100 = vmatpush1.msra.mxu0 %v2605
        %3101 = vmatprep.subr.mxu0 0.0
        %3102 = vmatpush1.msra.mxu0 %v2606
        %3103 = vmatprep.subr.mxu0 0.0
        %3104 = vmatpush1.msra.mxu0 %v2607
        %3105 = vmatprep.subr.mxu0 0.0
        %3106 = vmatpush1.msra.mxu0 %v2608
        %3107 = vmatprep.subr.mxu0 0.0
        %3108 = vmatpush1.msra.mxu0 %v2609
        %3109 = vmatprep.subr.mxu0 0.0
        %3110 = vmatpush1.msra.mxu0 %v2610
        %3111 = vmatprep.subr.mxu0 0.0
        %3112 = vmatpush1.msra.mxu0 %v2611
        %3113 = vmatprep.subr.mxu0 0.0
        %3114 = vmatpush1.msra.mxu0 %v2612
        %3115 = vmatprep.subr.mxu0 0.0
        %3116 = vmatpush1.msra.mxu0 %v2613
        %3117 = vmatprep.subr.mxu0 0.0
        %3118 = vmatpush1.msra.mxu0 %v2614
        %3119 = vmatprep.subr.mxu0 0.0
        %3120 = vmatpush1.msra.mxu0 %v2615
        %3121 = vmatprep.subr.mxu0 0.0
        %3122 = vmatpush1.msra.mxu0 %v2616
        %3123 = vmatprep.subr.mxu0 0.0
        %3124 = vmatpush1.msra.mxu0 %v2617
        %3125 = vmatprep.subr.mxu0 0.0
        %3126 = vmatpush1.msra.mxu0 %v2618
        %3127 = vmatprep.subr.mxu0 0.0
        %3128 = vmatpush1.msra.mxu0 %v2619
        %3129 = vmatprep.subr.mxu0 0.0
        %3130 = vmatpush1.msra.mxu0 %v2620
        %3131 = vmatprep.subr.mxu0 0.0
        %3132 = vmatpush1.msra.mxu0 %v2621
        %3133 = vmatprep.subr.mxu0 0.0
        %3134 = vmatpush1.msra.mxu0 %v2622
        %3135 = vmatprep.subr.mxu0 0.0
        %3136 = vmatpush1.msra.mxu0 %v2623
        %3137 = vmatprep.subr.mxu0 0.0
        %3138 = vmatpush1.msra.mxu0 %v2624
        %3139 = vmatprep.mubr.f32.mxu0 %v2245
        %3140 = vmatmul.mubr.f32.gmra.mrb[0].mxu0 %v2244
        %v3141 = vpop.f32.mrb[0].mxu0
        %v3142 = vadd.f32 %v2917, %v3141
        %v3143 = vpop.f32.mrb[0].mxu0
        %3144 = vmatprep.mubr.f32.mxu0 %v2251
        %3145 = vmatmul.mubr.f32.gmra.mrb[0].mxu0 %v2250
        %v3146 = vpop.f32.mrb[0].mxu0
        %v3147 = vadd.f32 %v2922, %v3146
        %v3148 = vpop.f32.mrb[0].mxu0
        %3149 = vmatprep.mubr.f32.mxu0 %v2257
        %3150 = vmatmul.mubr.f32.gmra.mrb[0].mxu0 %v2256
        %v3151 = vpop.f32.mrb[0].mxu0
        %v3152 = vadd.f32 %v2927, %v3151
        %v3153 = vpop.f32.mrb[0].mxu0
        %3154 = vmatprep.mubr.f32.mxu0 %v2263
        %3155 = vmatmul.mubr.f32.gmra.mrb[0].mxu0 %v2262
        %v3156 = vpop.f32.mrb[0].mxu0
        %v3157 = vadd.f32 %v2932, %v3156
        %v3158 = vpop.f32.mrb[0].mxu0
        %3159 = vmatprep.mubr.f32.mxu0 %v2269
        %3160 = vmatmul.mubr.f32.gmra.mrb[0].mxu0 %v2268
        %v3161 = vpop.f32.mrb[0].mxu0
        %v3162 = vadd.f32 %v2937, %v3161
        %v3163 = vpop.f32.mrb[0].mxu0
        %3164 = vmatprep.mubr.f32.mxu0 %v2275
        %3165 = vmatmul.mubr.f32.gmra.mrb[0].mxu0 %v2274
        %v3166 = vpop.f32.mrb[0].mxu0
        %v3167 = vadd.f32 %v2942, %v3166
        %v3168 = vpop.f32.mrb[0].mxu0
        %3169 = vmatprep.mubr.f32.mxu0 %v2281
        %3170 = vmatmul.mubr.f32.gmra.mrb[0].mxu0 %v2280
        %v3171 = vpop.f32.mrb[0].mxu0
        %v3172 = vadd.f32 %v2947, %v3171
        %v3173 = vpop.f32.mrb[0].mxu0
        %3174 = vmatprep.mubr.f32.mxu0 %v2287
        %3175 = vmatmul.mubr.f32.gmra.mrb[0].mxu0 %v2286
        %v3176 = vpop.f32.mrb[0].mxu0
        %v3177 = vadd.f32 %v2952, %v3176
        %v3178 = vpop.f32.mrb[0].mxu0
        %3179 = vmatprep.mubr.f32.mxu0 %v2293
        %3180 = vmatmul.mubr.f32.gmra.mrb[0].mxu0 %v2292
        %v3181 = vpop.f32.mrb[0].mxu0
        %v3182 = vadd.f32 %v2957, %v3181
        %v3183 = vpop.f32.mrb[0].mxu0
        %3184 = vmatprep.mubr.f32.mxu0 %v2299
        %3185 = vmatmul.mubr.f32.gmra.mrb[0].mxu0 %v2298
        %v3186 = vpop.f32.mrb[0].mxu0
        %v3187 = vadd.f32 %v2962, %v3186
        %v3188 = vpop.f32.mrb[0].mxu0
        %3189 = vmatprep.mubr.f32.mxu0 %v2305
        %3190 = vmatmul.mubr.f32.gmra.mrb[0].mxu0 %v2304
        %v3191 = vpop.f32.mrb[0].mxu0
        %v3192 = vadd.f32 %v2967, %v3191
        %v3193 = vpop.f32.mrb[0].mxu0
        %3194 = vmatprep.mubr.f32.mxu0 %v2311
        %3195 = vmatmul.mubr.f32.gmra.mrb[0].mxu0 %v2310
        %v3196 = vpop.f32.mrb[0].mxu0
        %v3197 = vadd.f32 %v2972, %v3196
        %v3198 = vpop.f32.mrb[0].mxu0
        %3199 = vmatprep.mubr.f32.mxu0 %v2317
        %3200 = vmatmul.mubr.f32.gmra.mrb[0].mxu0 %v2316
        %v3201 = vpop.f32.mrb[0].mxu0
        %v3202 = vadd.f32 %v2977, %v3201
        %v3203 = vpop.f32.mrb[0].mxu0
        %3204 = vmatprep.mubr.f32.mxu0 %v2323
        %3205 = vmatmul.mubr.f32.gmra.mrb[0].mxu0 %v2322
        %v3206 = vpop.f32.mrb[0].mxu0
        %v3207 = vadd.f32 %v2982, %v3206
        %v3208 = vpop.f32.mrb[0].mxu0
        %3209 = vmatprep.mubr.f32.mxu0 %v2329
        %3210 = vmatmul.mubr.f32.gmra.mrb[0].mxu0 %v2328
        %v3211 = vpop.f32.mrb[0].mxu0
        %v3212 = vadd.f32 %v2987, %v3211
        %v3213 = vpop.f32.mrb[0].mxu0
        %3214 = vmatprep.mubr.f32.mxu0 %v2335
        %3215 = vmatmul.mubr.f32.gmra.mrb[0].mxu0 %v2334
        %v3216 = vpop.f32.mrb[0].mxu0
        %v3217 = vadd.f32 %v2992, %v3216
        %v3218 = vpop.f32.mrb[0].mxu0
        %3219 = vmatprep.mubr.f32.mxu0 %v2341
        %3220 = vmatmul.mubr.f32.gmra.mrb[0].mxu0 %v2340
        %v3221 = vpop.f32.mrb[0].mxu0
        %v3222 = vadd.f32 %v2997, %v3221
        %v3223 = vpop.f32.mrb[0].mxu0
        %3224 = vmatprep.mubr.f32.mxu0 %v2347
        %3225 = vmatmul.mubr.f32.gmra.mrb[0].mxu0 %v2346
        %v3226 = vpop.f32.mrb[0].mxu0
        %v3227 = vadd.f32 %v3002, %v3226
        %v3228 = vpop.f32.mrb[0].mxu0
        %3229 = vmatprep.mubr.f32.mxu0 %v2353
        %3230 = vmatmul.mubr.f32.gmra.mrb[0].mxu0 %v2352
        %v3231 = vpop.f32.mrb[0].mxu0
        %v3232 = vadd.f32 %v3007, %v3231
        %v3233 = vpop.f32.mrb[0].mxu0
        %3234 = vmatprep.mubr.f32.mxu0 %v2359
        %3235 = vmatmul.mubr.f32.gmra.mrb[0].mxu0 %v2358
        %v3236 = vpop.f32.mrb[0].mxu0
        %v3237 = vadd.f32 %v3012, %v3236
        %v3238 = vpop.f32.mrb[0].mxu0
        %3239 = vmatprep.mubr.f32.mxu0 %v2365
        %3240 = vmatmul.mubr.f32.gmra.mrb[0].mxu0 %v2364
        %v3241 = vpop.f32.mrb[0].mxu0
        %v3242 = vadd.f32 %v3017, %v3241
        %v3243 = vpop.f32.mrb[0].mxu0
        %3244 = vmatprep.mubr.f32.mxu0 %v2371
        %3245 = vmatmul.mubr.f32.gmra.mrb[0].mxu0 %v2370
        %v3246 = vpop.f32.mrb[0].mxu0
        %v3247 = vadd.f32 %v3022, %v3246
        %v3248 = vpop.f32.mrb[0].mxu0
        %3249 = vmatprep.mubr.f32.mxu0 %v2377
        %3250 = vmatmul.mubr.f32.gmra.mrb[0].mxu0 %v2376
        %v3251 = vpop.f32.mrb[0].mxu0
        %v3252 = vadd.f32 %v3027, %v3251
        %v3253 = vpop.f32.mrb[0].mxu0
        %3254 = vmatprep.mubr.f32.mxu0 %v2383
        %3255 = vmatmul.mubr.f32.gmra.mrb[0].mxu0 %v2382
        %v3256 = vpop.f32.mrb[0].mxu0
        %v3257 = vadd.f32 %v3032, %v3256
        %v3258 = vpop.f32.mrb[0].mxu0
        %3259 = vmatprep.mubr.f32.mxu0 %v2389
        %3260 = vmatmul.mubr.f32.gmra.mrb[0].mxu0 %v2388
        %v3261 = vpop.f32.mrb[0].mxu0
        %v3262 = vadd.f32 %v3037, %v3261
        %v3263 = vpop.f32.mrb[0].mxu0
        %3264 = vmatprep.mubr.f32.mxu0 %v2395
        %3265 = vmatmul.mubr.f32.gmra.mrb[0].mxu0 %v2394
        %v3266 = vpop.f32.mrb[0].mxu0
        %v3267 = vadd.f32 %v3042, %v3266
        %v3268 = vpop.f32.mrb[0].mxu0
        %3269 = vmatprep.mubr.f32.mxu0 %v2401
        %3270 = vmatmul.mubr.f32.gmra.mrb[0].mxu0 %v2400
        %v3271 = vpop.f32.mrb[0].mxu0
        %v3272 = vadd.f32 %v3047, %v3271
        %v3273 = vpop.f32.mrb[0].mxu0
        %3274 = vmatprep.mubr.f32.mxu0 %v2407
        %3275 = vmatmul.mubr.f32.gmra.mrb[0].mxu0 %v2406
        %v3276 = vpop.f32.mrb[0].mxu0
        %v3277 = vadd.f32 %v3052, %v3276
        %v3278 = vpop.f32.mrb[0].mxu0
        %3279 = vmatprep.mubr.f32.mxu0 %v2413
        %3280 = vmatmul.mubr.f32.gmra.mrb[0].mxu0 %v2412
        %v3281 = vpop.f32.mrb[0].mxu0
        %v3282 = vadd.f32 %v3057, %v3281
        %v3283 = vpop.f32.mrb[0].mxu0
        %3284 = vmatprep.mubr.f32.mxu0 %v2419
        %3285 = vmatmul.mubr.f32.gmra.mrb[0].mxu0 %v2418
        %v3286 = vpop.f32.mrb[0].mxu0
        %v3287 = vadd.f32 %v3062, %v3286
        %v3288 = vpop.f32.mrb[0].mxu0
        %3289 = vmatprep.mubr.f32.mxu0 %v2521
        %3290 = vmatmul.mubr.f32.gmra.mrb[0].mxu0 %v2520
        %v3291 = vpop.f32.mrb[0].mxu0
        %v3292 = vadd.f32 %v3067, %v3291
        %v3293 = vpop.f32.mrb[0].mxu0
        %3294 = vmatprep.mubr.f32.mxu0 %v2527
        %3295 = vmatmul.mubr.f32.gmra.mrb[0].mxu0 %v2526
        %v3296 = vpop.f32.mrb[0].mxu0
        %v3297 = vadd.f32 %v3072, %v3296
        %v3298 = vpop.f32.mrb[0].mxu0
        %3299 = vdwg.mxu0
        %3300 = vmatprep.subr.mxu0 0.0
        %3301 = vmatpush1.msra.mxu0 %v2420
        %3302 = vmatprep.subr.mxu0 0.0
        %3303 = vmatpush1.msra.mxu0 %v2421
        %3304 = vmatprep.subr.mxu0 0.0
        %3305 = vmatpush1.msra.mxu0 %v2422
        %3306 = vmatprep.subr.mxu0 0.0
        %3307 = vmatpush1.msra.mxu0 %v2423
        %3308 = vmatprep.subr.mxu0 0.0
        %3309 = vmatpush1.msra.mxu0 %v2424
        %3310 = vmatprep.subr.mxu0 0.0
        %3311 = vmatpush1.msra.mxu0 %v2425
        %3312 = vmatprep.subr.mxu0 0.0
        %3313 = vmatpush1.msra.mxu0 %v2426
        %3314 = vmatprep.subr.mxu0 0.0
        %3315 = vmatpush1.msra.mxu0 %v2427
        %3316 = vmatprep.subr.mxu0 0.0
        %3317 = vmatpush1.msra.mxu0 %v2428
        %3318 = vmatprep.subr.mxu0 0.0
        %3319 = vmatpush1.msra.mxu0 %v2429
        %3320 = vmatprep.subr.mxu0 0.0
        %3321 = vmatpush1.msra.mxu0 %v2430
        %3322 = vmatprep.subr.mxu0 0.0
        %3323 = vmatpush1.msra.mxu0 %v2431
        %3324 = vmatprep.subr.mxu0 0.0
        %3325 = vmatpush1.msra.mxu0 %v2432
        %3326 = vmatprep.subr.mxu0 0.0
        %3327 = vmatpush1.msra.mxu0 %v2433
        %3328 = vmatprep.subr.mxu0 0.0
        %3329 = vmatpush1.msra.mxu0 %v2434
        %3330 = vmatprep.subr.mxu0 0.0
        %3331 = vmatpush1.msra.mxu0 %v2435
        %3332 = vmatprep.subr.mxu0 0.0
        %3333 = vmatpush1.msra.mxu0 %v2436
        %3334 = vmatprep.subr.mxu0 0.0
        %3335 = vmatpush1.msra.mxu0 %v2437
        %3336 = vmatprep.subr.mxu0 0.0
        %3337 = vmatpush1.msra.mxu0 %v2438
        %3338 = vmatprep.subr.mxu0 0.0
        %3339 = vmatpush1.msra.mxu0 %v2439
        %3340 = vmatprep.subr.mxu0 0.0
        %3341 = vmatpush1.msra.mxu0 %v2440
        %3342 = vmatprep.subr.mxu0 0.0
        %3343 = vmatpush1.msra.mxu0 %v2441
        %3344 = vmatprep.subr.mxu0 0.0
        %3345 = vmatpush1.msra.mxu0 %v2442
        %3346 = vmatprep.subr.mxu0 0.0
        %3347 = vmatpush1.msra.mxu0 %v2443
        %3348 = vmatprep.subr.mxu0 0.0
        %3349 = vmatpush1.msra.mxu0 %v2444
        %3350 = vmatprep.subr.mxu0 0.0
        %3351 = vmatpush1.msra.mxu0 %v2445
        %3352 = vmatprep.subr.mxu0 0.0
        %3353 = vmatpush1.msra.mxu0 %v2446
        %3354 = vmatprep.subr.mxu0 0.0
        %3355 = vmatpush1.msra.mxu0 %v2447
        %3356 = vmatprep.subr.mxu0 0.0
        %3357 = vmatpush1.msra.mxu0 %v2448
        %3358 = vmatprep.subr.mxu0 0.0
        %3359 = vmatpush1.msra.mxu0 %v2449
        %3360 = vmatprep.subr.mxu0 0.0
        %3361 = vmatpush1.msra.mxu0 %v2450
        %3362 = vmatprep.subr.mxu0 0.0
        %3363 = vmatpush1.msra.mxu0 %v2451
        %3364 = vmatprep.mubr.f32.mxu0 %v2229
        %3365 = vmatmul.mubr.f32.gmra.mrb[0].mxu0 %v2228
        %v3366 = vpop.f32.mrb[0].mxu0
        %v3367 = vadd.f32 %v3142, %v3366
        %v3368 = vpop.f32.mrb[0].mxu0
        %3369 = vmatprep.mubr.f32.mxu0 %v2235
        %3370 = vmatmul.mubr.f32.gmra.mrb[0].mxu0 %v2234
        %v3371 = vpop.f32.mrb[0].mxu0
        %v3372 = vadd.f32 %v3147, %v3371
        %v3373 = vpop.f32.mrb[0].mxu0
        %3374 = vmatprep.mubr.f32.mxu0 %v2241
        %3375 = vmatmul.mubr.f32.gmra.mrb[0].mxu0 %v2240
        %v3376 = vpop.f32.mrb[0].mxu0
        %v3377 = vadd.f32 %v3152, %v3376
        %v3378 = vpop.f32.mrb[0].mxu0
        %3379 = vmatprep.mubr.f32.mxu0 %v2247
        %3380 = vmatmul.mubr.f32.gmra.mrb[0].mxu0 %v2246
        %v3381 = vpop.f32.mrb[0].mxu0
        %v3382 = vadd.f32 %v3157, %v3381
        %v3383 = vpop.f32.mrb[0].mxu0
        %3384 = vmatprep.mubr.f32.mxu0 %v2253
        %3385 = vmatmul.mubr.f32.gmra.mrb[0].mxu0 %v2252
        %v3386 = vpop.f32.mrb[0].mxu0
        %v3387 = vadd.f32 %v3162, %v3386
        %v3388 = vpop.f32.mrb[0].mxu0
        %3389 = vmatprep.mubr.f32.mxu0 %v2259
        %3390 = vmatmul.mubr.f32.gmra.mrb[0].mxu0 %v2258
        %v3391 = vpop.f32.mrb[0].mxu0
        %v3392 = vadd.f32 %v3167, %v3391
        %v3393 = vpop.f32.mrb[0].mxu0
        %3394 = vmatprep.mubr.f32.mxu0 %v2265
        %3395 = vmatmul.mubr.f32.gmra.mrb[0].mxu0 %v2264
        %v3396 = vpop.f32.mrb[0].mxu0
        %v3397 = vadd.f32 %v3172, %v3396
        %v3398 = vpop.f32.mrb[0].mxu0
        %3399 = vmatprep.mubr.f32.mxu0 %v2271
        %3400 = vmatmul.mubr.f32.gmra.mrb[0].mxu0 %v2270
        %v3401 = vpop.f32.mrb[0].mxu0
        %v3402 = vadd.f32 %v3177, %v3401
        %v3403 = vpop.f32.mrb[0].mxu0
        %3404 = vmatprep.mubr.f32.mxu0 %v2277
        %3405 = vmatmul.mubr.f32.gmra.mrb[0].mxu0 %v2276
        %v3406 = vpop.f32.mrb[0].mxu0
        %v3407 = vadd.f32 %v3182, %v3406
        %v3408 = vpop.f32.mrb[0].mxu0
        %3409 = vmatprep.mubr.f32.mxu0 %v2283
        %3410 = vmatmul.mubr.f32.gmra.mrb[0].mxu0 %v2282
        %v3411 = vpop.f32.mrb[0].mxu0
        %v3412 = vadd.f32 %v3187, %v3411
        %v3413 = vpop.f32.mrb[0].mxu0
        %3414 = vmatprep.mubr.f32.mxu0 %v2289
        %3415 = vmatmul.mubr.f32.gmra.mrb[0].mxu0 %v2288
        %v3416 = vpop.f32.mrb[0].mxu0
        %v3417 = vadd.f32 %v3192, %v3416
        %v3418 = vpop.f32.mrb[0].mxu0
        %3419 = vmatprep.mubr.f32.mxu0 %v2295
        %3420 = vmatmul.mubr.f32.gmra.mrb[0].mxu0 %v2294
        %v3421 = vpop.f32.mrb[0].mxu0
        %v3422 = vadd.f32 %v3197, %v3421
        %v3423 = vpop.f32.mrb[0].mxu0
        %3424 = vmatprep.mubr.f32.mxu0 %v2301
        %3425 = vmatmul.mubr.f32.gmra.mrb[0].mxu0 %v2300
        %v3426 = vpop.f32.mrb[0].mxu0
        %v3427 = vadd.f32 %v3202, %v3426
        %v3428 = vpop.f32.mrb[0].mxu0
        %3429 = vmatprep.mubr.f32.mxu0 %v2307
        %3430 = vmatmul.mubr.f32.gmra.mrb[0].mxu0 %v2306
        %v3431 = vpop.f32.mrb[0].mxu0
        %v3432 = vadd.f32 %v3207, %v3431
        %v3433 = vpop.f32.mrb[0].mxu0
        %3434 = vmatprep.mubr.f32.mxu0 %v2313
        %3435 = vmatmul.mubr.f32.gmra.mrb[0].mxu0 %v2312
        %v3436 = vpop.f32.mrb[0].mxu0
        %v3437 = vadd.f32 %v3212, %v3436
        %v3438 = vpop.f32.mrb[0].mxu0
        %3439 = vmatprep.mubr.f32.mxu0 %v2319
        %3440 = vmatmul.mubr.f32.gmra.mrb[0].mxu0 %v2318
        %v3441 = vpop.f32.mrb[0].mxu0
        %v3442 = vadd.f32 %v3217, %v3441
        %v3443 = vpop.f32.mrb[0].mxu0
        %3444 = vmatprep.mubr.f32.mxu0 %v2325
        %3445 = vmatmul.mubr.f32.gmra.mrb[0].mxu0 %v2324
        %v3446 = vpop.f32.mrb[0].mxu0
        %v3447 = vadd.f32 %v3222, %v3446
        %v3448 = vpop.f32.mrb[0].mxu0
        %3449 = vmatprep.mubr.f32.mxu0 %v2331
        %3450 = vmatmul.mubr.f32.gmra.mrb[0].mxu0 %v2330
        %v3451 = vpop.f32.mrb[0].mxu0
        %v3452 = vadd.f32 %v3227, %v3451
        %v3453 = vpop.f32.mrb[0].mxu0
        %3454 = vmatprep.mubr.f32.mxu0 %v2337
        %3455 = vmatmul.mubr.f32.gmra.mrb[0].mxu0 %v2336
        %v3456 = vpop.f32.mrb[0].mxu0
        %v3457 = vadd.f32 %v3232, %v3456
        %v3458 = vpop.f32.mrb[0].mxu0
        %3459 = vmatprep.mubr.f32.mxu0 %v2343
        %3460 = vmatmul.mubr.f32.gmra.mrb[0].mxu0 %v2342
        %v3461 = vpop.f32.mrb[0].mxu0
        %v3462 = vadd.f32 %v3237, %v3461
        %v3463 = vpop.f32.mrb[0].mxu0
        %3464 = vmatprep.mubr.f32.mxu0 %v2349
        %3465 = vmatmul.mubr.f32.gmra.mrb[0].mxu0 %v2348
        %v3466 = vpop.f32.mrb[0].mxu0
        %v3467 = vadd.f32 %v3242, %v3466
        %v3468 = vpop.f32.mrb[0].mxu0
        %3469 = vmatprep.mubr.f32.mxu0 %v2355
        %3470 = vmatmul.mubr.f32.gmra.mrb[0].mxu0 %v2354
        %v3471 = vpop.f32.mrb[0].mxu0
        %v3472 = vadd.f32 %v3247, %v3471
        %v3473 = vpop.f32.mrb[0].mxu0
        %3474 = vmatprep.mubr.f32.mxu0 %v2361
        %3475 = vmatmul.mubr.f32.gmra.mrb[0].mxu0 %v2360
        %v3476 = vpop.f32.mrb[0].mxu0
        %v3477 = vadd.f32 %v3252, %v3476
        %v3478 = vpop.f32.mrb[0].mxu0
        %3479 = vmatprep.mubr.f32.mxu0 %v2367
        %3480 = vmatmul.mubr.f32.gmra.mrb[0].mxu0 %v2366
        %v3481 = vpop.f32.mrb[0].mxu0
        %v3482 = vadd.f32 %v3257, %v3481
        %v3483 = vpop.f32.mrb[0].mxu0
        %3484 = vmatprep.mubr.f32.mxu0 %v2373
        %3485 = vmatmul.mubr.f32.gmra.mrb[0].mxu0 %v2372
        %v3486 = vpop.f32.mrb[0].mxu0
        %v3487 = vadd.f32 %v3262, %v3486
        %v3488 = vpop.f32.mrb[0].mxu0
        %3489 = vmatprep.mubr.f32.mxu0 %v2379
        %3490 = vmatmul.mubr.f32.gmra.mrb[0].mxu0 %v2378
        %v3491 = vpop.f32.mrb[0].mxu0
        %v3492 = vadd.f32 %v3267, %v3491
        %v3493 = vpop.f32.mrb[0].mxu0
        %3494 = vmatprep.mubr.f32.mxu0 %v2385
        %3495 = vmatmul.mubr.f32.gmra.mrb[0].mxu0 %v2384
        %v3496 = vpop.f32.mrb[0].mxu0
        %v3497 = vadd.f32 %v3272, %v3496
        %v3498 = vpop.f32.mrb[0].mxu0
        %3499 = vmatprep.mubr.f32.mxu0 %v2391
        %3500 = vmatmul.mubr.f32.gmra.mrb[0].mxu0 %v2390
        %v3501 = vpop.f32.mrb[0].mxu0
        %v3502 = vadd.f32 %v3277, %v3501
        %v3503 = vpop.f32.mrb[0].mxu0
        %3504 = vmatprep.mubr.f32.mxu0 %v2397
        %3505 = vmatmul.mubr.f32.gmra.mrb[0].mxu0 %v2396
        %v3506 = vpop.f32.mrb[0].mxu0
        %v3507 = vadd.f32 %v3282, %v3506
        %v3508 = vpop.f32.mrb[0].mxu0
        %3509 = vmatprep.mubr.f32.mxu0 %v2403
        %3510 = vmatmul.mubr.f32.gmra.mrb[0].mxu0 %v2402
        %v3511 = vpop.f32.mrb[0].mxu0
        %v3512 = vadd.f32 %v3287, %v3511
        %v3513 = vpop.f32.mrb[0].mxu0
        %3514 = vmatprep.mubr.f32.mxu0 %v2409
        %3515 = vmatmul.mubr.f32.gmra.mrb[0].mxu0 %v2408
        %v3516 = vpop.f32.mrb[0].mxu0
        %v3517 = vadd.f32 %v3292, %v3516
        %v3518 = vpop.f32.mrb[0].mxu0
        %3519 = vmatprep.mubr.f32.mxu0 %v2415
        %3520 = vmatmul.mubr.f32.gmra.mrb[0].mxu0 %v2414
        %v3521 = vpop.f32.mrb[0].mxu0
        %v3522 = vadd.f32 %v3297, %v3521
        %v3523 = vpop.f32.mrb[0].mxu0
        %3524 = vdwg.mxu0
        %3525 = vmatprep.subr.mxu0 0.0
        %3526 = vmatpush1.msra.mxu0 %v2452
        %3527 = vmatprep.subr.mxu0 0.0
        %3528 = vmatpush1.msra.mxu0 %v2453
        %3529 = vmatprep.subr.mxu0 0.0
        %3530 = vmatpush1.msra.mxu0 %v2454
        %3531 = vmatprep.subr.mxu0 0.0
        %3532 = vmatpush1.msra.mxu0 %v2455
        %3533 = vmatprep.subr.mxu0 0.0
        %3534 = vmatpush1.msra.mxu0 %v2456
        %3535 = vmatprep.subr.mxu0 0.0
        %3536 = vmatpush1.msra.mxu0 %v2457
        %3537 = vmatprep.subr.mxu0 0.0
        %3538 = vmatpush1.msra.mxu0 %v2458
        %3539 = vmatprep.subr.mxu0 0.0
        %3540 = vmatpush1.msra.mxu0 %v2459
        %3541 = vmatprep.subr.mxu0 0.0
        %3542 = vmatpush1.msra.mxu0 %v2460
        %3543 = vmatprep.subr.mxu0 0.0
        %3544 = vmatpush1.msra.mxu0 %v2461
        %3545 = vmatprep.subr.mxu0 0.0
        %3546 = vmatpush1.msra.mxu0 %v2462
        %3547 = vmatprep.subr.mxu0 0.0
        %3548 = vmatpush1.msra.mxu0 %v2463
        %3549 = vmatprep.subr.mxu0 0.0
        %3550 = vmatpush1.msra.mxu0 %v2464
        %3551 = vmatprep.subr.mxu0 0.0
        %3552 = vmatpush1.msra.mxu0 %v2465
        %3553 = vmatprep.subr.mxu0 0.0
        %3554 = vmatpush1.msra.mxu0 %v2466
        %3555 = vmatprep.subr.mxu0 0.0
        %3556 = vmatpush1.msra.mxu0 %v2467
        %3557 = vmatprep.subr.mxu0 0.0
        %3558 = vmatpush1.msra.mxu0 %v2468
        %3559 = vmatprep.subr.mxu0 0.0
        %3560 = vmatpush1.msra.mxu0 %v2469
        %3561 = vmatprep.subr.mxu0 0.0
        %3562 = vmatpush1.msra.mxu0 %v2470
        %3563 = vmatprep.subr.mxu0 0.0
        %3564 = vmatpush1.msra.mxu0 %v2471
        %3565 = vmatprep.subr.mxu0 0.0
        %3566 = vmatpush1.msra.mxu0 %v2472
        %3567 = vmatprep.subr.mxu0 0.0
        %3568 = vmatpush1.msra.mxu0 %v2473
        %3569 = vmatprep.subr.mxu0 0.0
        %3570 = vmatpush1.msra.mxu0 %v2474
        %3571 = vmatprep.subr.mxu0 0.0
        %3572 = vmatpush1.msra.mxu0 %v2475
        %3573 = vmatprep.subr.mxu0 0.0
        %3574 = vmatpush1.msra.mxu0 %v2476
        %3575 = vmatprep.subr.mxu0 0.0
        %3576 = vmatpush1.msra.mxu0 %v2477
        %3577 = vmatprep.subr.mxu0 0.0
        %3578 = vmatpush1.msra.mxu0 %v2478
        %3579 = vmatprep.subr.mxu0 0.0
        %3580 = vmatpush1.msra.mxu0 %v2479
        %3581 = vmatprep.subr.mxu0 0.0
        %3582 = vmatpush1.msra.mxu0 %v2480
        %3583 = vmatprep.subr.mxu0 0.0
        %3584 = vmatpush1.msra.mxu0 %v2481
        %3585 = vmatprep.subr.mxu0 0.0
        %3586 = vmatpush1.msra.mxu0 %v2482
        %3587 = vmatprep.subr.mxu0 0.0
        %3588 = vmatpush1.msra.mxu0 %v2483
        %3589 = vmatprep.mubr.f32.mxu0 %v2231
        %3590 = vmatmul.mubr.f32.gmra.mrb[0].mxu0 %v2230
        %v3591 = vpop.f32.mrb[0].mxu0
        %v3592 = vadd.f32 %v3367, %v3591
        %v3593 = vpop.f32.mrb[0].mxu0
        %3594 = vmatprep.mubr.f32.mxu0 %v2237
        %3595 = vmatmul.mubr.f32.gmra.mrb[0].mxu0 %v2236
        %v3596 = vpop.f32.mrb[0].mxu0
        %v3597 = vadd.f32 %v3372, %v3596
        %v3598 = vpop.f32.mrb[0].mxu0
        %3599 = vmatprep.mubr.f32.mxu0 %v2243
        %3600 = vmatmul.mubr.f32.gmra.mrb[0].mxu0 %v2242
        %v3601 = vpop.f32.mrb[0].mxu0
        %v3602 = vadd.f32 %v3377, %v3601
        %v3603 = vpop.f32.mrb[0].mxu0
        %3604 = vmatprep.mubr.f32.mxu0 %v2249
        %3605 = vmatmul.mubr.f32.gmra.mrb[0].mxu0 %v2248
        %v3606 = vpop.f32.mrb[0].mxu0
        %v3607 = vadd.f32 %v3382, %v3606
        %v3608 = vpop.f32.mrb[0].mxu0
        %3609 = vmatprep.mubr.f32.mxu0 %v2255
        %3610 = vmatmul.mubr.f32.gmra.mrb[0].mxu0 %v2254
        %v3611 = vpop.f32.mrb[0].mxu0
        %v3612 = vadd.f32 %v3387, %v3611
        %v3613 = vpop.f32.mrb[0].mxu0
        %3614 = vmatprep.mubr.f32.mxu0 %v2261
        %3615 = vmatmul.mubr.f32.gmra.mrb[0].mxu0 %v2260
        %v3616 = vpop.f32.mrb[0].mxu0
        %v3617 = vadd.f32 %v3392, %v3616
        %v3618 = vpop.f32.mrb[0].mxu0
        %3619 = vmatprep.mubr.f32.mxu0 %v2267
        %3620 = vmatmul.mubr.f32.gmra.mrb[0].mxu0 %v2266
        %v3621 = vpop.f32.mrb[0].mxu0
        %v3622 = vadd.f32 %v3397, %v3621
        %v3623 = vpop.f32.mrb[0].mxu0
        %3624 = vmatprep.mubr.f32.mxu0 %v2273
        %3625 = vmatmul.mubr.f32.gmra.mrb[0].mxu0 %v2272
        %v3626 = vpop.f32.mrb[0].mxu0
        %v3627 = vadd.f32 %v3402, %v3626
        %v3628 = vpop.f32.mrb[0].mxu0
        %3629 = vmatprep.mubr.f32.mxu0 %v2279
        %3630 = vmatmul.mubr.f32.gmra.mrb[0].mxu0 %v2278
        %v3631 = vpop.f32.mrb[0].mxu0
        %v3632 = vadd.f32 %v3407, %v3631
        %v3633 = vpop.f32.mrb[0].mxu0
        %3634 = vmatprep.mubr.f32.mxu0 %v2285
        %3635 = vmatmul.mubr.f32.gmra.mrb[0].mxu0 %v2284
        %v3636 = vpop.f32.mrb[0].mxu0
        %v3637 = vadd.f32 %v3412, %v3636
        %v3638 = vpop.f32.mrb[0].mxu0
        %3639 = vmatprep.mubr.f32.mxu0 %v2291
        %3640 = vmatmul.mubr.f32.gmra.mrb[0].mxu0 %v2290
        %v3641 = vpop.f32.mrb[0].mxu0
        %v3642 = vadd.f32 %v3417, %v3641
        %v3643 = vpop.f32.mrb[0].mxu0
        %3644 = vmatprep.mubr.f32.mxu0 %v2297
        %3645 = vmatmul.mubr.f32.gmra.mrb[0].mxu0 %v2296
        %v3646 = vpop.f32.mrb[0].mxu0
        %v3647 = vadd.f32 %v3422, %v3646
        %v3648 = vpop.f32.mrb[0].mxu0
        %3649 = vmatprep.mubr.f32.mxu0 %v2303
        %3650 = vmatmul.mubr.f32.gmra.mrb[0].mxu0 %v2302
        %v3651 = vpop.f32.mrb[0].mxu0
        %v3652 = vadd.f32 %v3427, %v3651
        %v3653 = vpop.f32.mrb[0].mxu0
        %3654 = vmatprep.mubr.f32.mxu0 %v2309
        %3655 = vmatmul.mubr.f32.gmra.mrb[0].mxu0 %v2308
        %v3656 = vpop.f32.mrb[0].mxu0
        %v3657 = vadd.f32 %v3432, %v3656
        %v3658 = vpop.f32.mrb[0].mxu0
        %3659 = vmatprep.mubr.f32.mxu0 %v2315
        %3660 = vmatmul.mubr.f32.gmra.mrb[0].mxu0 %v2314
        %v3661 = vpop.f32.mrb[0].mxu0
        %v3662 = vadd.f32 %v3437, %v3661
        %v3663 = vpop.f32.mrb[0].mxu0
        %3664 = vmatprep.mubr.f32.mxu0 %v2321
        %3665 = vmatmul.mubr.f32.gmra.mrb[0].mxu0 %v2320
        %v3666 = vpop.f32.mrb[0].mxu0
        %v3667 = vadd.f32 %v3442, %v3666
        %v3668 = vpop.f32.mrb[0].mxu0
        %3669 = vmatprep.mubr.f32.mxu0 %v2327
        %3670 = vmatmul.mubr.f32.gmra.mrb[0].mxu0 %v2326
        %v3671 = vpop.f32.mrb[0].mxu0
        %v3672 = vadd.f32 %v3447, %v3671
        %v3673 = vpop.f32.mrb[0].mxu0
        %3674 = vmatprep.mubr.f32.mxu0 %v2333
        %3675 = vmatmul.mubr.f32.gmra.mrb[0].mxu0 %v2332
        %v3676 = vpop.f32.mrb[0].mxu0
        %v3677 = vadd.f32 %v3452, %v3676
        %v3678 = vpop.f32.mrb[0].mxu0
        %3679 = vmatprep.mubr.f32.mxu0 %v2339
        %3680 = vmatmul.mubr.f32.gmra.mrb[0].mxu0 %v2338
        %v3681 = vpop.f32.mrb[0].mxu0
        %v3682 = vadd.f32 %v3457, %v3681
        %v3683 = vpop.f32.mrb[0].mxu0
        %3684 = vmatprep.mubr.f32.mxu0 %v2345
        %3685 = vmatmul.mubr.f32.gmra.mrb[0].mxu0 %v2344
        %v3686 = vpop.f32.mrb[0].mxu0
        %v3687 = vadd.f32 %v3462, %v3686
        %v3688 = vpop.f32.mrb[0].mxu0
        %3689 = vmatprep.mubr.f32.mxu0 %v2351
        %3690 = vmatmul.mubr.f32.gmra.mrb[0].mxu0 %v2350
        %v3691 = vpop.f32.mrb[0].mxu0
        %v3692 = vadd.f32 %v3467, %v3691
        %v3693 = vpop.f32.mrb[0].mxu0
        %3694 = vmatprep.mubr.f32.mxu0 %v2357
        %3695 = vmatmul.mubr.f32.gmra.mrb[0].mxu0 %v2356
        %v3696 = vpop.f32.mrb[0].mxu0
        %v3697 = vadd.f32 %v3472, %v3696
        %v3698 = vpop.f32.mrb[0].mxu0
        %3699 = vmatprep.mubr.f32.mxu0 %v2363
        %3700 = vmatmul.mubr.f32.gmra.mrb[0].mxu0 %v2362
        %v3701 = vpop.f32.mrb[0].mxu0
        %v3702 = vadd.f32 %v3477, %v3701
        %v3703 = vpop.f32.mrb[0].mxu0
        %3704 = vmatprep.mubr.f32.mxu0 %v2369
        %3705 = vmatmul.mubr.f32.gmra.mrb[0].mxu0 %v2368
        %v3706 = vpop.f32.mrb[0].mxu0
        %v3707 = vadd.f32 %v3482, %v3706
        %v3708 = vpop.f32.mrb[0].mxu0
        %3709 = vmatprep.mubr.f32.mxu0 %v2375
        %3710 = vmatmul.mubr.f32.gmra.mrb[0].mxu0 %v2374
        %v3711 = vpop.f32.mrb[0].mxu0
        %v3712 = vadd.f32 %v3487, %v3711
        %v3713 = vpop.f32.mrb[0].mxu0
        %3714 = vmatprep.mubr.f32.mxu0 %v2381
        %3715 = vmatmul.mubr.f32.gmra.mrb[0].mxu0 %v2380
        %v3716 = vpop.f32.mrb[0].mxu0
        %v3717 = vadd.f32 %v3492, %v3716
        %v3718 = vpop.f32.mrb[0].mxu0
        %3719 = vmatprep.mubr.f32.mxu0 %v2387
        %3720 = vmatmul.mubr.f32.gmra.mrb[0].mxu0 %v2386
        %v3721 = vpop.f32.mrb[0].mxu0
        %v3722 = vadd.f32 %v3497, %v3721
        %v3723 = vpop.f32.mrb[0].mxu0
        %3724 = vmatprep.mubr.f32.mxu0 %v2393
        %3725 = vmatmul.mubr.f32.gmra.mrb[0].mxu0 %v2392
        %v3726 = vpop.f32.mrb[0].mxu0
        %v3727 = vadd.f32 %v3502, %v3726
        %v3728 = vpop.f32.mrb[0].mxu0
        %3729 = vmatprep.mubr.f32.mxu0 %v2399
        %3730 = vmatmul.mubr.f32.gmra.mrb[0].mxu0 %v2398
        %v3731 = vpop.f32.mrb[0].mxu0
        %v3732 = vadd.f32 %v3507, %v3731
        %v3733 = vpop.f32.mrb[0].mxu0
        %3734 = vmatprep.mubr.f32.mxu0 %v2405
        %3735 = vmatmul.mubr.f32.gmra.mrb[0].mxu0 %v2404
        %v3736 = vpop.f32.mrb[0].mxu0
        %v3737 = vadd.f32 %v3512, %v3736
        %v3738 = vpop.f32.mrb[0].mxu0
        %3739 = vmatprep.mubr.f32.mxu0 %v2411
        %3740 = vmatmul.mubr.f32.gmra.mrb[0].mxu0 %v2410
        %v3741 = vpop.f32.mrb[0].mxu0
        %v3742 = vadd.f32 %v3517, %v3741
        %v3743 = vpop.f32.mrb[0].mxu0
        %3744 = vmatprep.mubr.f32.mxu0 %v2417
        %3745 = vmatmul.mubr.f32.gmra.mrb[0].mxu0 %v2416
        %v3746 = vpop.f32.mrb[0].mxu0
        %v3747 = vadd.f32 %v3522, %v3746
        %v3748 = vpop.f32.mrb[0].mxu0
        %3749 = vdwg.mxu0
        %3750 = vmatprep.subr.mxu0 0.0
        %3751 = vmatpush1.msra.mxu0 %v2484
        %3752 = vmatprep.subr.mxu0 0.0
        %3753 = vmatpush1.msra.mxu0 %v2485
        %3754 = vmatprep.subr.mxu0 0.0
        %3755 = vmatpush1.msra.mxu0 %v2486
        %3756 = vmatprep.subr.mxu0 0.0
        %3757 = vmatpush1.msra.mxu0 %v2487
        %3758 = vmatprep.subr.mxu0 0.0
        %3759 = vmatpush1.msra.mxu0 %v2488
        %3760 = vmatprep.subr.mxu0 0.0
        %3761 = vmatpush1.msra.mxu0 %v2489
        %3762 = vmatprep.subr.mxu0 0.0
        %3763 = vmatpush1.msra.mxu0 %v2490
        %3764 = vmatprep.subr.mxu0 0.0
        %3765 = vmatpush1.msra.mxu0 %v2491
        %3766 = vmatprep.subr.mxu0 0.0
        %3767 = vmatpush1.msra.mxu0 %v2492
        %3768 = vmatprep.subr.mxu0 0.0
        %3769 = vmatpush1.msra.mxu0 %v2493
        %3770 = vmatprep.subr.mxu0 0.0
        %3771 = vmatpush1.msra.mxu0 %v2494
        %3772 = vmatprep.subr.mxu0 0.0
        %3773 = vmatpush1.msra.mxu0 %v2495
        %3774 = vmatprep.subr.mxu0 0.0
        %3775 = vmatpush1.msra.mxu0 %v2496
        %3776 = vmatprep.subr.mxu0 0.0
        %3777 = vmatpush1.msra.mxu0 %v2497
        %3778 = vmatprep.subr.mxu0 0.0
        %3779 = vmatpush1.msra.mxu0 %v2498
        %3780 = vmatprep.subr.mxu0 0.0
        %3781 = vmatpush1.msra.mxu0 %v2499
        %3782 = vmatprep.subr.mxu0 0.0
        %3783 = vmatpush1.msra.mxu0 %v2500
        %3784 = vmatprep.subr.mxu0 0.0
        %3785 = vmatpush1.msra.mxu0 %v2501
        %3786 = vmatprep.subr.mxu0 0.0
        %3787 = vmatpush1.msra.mxu0 %v2502
        %3788 = vmatprep.subr.mxu0 0.0
        %3789 = vmatpush1.msra.mxu0 %v2503
        %3790 = vmatprep.subr.mxu0 0.0
        %3791 = vmatpush1.msra.mxu0 %v2504
        %3792 = vmatprep.subr.mxu0 0.0
        %3793 = vmatpush1.msra.mxu0 %v2505
        %3794 = vmatprep.subr.mxu0 0.0
        %3795 = vmatpush1.msra.mxu0 %v2506
        %3796 = vmatprep.subr.mxu0 0.0
        %3797 = vmatpush1.msra.mxu0 %v2507
        %3798 = vmatprep.subr.mxu0 0.0
        %3799 = vmatpush1.msra.mxu0 %v2508
        %3800 = vmatprep.subr.mxu0 0.0
        %3801 = vmatpush1.msra.mxu0 %v2509
        %3802 = vmatprep.subr.mxu0 0.0
        %3803 = vmatpush1.msra.mxu0 %v2510
        %3804 = vmatprep.subr.mxu0 0.0
        %3805 = vmatpush1.msra.mxu0 %v2511
        %3806 = vmatprep.subr.mxu0 0.0
        %3807 = vmatpush1.msra.mxu0 %v2512
        %3808 = vmatprep.subr.mxu0 0.0
        %3809 = vmatpush1.msra.mxu0 %v2513
        %3810 = vmatprep.subr.mxu0 0.0
        %3811 = vmatpush1.msra.mxu0 %v2514
        %3812 = vmatprep.subr.mxu0 0.0
        %3813 = vmatpush1.msra.mxu0 %v2515
        %3814 = vmatprep.mubr.f32.mxu0 %v2233
        %3815 = vmatmul.mubr.f32.gmra.mrb[0].mxu0 %v2232
        %v3816 = vpop.f32.mrb[0].mxu0
        %v3817 = vadd.f32 %v3592, %v3816
        %v3818 = vpop.f32.mrb[0].mxu0
        %3819 = vmatprep.mubr.f32.mxu0 %v2239
        %3820 = vmatmul.mubr.f32.gmra.mrb[0].mxu0 %v2238
        %v3821 = vpop.f32.mrb[0].mxu0
        %v3822 = vadd.f32 %v3597, %v3821
        %v3823 = vpop.f32.mrb[0].mxu0
        %3824 = vmatprep.mubr.f32.mxu0 %v2245
        %3825 = vmatmul.mubr.f32.gmra.mrb[0].mxu0 %v2244
        %v3826 = vpop.f32.mrb[0].mxu0
        %v3827 = vadd.f32 %v3602, %v3826
        %v3828 = vpop.f32.mrb[0].mxu0
        %3829 = vmatprep.mubr.f32.mxu0 %v2251
        %3830 = vmatmul.mubr.f32.gmra.mrb[0].mxu0 %v2250
        %v3831 = vpop.f32.mrb[0].mxu0
        %v3832 = vadd.f32 %v3607, %v3831
        %v3833 = vpop.f32.mrb[0].mxu0
        %3834 = vmatprep.mubr.f32.mxu0 %v2257
        %3835 = vmatmul.mubr.f32.gmra.mrb[0].mxu0 %v2256
        %v3836 = vpop.f32.mrb[0].mxu0
        %v3837 = vadd.f32 %v3612, %v3836
        %v3838 = vpop.f32.mrb[0].mxu0
        %3839 = vmatprep.mubr.f32.mxu0 %v2263
        %3840 = vmatmul.mubr.f32.gmra.mrb[0].mxu0 %v2262
        %v3841 = vpop.f32.mrb[0].mxu0
        %v3842 = vadd.f32 %v3617, %v3841
        %v3843 = vpop.f32.mrb[0].mxu0
        %3844 = vmatprep.mubr.f32.mxu0 %v2269
        %3845 = vmatmul.mubr.f32.gmra.mrb[0].mxu0 %v2268
        %v3846 = vpop.f32.mrb[0].mxu0
        %v3847 = vadd.f32 %v3622, %v3846
        %v3848 = vpop.f32.mrb[0].mxu0
        %3849 = vmatprep.mubr.f32.mxu0 %v2275
        %3850 = vmatmul.mubr.f32.gmra.mrb[0].mxu0 %v2274
        %v3851 = vpop.f32.mrb[0].mxu0
        %v3852 = vadd.f32 %v3627, %v3851
        %v3853 = vpop.f32.mrb[0].mxu0
        %3854 = vmatprep.mubr.f32.mxu0 %v2281
        %3855 = vmatmul.mubr.f32.gmra.mrb[0].mxu0 %v2280
        %v3856 = vpop.f32.mrb[0].mxu0
        %v3857 = vadd.f32 %v3632, %v3856
        %v3858 = vpop.f32.mrb[0].mxu0
        %3859 = vmatprep.mubr.f32.mxu0 %v2287
        %3860 = vmatmul.mubr.f32.gmra.mrb[0].mxu0 %v2286
        %v3861 = vpop.f32.mrb[0].mxu0
        %v3862 = vadd.f32 %v3637, %v3861
        %v3863 = vpop.f32.mrb[0].mxu0
        %3864 = vmatprep.mubr.f32.mxu0 %v2293
        %3865 = vmatmul.mubr.f32.gmra.mrb[0].mxu0 %v2292
        %v3866 = vpop.f32.mrb[0].mxu0
        %v3867 = vadd.f32 %v3642, %v3866
        %v3868 = vpop.f32.mrb[0].mxu0
        %3869 = vmatprep.mubr.f32.mxu0 %v2299
        %3870 = vmatmul.mubr.f32.gmra.mrb[0].mxu0 %v2298
        %v3871 = vpop.f32.mrb[0].mxu0
        %v3872 = vadd.f32 %v3647, %v3871
        %v3873 = vpop.f32.mrb[0].mxu0
        %3874 = vmatprep.mubr.f32.mxu0 %v2305
        %3875 = vmatmul.mubr.f32.gmra.mrb[0].mxu0 %v2304
        %v3876 = vpop.f32.mrb[0].mxu0
        %v3877 = vadd.f32 %v3652, %v3876
        %v3878 = vpop.f32.mrb[0].mxu0
        %3879 = vmatprep.mubr.f32.mxu0 %v2311
        %3880 = vmatmul.mubr.f32.gmra.mrb[0].mxu0 %v2310
        %v3881 = vpop.f32.mrb[0].mxu0
        %v3882 = vadd.f32 %v3657, %v3881
        %v3883 = vpop.f32.mrb[0].mxu0
        %3884 = vmatprep.mubr.f32.mxu0 %v2317
        %3885 = vmatmul.mubr.f32.gmra.mrb[0].mxu0 %v2316
        %v3886 = vpop.f32.mrb[0].mxu0
        %v3887 = vadd.f32 %v3662, %v3886
        %v3888 = vpop.f32.mrb[0].mxu0
        %3889 = vmatprep.mubr.f32.mxu0 %v2323
        %3890 = vmatmul.mubr.f32.gmra.mrb[0].mxu0 %v2322
        %v3891 = vpop.f32.mrb[0].mxu0
        %v3892 = vadd.f32 %v3667, %v3891
        %v3893 = vpop.f32.mrb[0].mxu0
        %3894 = vmatprep.mubr.f32.mxu0 %v2329
        %3895 = vmatmul.mubr.f32.gmra.mrb[0].mxu0 %v2328
        %v3896 = vpop.f32.mrb[0].mxu0
        %v3897 = vadd.f32 %v3672, %v3896
        %v3898 = vpop.f32.mrb[0].mxu0
        %3899 = vmatprep.mubr.f32.mxu0 %v2335
        %3900 = vmatmul.mubr.f32.gmra.mrb[0].mxu0 %v2334
        %v3901 = vpop.f32.mrb[0].mxu0
        %v3902 = vadd.f32 %v3677, %v3901
        %v3903 = vpop.f32.mrb[0].mxu0
        %3904 = vmatprep.mubr.f32.mxu0 %v2341
        %3905 = vmatmul.mubr.f32.gmra.mrb[0].mxu0 %v2340
        %v3906 = vpop.f32.mrb[0].mxu0
        %v3907 = vadd.f32 %v3682, %v3906
        %v3908 = vpop.f32.mrb[0].mxu0
        %3909 = vmatprep.mubr.f32.mxu0 %v2347
        %3910 = vmatmul.mubr.f32.gmra.mrb[0].mxu0 %v2346
        %v3911 = vpop.f32.mrb[0].mxu0
        %v3912 = vadd.f32 %v3687, %v3911
        %v3913 = vpop.f32.mrb[0].mxu0
        %3914 = vmatprep.mubr.f32.mxu0 %v2353
        %3915 = vmatmul.mubr.f32.gmra.mrb[0].mxu0 %v2352
        %v3916 = vpop.f32.mrb[0].mxu0
        %v3917 = vadd.f32 %v3692, %v3916
        %v3918 = vpop.f32.mrb[0].mxu0
        %3919 = vmatprep.mubr.f32.mxu0 %v2359
        %3920 = vmatmul.mubr.f32.gmra.mrb[0].mxu0 %v2358
        %v3921 = vpop.f32.mrb[0].mxu0
        %v3922 = vadd.f32 %v3697, %v3921
        %v3923 = vpop.f32.mrb[0].mxu0
        %3924 = vmatprep.mubr.f32.mxu0 %v2365
        %3925 = vmatmul.mubr.f32.gmra.mrb[0].mxu0 %v2364
        %v3926 = vpop.f32.mrb[0].mxu0
        %v3927 = vadd.f32 %v3702, %v3926
        %v3928 = vpop.f32.mrb[0].mxu0
        %3929 = vmatprep.mubr.f32.mxu0 %v2371
        %3930 = vmatmul.mubr.f32.gmra.mrb[0].mxu0 %v2370
        %v3931 = vpop.f32.mrb[0].mxu0
        %v3932 = vadd.f32 %v3707, %v3931
        %v3933 = vpop.f32.mrb[0].mxu0
        %3934 = vmatprep.mubr.f32.mxu0 %v2377
        %3935 = vmatmul.mubr.f32.gmra.mrb[0].mxu0 %v2376
        %v3936 = vpop.f32.mrb[0].mxu0
        %v3937 = vadd.f32 %v3712, %v3936
        %v3938 = vpop.f32.mrb[0].mxu0
        %3939 = vmatprep.mubr.f32.mxu0 %v2383
        %3940 = vmatmul.mubr.f32.gmra.mrb[0].mxu0 %v2382
        %v3941 = vpop.f32.mrb[0].mxu0
        %v3942 = vadd.f32 %v3717, %v3941
        %v3943 = vpop.f32.mrb[0].mxu0
        %3944 = vmatprep.mubr.f32.mxu0 %v2389
        %3945 = vmatmul.mubr.f32.gmra.mrb[0].mxu0 %v2388
        %v3946 = vpop.f32.mrb[0].mxu0
        %v3947 = vadd.f32 %v3722, %v3946
        %v3948 = vpop.f32.mrb[0].mxu0
        %3949 = vmatprep.mubr.f32.mxu0 %v2395
        %3950 = vmatmul.mubr.f32.gmra.mrb[0].mxu0 %v2394
        %v3951 = vpop.f32.mrb[0].mxu0
        %v3952 = vadd.f32 %v3727, %v3951
        %v3953 = vpop.f32.mrb[0].mxu0
        %3954 = vmatprep.mubr.f32.mxu0 %v2401
        %3955 = vmatmul.mubr.f32.gmra.mrb[0].mxu0 %v2400
        %v3956 = vpop.f32.mrb[0].mxu0
        %v3957 = vadd.f32 %v3732, %v3956
        %v3958 = vpop.f32.mrb[0].mxu0
        %3959 = vmatprep.mubr.f32.mxu0 %v2407
        %3960 = vmatmul.mubr.f32.gmra.mrb[0].mxu0 %v2406
        %v3961 = vpop.f32.mrb[0].mxu0
        %v3962 = vadd.f32 %v3737, %v3961
        %v3963 = vpop.f32.mrb[0].mxu0
        %3964 = vmatprep.mubr.f32.mxu0 %v2413
        %3965 = vmatmul.mubr.f32.gmra.mrb[0].mxu0 %v2412
        %v3966 = vpop.f32.mrb[0].mxu0
        %v3967 = vadd.f32 %v3742, %v3966
        %v3968 = vpop.f32.mrb[0].mxu0
        %3969 = vmatprep.mubr.f32.mxu0 %v2419
        %3970 = vmatmul.mubr.f32.gmra.mrb[0].mxu0 %v2418
        %v3971 = vpop.f32.mrb[0].mxu0
        %v3972 = vadd.f32 %v3747, %v3971
        %v3973 = vpop.f32.mrb[0].mxu0
        %3974 = vdwg.mxu0
        %v3975 = vld [vmem:[#allocation2 + $0xc0] sm:$0xff]
        %v3976 = vld [vmem:[#allocation2 + $0xc8] sm:$0xff]
        %v3977 = vld [vmem:[#allocation2 + $0xd0] sm:$0xff]
        %v3978 = vld [vmem:[#allocation2 + $0xd8] sm:$0xff]
        %v3979 = vld [vmem:[#allocation2 + $0xe0] sm:$0xff]
        %v3980 = vld [vmem:[#allocation2 + $0xe8] sm:$0xff]
        %v3981 = vld [vmem:[#allocation2 + $0xf0] sm:$0xff]
        %v3982 = vld [vmem:[#allocation2 + $0xf8] sm:$0xff]
        %v3983 = vld [vmem:[#allocation2 + $0x100] sm:$0xff]
        %v3984 = vld [vmem:[#allocation2 + $0x108] sm:$0xff]
        %v3985 = vld [vmem:[#allocation2 + $0x110] sm:$0xff]
        %v3986 = vld [vmem:[#allocation2 + $0x118] sm:$0xff]
        %v3987 = vld [vmem:[#allocation2 + $0x120] sm:$0xff]
        %v3988 = vld [vmem:[#allocation2 + $0x128] sm:$0xff]
        %v3989 = vld [vmem:[#allocation2 + $0x130] sm:$0xff]
        %v3990 = vld [vmem:[#allocation2 + $0x138] sm:$0xff]
        %v3991 = vld [vmem:[#allocation2 + $0x140] sm:$0xff]
        %v3992 = vld [vmem:[#allocation2 + $0x148] sm:$0xff]
        %v3993 = vld [vmem:[#allocation2 + $0x150] sm:$0xff]
        %v3994 = vld [vmem:[#allocation2 + $0x158] sm:$0xff]
        %v3995 = vld [vmem:[#allocation2 + $0x160] sm:$0xff]
        %v3996 = vld [vmem:[#allocation2 + $0x168] sm:$0xff]
        %v3997 = vld [vmem:[#allocation2 + $0x170] sm:$0xff]
        %v3998 = vld [vmem:[#allocation2 + $0x178] sm:$0xff]
        %v3999 = vld [vmem:[#allocation2 + $0x180] sm:$0xff]
        %v4000 = vld [vmem:[#allocation2 + $0x188] sm:$0xff]
        %v4001 = vld [vmem:[#allocation2 + $0x190] sm:$0xff]
        %v4002 = vld [vmem:[#allocation2 + $0x198] sm:$0xff]
        %v4003 = vld [vmem:[#allocation2 + $0x1a0] sm:$0xff]
        %v4004 = vld [vmem:[#allocation2 + $0x1a8] sm:$0xff]
        %v4005 = vld [vmem:[#allocation2 + $0x1b0] sm:$0xff]
        %v4006 = vld [vmem:[#allocation2 + $0x1b8] sm:$0xff]
        %v4007 = vld [vmem:[#allocation2 + $0x1c0] sm:$0xff]
        %v4008 = vld [vmem:[#allocation2 + $0x1c8] sm:$0xff]
        %v4009 = vld [vmem:[#allocation2 + $0x1d0] sm:$0xff]
        %v4010 = vld [vmem:[#allocation2 + $0x1d8] sm:$0xff]
        %v4011 = vld [vmem:[#allocation2 + $0x1e0] sm:$0xff]
        %v4012 = vld [vmem:[#allocation2 + $0x1e8] sm:$0xff]
        %v4013 = vld [vmem:[#allocation2 + $0x1f0] sm:$0xff]
        %v4014 = vld [vmem:[#allocation2 + $0x1f8] sm:$0xff]
        %v4015 = vld [vmem:[#allocation2 + $0x200] sm:$0xff]
        %v4016 = vld [vmem:[#allocation2 + $0x208] sm:$0xff]
        %v4017 = vld [vmem:[#allocation2 + $0x210] sm:$0xff]
        %v4018 = vld [vmem:[#allocation2 + $0x218] sm:$0xff]
        %v4019 = vld [vmem:[#allocation2 + $0x220] sm:$0xff]
        %v4020 = vld [vmem:[#allocation2 + $0x228] sm:$0xff]
        %v4021 = vld [vmem:[#allocation2 + $0x230] sm:$0xff]
        %v4022 = vld [vmem:[#allocation2 + $0x238] sm:$0xff]
        %v4023 = vld [vmem:[#allocation2 + $0x240] sm:$0xff]
        %v4024 = vld [vmem:[#allocation2 + $0x248] sm:$0xff]
        %v4025 = vld [vmem:[#allocation2 + $0x250] sm:$0xff]
        %v4026 = vld [vmem:[#allocation2 + $0x258] sm:$0xff]
        %v4027 = vld [vmem:[#allocation2 + $0x260] sm:$0xff]
        %v4028 = vld [vmem:[#allocation2 + $0x268] sm:$0xff]
        %v4029 = vld [vmem:[#allocation2 + $0x270] sm:$0xff]
        %v4030 = vld [vmem:[#allocation2 + $0x278] sm:$0xff]
        %v4031 = vld [vmem:[#allocation2 + $0x280] sm:$0xff]
        %v4032 = vld [vmem:[#allocation2 + $0x288] sm:$0xff]
        %v4033 = vld [vmem:[#allocation2 + $0x290] sm:$0xff]
        %v4034 = vld [vmem:[#allocation2 + $0x298] sm:$0xff]
        %v4035 = vld [vmem:[#allocation2 + $0x2a0] sm:$0xff]
        %v4036 = vld [vmem:[#allocation2 + $0x2a8] sm:$0xff]
        %v4037 = vld [vmem:[#allocation2 + $0x2b0] sm:$0xff]
        %v4038 = vld [vmem:[#allocation2 + $0x2b8] sm:$0xff]
        %v4039 = vld [vmem:[#allocation2 + $0x2c0] sm:$0xff]
        %v4040 = vld [vmem:[#allocation2 + $0x2c8] sm:$0xff]
        %v4041 = vld [vmem:[#allocation2 + $0x2d0] sm:$0xff]
        %v4042 = vld [vmem:[#allocation2 + $0x2d8] sm:$0xff]
        %v4043 = vld [vmem:[#allocation2 + $0x2e0] sm:$0xff]
        %v4044 = vld [vmem:[#allocation2 + $0x2e8] sm:$0xff]
        %v4045 = vld [vmem:[#allocation2 + $0x2f0] sm:$0xff]
        %v4046 = vld [vmem:[#allocation2 + $0x2f8] sm:$0xff]
        %v4047 = vld [vmem:[#allocation2 + $0x300] sm:$0xff]
        %v4048 = vld [vmem:[#allocation2 + $0x308] sm:$0xff]
        %v4049 = vld [vmem:[#allocation2 + $0x310] sm:$0xff]
        %v4050 = vld [vmem:[#allocation2 + $0x318] sm:$0xff]
        %v4051 = vld [vmem:[#allocation2 + $0x320] sm:$0xff]
        %v4052 = vld [vmem:[#allocation2 + $0x328] sm:$0xff]
        %v4053 = vld [vmem:[#allocation2 + $0x330] sm:$0xff]
        %v4054 = vld [vmem:[#allocation2 + $0x338] sm:$0xff]
        %v4055 = vld [vmem:[#allocation2 + $0x340] sm:$0xff]
        %v4056 = vld [vmem:[#allocation2 + $0x348] sm:$0xff]
        %v4057 = vld [vmem:[#allocation2 + $0x350] sm:$0xff]
        %v4058 = vld [vmem:[#allocation2 + $0x358] sm:$0xff]
        %v4059 = vld [vmem:[#allocation2 + $0x360] sm:$0xff]
        %v4060 = vld [vmem:[#allocation2 + $0x368] sm:$0xff]
        %v4061 = vld [vmem:[#allocation2 + $0x370] sm:$0xff]
        %v4062 = vld [vmem:[#allocation2 + $0x378] sm:$0xff]
        %v4063 = vld [vmem:[#allocation2 + $0x380] sm:$0xff]
        %v4064 = vld [vmem:[#allocation2 + $0x388] sm:$0xff]
        %v4065 = vld [vmem:[#allocation2 + $0x390] sm:$0xff]
        %v4066 = vld [vmem:[#allocation2 + $0x398] sm:$0xff]
        %v4067 = vld [vmem:[#allocation2 + $0x3a0] sm:$0xff]
        %v4068 = vld [vmem:[#allocation2 + $0x3a8] sm:$0xff]
        %v4069 = vld [vmem:[#allocation2 + $0x3b0] sm:$0xff]
        %v4070 = vld [vmem:[#allocation2 + $0x3b8] sm:$0xff]
        %v4071 = vld [vmem:[#allocation2 + $0x3c0] sm:$0xff]
        %v4072 = vld [vmem:[#allocation2 + $0x3c8] sm:$0xff]
        %v4073 = vld [vmem:[#allocation2 + $0x3d0] sm:$0xff]
        %v4074 = vld [vmem:[#allocation2 + $0x3d8] sm:$0xff]
        %v4075 = vld [vmem:[#allocation2 + $0x3e0] sm:$0xff]
        %v4076 = vld [vmem:[#allocation2 + $0x3e8] sm:$0xff]
        %v4077 = vld [vmem:[#allocation2 + $0x3f0] sm:$0xff]
        %v4078 = vld [vmem:[#allocation2 + $0x3f8] sm:$0xff]
        %v4079 = vld [vmem:[#allocation2 + $0x400] sm:$0xff]
        %v4080 = vld [vmem:[#allocation2 + $0x408] sm:$0xff]
        %v4081 = vld [vmem:[#allocation2 + $0x410] sm:$0xff]
        %v4082 = vld [vmem:[#allocation2 + $0x418] sm:$0xff]
        %v4083 = vld [vmem:[#allocation2 + $0x420] sm:$0xff]
        %v4084 = vld [vmem:[#allocation2 + $0x428] sm:$0xff]
        %v4085 = vld [vmem:[#allocation2 + $0x430] sm:$0xff]
        %v4086 = vld [vmem:[#allocation2 + $0x438] sm:$0xff]
        %v4087 = vld [vmem:[#allocation2 + $0x440] sm:$0xff]
        %v4088 = vld [vmem:[#allocation2 + $0x448] sm:$0xff]
        %v4089 = vld [vmem:[#allocation2 + $0x450] sm:$0xff]
        %v4090 = vld [vmem:[#allocation2 + $0x458] sm:$0xff]
        %v4091 = vld [vmem:[#allocation2 + $0x460] sm:$0xff]
        %v4092 = vld [vmem:[#allocation2 + $0x468] sm:$0xff]
        %v4093 = vld [vmem:[#allocation2 + $0x470] sm:$0xff]
        %v4094 = vld [vmem:[#allocation2 + $0x478] sm:$0xff]
        %v4095 = vld [vmem:[#allocation2 + $0x480] sm:$0xff]
        %v4096 = vld [vmem:[#allocation2 + $0x488] sm:$0xff]
        %v4097 = vld [vmem:[#allocation2 + $0x490] sm:$0xff]
        %v4098 = vld [vmem:[#allocation2 + $0x498] sm:$0xff]
        %v4099 = vld [vmem:[#allocation2 + $0x4a0] sm:$0xff]
        %v4100 = vld [vmem:[#allocation2 + $0x4a8] sm:$0xff]
        %v4101 = vld [vmem:[#allocation2 + $0x4b0] sm:$0xff]
        %v4102 = vld [vmem:[#allocation2 + $0x4b8] sm:$0xff]
        %v4103 = vld [vmem:[#allocation2 + $0x4c0] sm:$0xff]
        %v4104 = vld [vmem:[#allocation2 + $0x4c8] sm:$0xff]
        %v4105 = vld [vmem:[#allocation2 + $0x4d0] sm:$0xff]
        %v4106 = vld [vmem:[#allocation2 + $0x4d8] sm:$0xff]
        %v4107 = vld [vmem:[#allocation2 + $0x4e0] sm:$0xff]
        %v4108 = vld [vmem:[#allocation2 + $0x4e8] sm:$0xff]
        %v4109 = vld [vmem:[#allocation2 + $0x4f0] sm:$0xff]
        %v4110 = vld [vmem:[#allocation2 + $0x4f8] sm:$0xff]
        %v4111 = vld [vmem:[#allocation2 + $0x500] sm:$0xff]
        %v4112 = vld [vmem:[#allocation2 + $0x508] sm:$0xff]
        %v4113 = vld [vmem:[#allocation2 + $0x510] sm:$0xff]
        %v4114 = vld [vmem:[#allocation2 + $0x518] sm:$0xff]
        %v4115 = vld [vmem:[#allocation2 + $0x520] sm:$0xff]
        %v4116 = vld [vmem:[#allocation2 + $0x528] sm:$0xff]
        %v4117 = vld [vmem:[#allocation2 + $0x530] sm:$0xff]
        %v4118 = vld [vmem:[#allocation2 + $0x538] sm:$0xff]
        %v4119 = vld [vmem:[#allocation2 + $0x540] sm:$0xff]
        %v4120 = vld [vmem:[#allocation2 + $0x548] sm:$0xff]
        %v4121 = vld [vmem:[#allocation2 + $0x550] sm:$0xff]
        %v4122 = vld [vmem:[#allocation2 + $0x558] sm:$0xff]
        %v4123 = vld [vmem:[#allocation2 + $0x560] sm:$0xff]
        %v4124 = vld [vmem:[#allocation2 + $0x568] sm:$0xff]
        %v4125 = vld [vmem:[#allocation2 + $0x570] sm:$0xff]
        %v4126 = vld [vmem:[#allocation2 + $0x578] sm:$0xff]
        %v4127 = vld [vmem:[#allocation2 + $0x580] sm:$0xff]
        %v4128 = vld [vmem:[#allocation2 + $0x588] sm:$0xff]
        %v4129 = vld [vmem:[#allocation2 + $0x590] sm:$0xff]
        %v4130 = vld [vmem:[#allocation2 + $0x598] sm:$0xff]
        %v4131 = vld [vmem:[#allocation2 + $0x5a0] sm:$0xff]
        %v4132 = vld [vmem:[#allocation2 + $0x5a8] sm:$0xff]
        %v4133 = vld [vmem:[#allocation2 + $0x5b0] sm:$0xff]
        %v4134 = vld [vmem:[#allocation2 + $0x5b8] sm:$0xff]
        %v4135 = vld [vmem:[#allocation2 + $0x5c0] sm:$0xff]
        %v4136 = vld [vmem:[#allocation2 + $0x5c8] sm:$0xff]
        %v4137 = vld [vmem:[#allocation2 + $0x5d0] sm:$0xff]
        %v4138 = vld [vmem:[#allocation2 + $0x5d8] sm:$0xff]
        %v4139 = vld [vmem:[#allocation2 + $0x5e0] sm:$0xff]
        %v4140 = vld [vmem:[#allocation2 + $0x5e8] sm:$0xff]
        %v4141 = vld [vmem:[#allocation2 + $0x5f0] sm:$0xff]
        %v4142 = vld [vmem:[#allocation2 + $0x5f8] sm:$0xff]
        %v4143 = vld [vmem:[#allocation2 + $0x600] sm:$0xff]
        %v4144 = vld [vmem:[#allocation2 + $0x608] sm:$0xff]
        %v4145 = vld [vmem:[#allocation2 + $0x610] sm:$0xff]
        %v4146 = vld [vmem:[#allocation2 + $0x618] sm:$0xff]
        %v4147 = vld [vmem:[#allocation2 + $0x620] sm:$0xff]
        %v4148 = vld [vmem:[#allocation2 + $0x628] sm:$0xff]
        %v4149 = vld [vmem:[#allocation2 + $0x630] sm:$0xff]
        %v4150 = vld [vmem:[#allocation2 + $0x638] sm:$0xff]
        %v4151 = vld [vmem:[#allocation2 + $0x640] sm:$0xff]
        %v4152 = vld [vmem:[#allocation2 + $0x648] sm:$0xff]
        %v4153 = vld [vmem:[#allocation2 + $0x650] sm:$0xff]
        %v4154 = vld [vmem:[#allocation2 + $0x658] sm:$0xff]
        %v4155 = vld [vmem:[#allocation2 + $0x660] sm:$0xff]
        %v4156 = vld [vmem:[#allocation2 + $0x668] sm:$0xff]
        %v4157 = vld [vmem:[#allocation2 + $0x670] sm:$0xff]
        %v4158 = vld [vmem:[#allocation2 + $0x678] sm:$0xff]
        %v4159 = vld [vmem:[#allocation2 + $0x680] sm:$0xff]
        %v4160 = vld [vmem:[#allocation2 + $0x688] sm:$0xff]
        %v4161 = vld [vmem:[#allocation2 + $0x690] sm:$0xff]
        %v4162 = vld [vmem:[#allocation2 + $0x698] sm:$0xff]
        %v4163 = vld [vmem:[#allocation2 + $0x6a0] sm:$0xff]
        %v4164 = vld [vmem:[#allocation2 + $0x6a8] sm:$0xff]
        %v4165 = vld [vmem:[#allocation2 + $0x6b0] sm:$0xff]
        %v4166 = vld [vmem:[#allocation2 + $0x6b8] sm:$0xff]
        %s4167 = scalar_lea.vmem [#allocation9], 1536
        %v4168 = vld [vmem:[%s4167] sm:$0xff]
        %v4169 = vld [vmem:[%s4167 + $0x8] sm:$0xff]
        %v4170 = vld [vmem:[%s4167 + $0x10] sm:$0xff]
        %v4171 = vld [vmem:[%s4167 + $0x18] sm:$0xff]
        %v4172 = vld [vmem:[%s4167 + $0x20] sm:$0xff]
        %v4173 = vld [vmem:[%s4167 + $0x28] sm:$0xff]
        %v4174 = vld [vmem:[%s4167 + $0x30] sm:$0xff]
        %v4175 = vld [vmem:[%s4167 + $0x38] sm:$0xff]
        %v4176 = vld [vmem:[%s4167 + $0x40] sm:$0xff]
        %v4177 = vld [vmem:[%s4167 + $0x48] sm:$0xff]
        %v4178 = vld [vmem:[%s4167 + $0x50] sm:$0xff]
        %v4179 = vld [vmem:[%s4167 + $0x58] sm:$0xff]
        %v4180 = vld [vmem:[%s4167 + $0x60] sm:$0xff]
        %v4181 = vld [vmem:[%s4167 + $0x68] sm:$0xff]
        %v4182 = vld [vmem:[%s4167 + $0x70] sm:$0xff]
        %v4183 = vld [vmem:[%s4167 + $0x78] sm:$0xff]
        %v4184 = vld [vmem:[%s4167 + $0x80] sm:$0xff]
        %v4185 = vld [vmem:[%s4167 + $0x88] sm:$0xff]
        %v4186 = vld [vmem:[%s4167 + $0x90] sm:$0xff]
        %v4187 = vld [vmem:[%s4167 + $0x98] sm:$0xff]
        %v4188 = vld [vmem:[%s4167 + $0xa0] sm:$0xff]
        %v4189 = vld [vmem:[%s4167 + $0xa8] sm:$0xff]
        %v4190 = vld [vmem:[%s4167 + $0xb0] sm:$0xff]
        %v4191 = vld [vmem:[%s4167 + $0xb8] sm:$0xff]
        %v4192 = vld [vmem:[%s4167 + $0xc0] sm:$0xff]
        %v4193 = vld [vmem:[%s4167 + $0xc8] sm:$0xff]
        %v4194 = vld [vmem:[%s4167 + $0xd0] sm:$0xff]
        %v4195 = vld [vmem:[%s4167 + $0xd8] sm:$0xff]
        %v4196 = vld [vmem:[%s4167 + $0xe0] sm:$0xff]
        %v4197 = vld [vmem:[%s4167 + $0xe8] sm:$0xff]
        %v4198 = vld [vmem:[%s4167 + $0xf0] sm:$0xff]
        %v4199 = vld [vmem:[%s4167 + $0xf8] sm:$0xff]
        %v4200 = vld [vmem:[%s4167 + $0x100] sm:$0xff]
        %v4201 = vld [vmem:[%s4167 + $0x108] sm:$0xff]
        %v4202 = vld [vmem:[%s4167 + $0x110] sm:$0xff]
        %v4203 = vld [vmem:[%s4167 + $0x118] sm:$0xff]
        %v4204 = vld [vmem:[%s4167 + $0x120] sm:$0xff]
        %v4205 = vld [vmem:[%s4167 + $0x128] sm:$0xff]
        %v4206 = vld [vmem:[%s4167 + $0x130] sm:$0xff]
        %v4207 = vld [vmem:[%s4167 + $0x138] sm:$0xff]
        %v4208 = vld [vmem:[%s4167 + $0x140] sm:$0xff]
        %v4209 = vld [vmem:[%s4167 + $0x148] sm:$0xff]
        %v4210 = vld [vmem:[%s4167 + $0x150] sm:$0xff]
        %v4211 = vld [vmem:[%s4167 + $0x158] sm:$0xff]
        %v4212 = vld [vmem:[%s4167 + $0x160] sm:$0xff]
        %v4213 = vld [vmem:[%s4167 + $0x168] sm:$0xff]
        %v4214 = vld [vmem:[%s4167 + $0x170] sm:$0xff]
        %v4215 = vld [vmem:[%s4167 + $0x178] sm:$0xff]
        %v4216 = vld [vmem:[%s4167 + $0x180] sm:$0xff]
        %v4217 = vld [vmem:[%s4167 + $0x188] sm:$0xff]
        %v4218 = vld [vmem:[%s4167 + $0x190] sm:$0xff]
        %v4219 = vld [vmem:[%s4167 + $0x198] sm:$0xff]
        %v4220 = vld [vmem:[%s4167 + $0x1a0] sm:$0xff]
        %v4221 = vld [vmem:[%s4167 + $0x1a8] sm:$0xff]
        %v4222 = vld [vmem:[%s4167 + $0x1b0] sm:$0xff]
        %v4223 = vld [vmem:[%s4167 + $0x1b8] sm:$0xff]
        %v4224 = vld [vmem:[%s4167 + $0x1c0] sm:$0xff]
        %v4225 = vld [vmem:[%s4167 + $0x1c8] sm:$0xff]
        %v4226 = vld [vmem:[%s4167 + $0x1d0] sm:$0xff]
        %v4227 = vld [vmem:[%s4167 + $0x1d8] sm:$0xff]
        %v4228 = vld [vmem:[%s4167 + $0x1e0] sm:$0xff]
        %v4229 = vld [vmem:[%s4167 + $0x1e8] sm:$0xff]
        %v4230 = vld [vmem:[%s4167 + $0x1f0] sm:$0xff]
        %v4231 = vld [vmem:[%s4167 + $0x1f8] sm:$0xff]
        %v4232 = vld [vmem:[%s4167 + $0x200] sm:$0xff]
        %v4233 = vld [vmem:[%s4167 + $0x208] sm:$0xff]
        %v4234 = vld [vmem:[%s4167 + $0x210] sm:$0xff]
        %v4235 = vld [vmem:[%s4167 + $0x218] sm:$0xff]
        %v4236 = vld [vmem:[%s4167 + $0x220] sm:$0xff]
        %v4237 = vld [vmem:[%s4167 + $0x228] sm:$0xff]
        %v4238 = vld [vmem:[%s4167 + $0x230] sm:$0xff]
        %v4239 = vld [vmem:[%s4167 + $0x238] sm:$0xff]
        %v4240 = vld [vmem:[%s4167 + $0x240] sm:$0xff]
        %v4241 = vld [vmem:[%s4167 + $0x248] sm:$0xff]
        %v4242 = vld [vmem:[%s4167 + $0x250] sm:$0xff]
        %v4243 = vld [vmem:[%s4167 + $0x258] sm:$0xff]
        %v4244 = vld [vmem:[%s4167 + $0x260] sm:$0xff]
        %v4245 = vld [vmem:[%s4167 + $0x268] sm:$0xff]
        %v4246 = vld [vmem:[%s4167 + $0x270] sm:$0xff]
        %v4247 = vld [vmem:[%s4167 + $0x278] sm:$0xff]
        %v4248 = vld [vmem:[%s4167 + $0x280] sm:$0xff]
        %v4249 = vld [vmem:[%s4167 + $0x288] sm:$0xff]
        %v4250 = vld [vmem:[%s4167 + $0x290] sm:$0xff]
        %v4251 = vld [vmem:[%s4167 + $0x298] sm:$0xff]
        %v4252 = vld [vmem:[%s4167 + $0x2a0] sm:$0xff]
        %v4253 = vld [vmem:[%s4167 + $0x2a8] sm:$0xff]
        %v4254 = vld [vmem:[%s4167 + $0x2b0] sm:$0xff]
        %v4255 = vld [vmem:[%s4167 + $0x2b8] sm:$0xff]
        %v4256 = vld [vmem:[%s4167 + $0x2c0] sm:$0xff]
        %v4257 = vld [vmem:[%s4167 + $0x2c8] sm:$0xff]
        %v4258 = vld [vmem:[%s4167 + $0x2d0] sm:$0xff]
        %v4259 = vld [vmem:[%s4167 + $0x2d8] sm:$0xff]
        %v4260 = vld [vmem:[%s4167 + $0x2e0] sm:$0xff]
        %v4261 = vld [vmem:[%s4167 + $0x2e8] sm:$0xff]
        %v4262 = vld [vmem:[%s4167 + $0x2f0] sm:$0xff]
        %v4263 = vld [vmem:[%s4167 + $0x2f8] sm:$0xff]
        %4264 = vmatprep.subr.mxu0 0.0
        %4265 = vmatpush1.msra.mxu0 %v4168
        %4266 = vmatprep.subr.mxu0 0.0
        %4267 = vmatpush1.msra.mxu0 %v4169
        %4268 = vmatprep.subr.mxu0 0.0
        %4269 = vmatpush1.msra.mxu0 %v4170
        %4270 = vmatprep.subr.mxu0 0.0
        %4271 = vmatpush1.msra.mxu0 %v4171
        %4272 = vmatprep.subr.mxu0 0.0
        %4273 = vmatpush1.msra.mxu0 %v4172
        %4274 = vmatprep.subr.mxu0 0.0
        %4275 = vmatpush1.msra.mxu0 %v4173
        %4276 = vmatprep.subr.mxu0 0.0
        %4277 = vmatpush1.msra.mxu0 %v4174
        %4278 = vmatprep.subr.mxu0 0.0
        %4279 = vmatpush1.msra.mxu0 %v4175
        %4280 = vmatprep.subr.mxu0 0.0
        %4281 = vmatpush1.msra.mxu0 %v4176
        %4282 = vmatprep.subr.mxu0 0.0
        %4283 = vmatpush1.msra.mxu0 %v4177
        %4284 = vmatprep.subr.mxu0 0.0
        %4285 = vmatpush1.msra.mxu0 %v4178
        %4286 = vmatprep.subr.mxu0 0.0
        %4287 = vmatpush1.msra.mxu0 %v4179
        %4288 = vmatprep.subr.mxu0 0.0
        %4289 = vmatpush1.msra.mxu0 %v4180
        %4290 = vmatprep.subr.mxu0 0.0
        %4291 = vmatpush1.msra.mxu0 %v4181
        %4292 = vmatprep.subr.mxu0 0.0
        %4293 = vmatpush1.msra.mxu0 %v4182
        %4294 = vmatprep.subr.mxu0 0.0
        %4295 = vmatpush1.msra.mxu0 %v4183
        %4296 = vmatprep.subr.mxu0 0.0
        %4297 = vmatpush1.msra.mxu0 %v4184
        %4298 = vmatprep.subr.mxu0 0.0
        %4299 = vmatpush1.msra.mxu0 %v4185
        %4300 = vmatprep.subr.mxu0 0.0
        %4301 = vmatpush1.msra.mxu0 %v4186
        %4302 = vmatprep.subr.mxu0 0.0
        %4303 = vmatpush1.msra.mxu0 %v4187
        %4304 = vmatprep.subr.mxu0 0.0
        %4305 = vmatpush1.msra.mxu0 %v4188
        %4306 = vmatprep.subr.mxu0 0.0
        %4307 = vmatpush1.msra.mxu0 %v4189
        %4308 = vmatprep.subr.mxu0 0.0
        %4309 = vmatpush1.msra.mxu0 %v4190
        %4310 = vmatprep.subr.mxu0 0.0
        %4311 = vmatpush1.msra.mxu0 %v4191
        %4312 = vmatprep.subr.mxu0 0.0
        %4313 = vmatpush1.msra.mxu0 %v4192
        %4314 = vmatprep.subr.mxu0 0.0
        %4315 = vmatpush1.msra.mxu0 %v4193
        %4316 = vmatprep.subr.mxu0 0.0
        %4317 = vmatpush1.msra.mxu0 %v4194
        %4318 = vmatprep.subr.mxu0 0.0
        %4319 = vmatpush1.msra.mxu0 %v4195
        %4320 = vmatprep.subr.mxu0 0.0
        %4321 = vmatpush1.msra.mxu0 %v4196
        %4322 = vmatprep.subr.mxu0 0.0
        %4323 = vmatpush1.msra.mxu0 %v4197
        %4324 = vmatprep.subr.mxu0 0.0
        %4325 = vmatpush1.msra.mxu0 %v4198
        %4326 = vmatprep.subr.mxu0 0.0
        %4327 = vmatpush1.msra.mxu0 %v4199
        %4328 = vmatprep.mubr.f32.mxu0 %v3976
        %4329 = vmatmul.mubr.f32.gmra.mrb[0].mxu0 %v3975
        %v4330 = vpop.f32.mrb[0].mxu0
        %v4331 = vadd.f32 0.0, %v4330
        %v4332 = vpop.f32.mrb[0].mxu0
        %4333 = vmatprep.mubr.f32.mxu0 %v3982
        %4334 = vmatmul.mubr.f32.gmra.mrb[0].mxu0 %v3981
        %v4335 = vpop.f32.mrb[0].mxu0
        %v4336 = vadd.f32 0.0, %v4335
        %v4337 = vpop.f32.mrb[0].mxu0
        %4338 = vmatprep.mubr.f32.mxu0 %v3988
        %4339 = vmatmul.mubr.f32.gmra.mrb[0].mxu0 %v3987
        %v4340 = vpop.f32.mrb[0].mxu0
        %v4341 = vadd.f32 0.0, %v4340
        %v4342 = vpop.f32.mrb[0].mxu0
        %4343 = vmatprep.mubr.f32.mxu0 %v3994
        %4344 = vmatmul.mubr.f32.gmra.mrb[0].mxu0 %v3993
        %v4345 = vpop.f32.mrb[0].mxu0
        %v4346 = vadd.f32 0.0, %v4345
        %v4347 = vpop.f32.mrb[0].mxu0
        %4348 = vmatprep.mubr.f32.mxu0 %v4000
        %4349 = vmatmul.mubr.f32.gmra.mrb[0].mxu0 %v3999
        %v4350 = vpop.f32.mrb[0].mxu0
        %v4351 = vadd.f32 0.0, %v4350
        %v4352 = vpop.f32.mrb[0].mxu0
        %4353 = vmatprep.mubr.f32.mxu0 %v4006
        %4354 = vmatmul.mubr.f32.gmra.mrb[0].mxu0 %v4005
        %v4355 = vpop.f32.mrb[0].mxu0
        %v4356 = vadd.f32 0.0, %v4355
        %v4357 = vpop.f32.mrb[0].mxu0
        %4358 = vmatprep.mubr.f32.mxu0 %v4012
        %4359 = vmatmul.mubr.f32.gmra.mrb[0].mxu0 %v4011
        %v4360 = vpop.f32.mrb[0].mxu0
        %v4361 = vadd.f32 0.0, %v4360
        %v4362 = vpop.f32.mrb[0].mxu0
        %4363 = vmatprep.mubr.f32.mxu0 %v4018
        %4364 = vmatmul.mubr.f32.gmra.mrb[0].mxu0 %v4017
        %v4365 = vpop.f32.mrb[0].mxu0
        %v4366 = vadd.f32 0.0, %v4365
        %v4367 = vpop.f32.mrb[0].mxu0
        %4368 = vmatprep.mubr.f32.mxu0 %v4024
        %4369 = vmatmul.mubr.f32.gmra.mrb[0].mxu0 %v4023
        %v4370 = vpop.f32.mrb[0].mxu0
        %v4371 = vadd.f32 0.0, %v4370
        %v4372 = vpop.f32.mrb[0].mxu0
        %4373 = vmatprep.mubr.f32.mxu0 %v4030
        %4374 = vmatmul.mubr.f32.gmra.mrb[0].mxu0 %v4029
        %v4375 = vpop.f32.mrb[0].mxu0
        %v4376 = vadd.f32 0.0, %v4375
        %v4377 = vpop.f32.mrb[0].mxu0
        %4378 = vmatprep.mubr.f32.mxu0 %v4036
        %4379 = vmatmul.mubr.f32.gmra.mrb[0].mxu0 %v4035
        %v4380 = vpop.f32.mrb[0].mxu0
        %v4381 = vadd.f32 0.0, %v4380
        %v4382 = vpop.f32.mrb[0].mxu0
        %4383 = vmatprep.mubr.f32.mxu0 %v4042
        %4384 = vmatmul.mubr.f32.gmra.mrb[0].mxu0 %v4041
        %v4385 = vpop.f32.mrb[0].mxu0
        %v4386 = vadd.f32 0.0, %v4385
        %v4387 = vpop.f32.mrb[0].mxu0
        %4388 = vmatprep.mubr.f32.mxu0 %v4048
        %4389 = vmatmul.mubr.f32.gmra.mrb[0].mxu0 %v4047
        %v4390 = vpop.f32.mrb[0].mxu0
        %v4391 = vadd.f32 0.0, %v4390
        %v4392 = vpop.f32.mrb[0].mxu0
        %4393 = vmatprep.mubr.f32.mxu0 %v4054
        %4394 = vmatmul.mubr.f32.gmra.mrb[0].mxu0 %v4053
        %v4395 = vpop.f32.mrb[0].mxu0
        %v4396 = vadd.f32 0.0, %v4395
        %v4397 = vpop.f32.mrb[0].mxu0
        %4398 = vmatprep.mubr.f32.mxu0 %v4060
        %4399 = vmatmul.mubr.f32.gmra.mrb[0].mxu0 %v4059
        %v4400 = vpop.f32.mrb[0].mxu0
        %v4401 = vadd.f32 0.0, %v4400
        %v4402 = vpop.f32.mrb[0].mxu0
        %4403 = vmatprep.mubr.f32.mxu0 %v4066
        %4404 = vmatmul.mubr.f32.gmra.mrb[0].mxu0 %v4065
        %v4405 = vpop.f32.mrb[0].mxu0
        %v4406 = vadd.f32 0.0, %v4405
        %v4407 = vpop.f32.mrb[0].mxu0
        %4408 = vmatprep.mubr.f32.mxu0 %v4072
        %4409 = vmatmul.mubr.f32.gmra.mrb[0].mxu0 %v4071
        %v4410 = vpop.f32.mrb[0].mxu0
        %v4411 = vadd.f32 0.0, %v4410
        %v4412 = vpop.f32.mrb[0].mxu0
        %4413 = vmatprep.mubr.f32.mxu0 %v4078
        %4414 = vmatmul.mubr.f32.gmra.mrb[0].mxu0 %v4077
        %v4415 = vpop.f32.mrb[0].mxu0
        %v4416 = vadd.f32 0.0, %v4415
        %v4417 = vpop.f32.mrb[0].mxu0
        %4418 = vmatprep.mubr.f32.mxu0 %v4084
        %4419 = vmatmul.mubr.f32.gmra.mrb[0].mxu0 %v4083
        %v4420 = vpop.f32.mrb[0].mxu0
        %v4421 = vadd.f32 0.0, %v4420
        %v4422 = vpop.f32.mrb[0].mxu0
        %4423 = vmatprep.mubr.f32.mxu0 %v4090
        %4424 = vmatmul.mubr.f32.gmra.mrb[0].mxu0 %v4089
        %v4425 = vpop.f32.mrb[0].mxu0
        %v4426 = vadd.f32 0.0, %v4425
        %v4427 = vpop.f32.mrb[0].mxu0
        %4428 = vmatprep.mubr.f32.mxu0 %v4096
        %4429 = vmatmul.mubr.f32.gmra.mrb[0].mxu0 %v4095
        %v4430 = vpop.f32.mrb[0].mxu0
        %v4431 = vadd.f32 0.0, %v4430
        %v4432 = vpop.f32.mrb[0].mxu0
        %4433 = vmatprep.mubr.f32.mxu0 %v4102
        %4434 = vmatmul.mubr.f32.gmra.mrb[0].mxu0 %v4101
        %v4435 = vpop.f32.mrb[0].mxu0
        %v4436 = vadd.f32 0.0, %v4435
        %v4437 = vpop.f32.mrb[0].mxu0
        %4438 = vmatprep.mubr.f32.mxu0 %v4108
        %4439 = vmatmul.mubr.f32.gmra.mrb[0].mxu0 %v4107
        %v4440 = vpop.f32.mrb[0].mxu0
        %v4441 = vadd.f32 0.0, %v4440
        %v4442 = vpop.f32.mrb[0].mxu0
        %4443 = vmatprep.mubr.f32.mxu0 %v4114
        %4444 = vmatmul.mubr.f32.gmra.mrb[0].mxu0 %v4113
        %v4445 = vpop.f32.mrb[0].mxu0
        %v4446 = vadd.f32 0.0, %v4445
        %v4447 = vpop.f32.mrb[0].mxu0
        %4448 = vmatprep.mubr.f32.mxu0 %v4120
        %4449 = vmatmul.mubr.f32.gmra.mrb[0].mxu0 %v4119
        %v4450 = vpop.f32.mrb[0].mxu0
        %v4451 = vadd.f32 0.0, %v4450
        %v4452 = vpop.f32.mrb[0].mxu0
        %4453 = vmatprep.mubr.f32.mxu0 %v4126
        %4454 = vmatmul.mubr.f32.gmra.mrb[0].mxu0 %v4125
        %v4455 = vpop.f32.mrb[0].mxu0
        %v4456 = vadd.f32 0.0, %v4455
        %v4457 = vpop.f32.mrb[0].mxu0
        %4458 = vmatprep.mubr.f32.mxu0 %v4132
        %4459 = vmatmul.mubr.f32.gmra.mrb[0].mxu0 %v4131
        %v4460 = vpop.f32.mrb[0].mxu0
        %v4461 = vadd.f32 0.0, %v4460
        %v4462 = vpop.f32.mrb[0].mxu0
        %4463 = vmatprep.mubr.f32.mxu0 %v4138
        %4464 = vmatmul.mubr.f32.gmra.mrb[0].mxu0 %v4137
        %v4465 = vpop.f32.mrb[0].mxu0
        %v4466 = vadd.f32 0.0, %v4465
        %v4467 = vpop.f32.mrb[0].mxu0
        %4468 = vmatprep.mubr.f32.mxu0 %v4144
        %4469 = vmatmul.mubr.f32.gmra.mrb[0].mxu0 %v4143
        %v4470 = vpop.f32.mrb[0].mxu0
        %v4471 = vadd.f32 0.0, %v4470
        %v4472 = vpop.f32.mrb[0].mxu0
        %4473 = vmatprep.mubr.f32.mxu0 %v4150
        %4474 = vmatmul.mubr.f32.gmra.mrb[0].mxu0 %v4149
        %v4475 = vpop.f32.mrb[0].mxu0
        %v4476 = vadd.f32 0.0, %v4475
        %v4477 = vpop.f32.mrb[0].mxu0
        %4478 = vmatprep.mubr.f32.mxu0 %v4156
        %4479 = vmatmul.mubr.f32.gmra.mrb[0].mxu0 %v4155
        %v4480 = vpop.f32.mrb[0].mxu0
        %v4481 = vadd.f32 0.0, %v4480
        %v4482 = vpop.f32.mrb[0].mxu0
        %4483 = vmatprep.mubr.f32.mxu0 %v4162
        %4484 = vmatmul.mubr.f32.gmra.mrb[0].mxu0 %v4161
        %v4485 = vpop.f32.mrb[0].mxu0
        %v4486 = vadd.f32 0.0, %v4485
        %v4487 = vpop.f32.mrb[0].mxu0
        %4488 = vdwg.mxu0
        %4489 = vmatprep.subr.mxu0 0.0
        %4490 = vmatpush1.msra.mxu0 %v4200
        %4491 = vmatprep.subr.mxu0 0.0
        %4492 = vmatpush1.msra.mxu0 %v4201
        %4493 = vmatprep.subr.mxu0 0.0
        %4494 = vmatpush1.msra.mxu0 %v4202
        %4495 = vmatprep.subr.mxu0 0.0
        %4496 = vmatpush1.msra.mxu0 %v4203
        %4497 = vmatprep.subr.mxu0 0.0
        %4498 = vmatpush1.msra.mxu0 %v4204
        %4499 = vmatprep.subr.mxu0 0.0
        %4500 = vmatpush1.msra.mxu0 %v4205
        %4501 = vmatprep.subr.mxu0 0.0
        %4502 = vmatpush1.msra.mxu0 %v4206
        %4503 = vmatprep.subr.mxu0 0.0
        %4504 = vmatpush1.msra.mxu0 %v4207
        %4505 = vmatprep.subr.mxu0 0.0
        %4506 = vmatpush1.msra.mxu0 %v4208
        %4507 = vmatprep.subr.mxu0 0.0
        %4508 = vmatpush1.msra.mxu0 %v4209
        %4509 = vmatprep.subr.mxu0 0.0
        %4510 = vmatpush1.msra.mxu0 %v4210
        %4511 = vmatprep.subr.mxu0 0.0
        %4512 = vmatpush1.msra.mxu0 %v4211
        %4513 = vmatprep.subr.mxu0 0.0
        %4514 = vmatpush1.msra.mxu0 %v4212
        %4515 = vmatprep.subr.mxu0 0.0
        %4516 = vmatpush1.msra.mxu0 %v4213
        %4517 = vmatprep.subr.mxu0 0.0
        %4518 = vmatpush1.msra.mxu0 %v4214
        %4519 = vmatprep.subr.mxu0 0.0
        %4520 = vmatpush1.msra.mxu0 %v4215
        %4521 = vmatprep.subr.mxu0 0.0
        %4522 = vmatpush1.msra.mxu0 %v4216
        %4523 = vmatprep.subr.mxu0 0.0
        %4524 = vmatpush1.msra.mxu0 %v4217
        %4525 = vmatprep.subr.mxu0 0.0
        %4526 = vmatpush1.msra.mxu0 %v4218
        %4527 = vmatprep.subr.mxu0 0.0
        %4528 = vmatpush1.msra.mxu0 %v4219
        %4529 = vmatprep.subr.mxu0 0.0
        %4530 = vmatpush1.msra.mxu0 %v4220
        %4531 = vmatprep.subr.mxu0 0.0
        %4532 = vmatpush1.msra.mxu0 %v4221
        %4533 = vmatprep.subr.mxu0 0.0
        %4534 = vmatpush1.msra.mxu0 %v4222
        %4535 = vmatprep.subr.mxu0 0.0
        %4536 = vmatpush1.msra.mxu0 %v4223
        %4537 = vmatprep.subr.mxu0 0.0
        %4538 = vmatpush1.msra.mxu0 %v4224
        %4539 = vmatprep.subr.mxu0 0.0
        %4540 = vmatpush1.msra.mxu0 %v4225
        %4541 = vmatprep.subr.mxu0 0.0
        %4542 = vmatpush1.msra.mxu0 %v4226
        %4543 = vmatprep.subr.mxu0 0.0
        %4544 = vmatpush1.msra.mxu0 %v4227
        %4545 = vmatprep.subr.mxu0 0.0
        %4546 = vmatpush1.msra.mxu0 %v4228
        %4547 = vmatprep.subr.mxu0 0.0
        %4548 = vmatpush1.msra.mxu0 %v4229
        %4549 = vmatprep.subr.mxu0 0.0
        %4550 = vmatpush1.msra.mxu0 %v4230
        %4551 = vmatprep.subr.mxu0 0.0
        %4552 = vmatpush1.msra.mxu0 %v4231
        %4553 = vmatprep.mubr.f32.mxu0 %v3978
        %4554 = vmatmul.mubr.f32.gmra.mrb[0].mxu0 %v3977
        %v4555 = vpop.f32.mrb[0].mxu0
        %v4556 = vadd.f32 %v4331, %v4555
        %v4557 = vpop.f32.mrb[0].mxu0
        %4558 = vmatprep.mubr.f32.mxu0 %v3984
        %4559 = vmatmul.mubr.f32.gmra.mrb[0].mxu0 %v3983
        %v4560 = vpop.f32.mrb[0].mxu0
        %v4561 = vadd.f32 %v4336, %v4560
        %v4562 = vpop.f32.mrb[0].mxu0
        %4563 = vmatprep.mubr.f32.mxu0 %v3990
        %4564 = vmatmul.mubr.f32.gmra.mrb[0].mxu0 %v3989
        %v4565 = vpop.f32.mrb[0].mxu0
        %v4566 = vadd.f32 %v4341, %v4565
        %v4567 = vpop.f32.mrb[0].mxu0
        %4568 = vmatprep.mubr.f32.mxu0 %v3996
        %4569 = vmatmul.mubr.f32.gmra.mrb[0].mxu0 %v3995
        %v4570 = vpop.f32.mrb[0].mxu0
        %v4571 = vadd.f32 %v4346, %v4570
        %v4572 = vpop.f32.mrb[0].mxu0
        %4573 = vmatprep.mubr.f32.mxu0 %v4002
        %4574 = vmatmul.mubr.f32.gmra.mrb[0].mxu0 %v4001
        %v4575 = vpop.f32.mrb[0].mxu0
        %v4576 = vadd.f32 %v4351, %v4575
        %v4577 = vpop.f32.mrb[0].mxu0
        %4578 = vmatprep.mubr.f32.mxu0 %v4008
        %4579 = vmatmul.mubr.f32.gmra.mrb[0].mxu0 %v4007
        %v4580 = vpop.f32.mrb[0].mxu0
        %v4581 = vadd.f32 %v4356, %v4580
        %v4582 = vpop.f32.mrb[0].mxu0
        %4583 = vmatprep.mubr.f32.mxu0 %v4014
        %4584 = vmatmul.mubr.f32.gmra.mrb[0].mxu0 %v4013
        %v4585 = vpop.f32.mrb[0].mxu0
        %v4586 = vadd.f32 %v4361, %v4585
        %v4587 = vpop.f32.mrb[0].mxu0
        %4588 = vmatprep.mubr.f32.mxu0 %v4020
        %4589 = vmatmul.mubr.f32.gmra.mrb[0].mxu0 %v4019
        %v4590 = vpop.f32.mrb[0].mxu0
        %v4591 = vadd.f32 %v4366, %v4590
        %v4592 = vpop.f32.mrb[0].mxu0
        %4593 = vmatprep.mubr.f32.mxu0 %v4026
        %4594 = vmatmul.mubr.f32.gmra.mrb[0].mxu0 %v4025
        %v4595 = vpop.f32.mrb[0].mxu0
        %v4596 = vadd.f32 %v4371, %v4595
        %v4597 = vpop.f32.mrb[0].mxu0
        %4598 = vmatprep.mubr.f32.mxu0 %v4032
        %4599 = vmatmul.mubr.f32.gmra.mrb[0].mxu0 %v4031
        %v4600 = vpop.f32.mrb[0].mxu0
        %v4601 = vadd.f32 %v4376, %v4600
        %v4602 = vpop.f32.mrb[0].mxu0
        %4603 = vmatprep.mubr.f32.mxu0 %v4038
        %4604 = vmatmul.mubr.f32.gmra.mrb[0].mxu0 %v4037
        %v4605 = vpop.f32.mrb[0].mxu0
        %v4606 = vadd.f32 %v4381, %v4605
        %v4607 = vpop.f32.mrb[0].mxu0
        %4608 = vmatprep.mubr.f32.mxu0 %v4044
        %4609 = vmatmul.mubr.f32.gmra.mrb[0].mxu0 %v4043
        %v4610 = vpop.f32.mrb[0].mxu0
        %v4611 = vadd.f32 %v4386, %v4610
        %v4612 = vpop.f32.mrb[0].mxu0
        %4613 = vmatprep.mubr.f32.mxu0 %v4050
        %4614 = vmatmul.mubr.f32.gmra.mrb[0].mxu0 %v4049
        %v4615 = vpop.f32.mrb[0].mxu0
        %v4616 = vadd.f32 %v4391, %v4615
        %v4617 = vpop.f32.mrb[0].mxu0
        %4618 = vmatprep.mubr.f32.mxu0 %v4056
        %4619 = vmatmul.mubr.f32.gmra.mrb[0].mxu0 %v4055
        %v4620 = vpop.f32.mrb[0].mxu0
        %v4621 = vadd.f32 %v4396, %v4620
        %v4622 = vpop.f32.mrb[0].mxu0
        %4623 = vmatprep.mubr.f32.mxu0 %v4062
        %4624 = vmatmul.mubr.f32.gmra.mrb[0].mxu0 %v4061
        %v4625 = vpop.f32.mrb[0].mxu0
        %v4626 = vadd.f32 %v4401, %v4625
        %v4627 = vpop.f32.mrb[0].mxu0
        %4628 = vmatprep.mubr.f32.mxu0 %v4068
        %4629 = vmatmul.mubr.f32.gmra.mrb[0].mxu0 %v4067
        %v4630 = vpop.f32.mrb[0].mxu0
        %v4631 = vadd.f32 %v4406, %v4630
        %v4632 = vpop.f32.mrb[0].mxu0
        %4633 = vmatprep.mubr.f32.mxu0 %v4074
        %4634 = vmatmul.mubr.f32.gmra.mrb[0].mxu0 %v4073
        %v4635 = vpop.f32.mrb[0].mxu0
        %v4636 = vadd.f32 %v4411, %v4635
        %v4637 = vpop.f32.mrb[0].mxu0
        %4638 = vmatprep.mubr.f32.mxu0 %v4080
        %4639 = vmatmul.mubr.f32.gmra.mrb[0].mxu0 %v4079
        %v4640 = vpop.f32.mrb[0].mxu0
        %v4641 = vadd.f32 %v4416, %v4640
        %v4642 = vpop.f32.mrb[0].mxu0
        %4643 = vmatprep.mubr.f32.mxu0 %v4086
        %4644 = vmatmul.mubr.f32.gmra.mrb[0].mxu0 %v4085
        %v4645 = vpop.f32.mrb[0].mxu0
        %v4646 = vadd.f32 %v4421, %v4645
        %v4647 = vpop.f32.mrb[0].mxu0
        %4648 = vmatprep.mubr.f32.mxu0 %v4092
        %4649 = vmatmul.mubr.f32.gmra.mrb[0].mxu0 %v4091
        %v4650 = vpop.f32.mrb[0].mxu0
        %v4651 = vadd.f32 %v4426, %v4650
        %v4652 = vpop.f32.mrb[0].mxu0
        %4653 = vmatprep.mubr.f32.mxu0 %v4098
        %4654 = vmatmul.mubr.f32.gmra.mrb[0].mxu0 %v4097
        %v4655 = vpop.f32.mrb[0].mxu0
        %v4656 = vadd.f32 %v4431, %v4655
        %v4657 = vpop.f32.mrb[0].mxu0
        %4658 = vmatprep.mubr.f32.mxu0 %v4104
        %4659 = vmatmul.mubr.f32.gmra.mrb[0].mxu0 %v4103
        %v4660 = vpop.f32.mrb[0].mxu0
        %v4661 = vadd.f32 %v4436, %v4660
        %v4662 = vpop.f32.mrb[0].mxu0
        %4663 = vmatprep.mubr.f32.mxu0 %v4110
        %4664 = vmatmul.mubr.f32.gmra.mrb[0].mxu0 %v4109
        %v4665 = vpop.f32.mrb[0].mxu0
        %v4666 = vadd.f32 %v4441, %v4665
        %v4667 = vpop.f32.mrb[0].mxu0
        %4668 = vmatprep.mubr.f32.mxu0 %v4116
        %4669 = vmatmul.mubr.f32.gmra.mrb[0].mxu0 %v4115
        %v4670 = vpop.f32.mrb[0].mxu0
        %v4671 = vadd.f32 %v4446, %v4670
        %v4672 = vpop.f32.mrb[0].mxu0
        %4673 = vmatprep.mubr.f32.mxu0 %v4122
        %4674 = vmatmul.mubr.f32.gmra.mrb[0].mxu0 %v4121
        %v4675 = vpop.f32.mrb[0].mxu0
        %v4676 = vadd.f32 %v4451, %v4675
        %v4677 = vpop.f32.mrb[0].mxu0
        %4678 = vmatprep.mubr.f32.mxu0 %v4128
        %4679 = vmatmul.mubr.f32.gmra.mrb[0].mxu0 %v4127
        %v4680 = vpop.f32.mrb[0].mxu0
        %v4681 = vadd.f32 %v4456, %v4680
        %v4682 = vpop.f32.mrb[0].mxu0
        %4683 = vmatprep.mubr.f32.mxu0 %v4134
        %4684 = vmatmul.mubr.f32.gmra.mrb[0].mxu0 %v4133
        %v4685 = vpop.f32.mrb[0].mxu0
        %v4686 = vadd.f32 %v4461, %v4685
        %v4687 = vpop.f32.mrb[0].mxu0
        %4688 = vmatprep.mubr.f32.mxu0 %v4140
        %4689 = vmatmul.mubr.f32.gmra.mrb[0].mxu0 %v4139
        %v4690 = vpop.f32.mrb[0].mxu0
        %v4691 = vadd.f32 %v4466, %v4690
        %v4692 = vpop.f32.mrb[0].mxu0
        %4693 = vmatprep.mubr.f32.mxu0 %v4146
        %4694 = vmatmul.mubr.f32.gmra.mrb[0].mxu0 %v4145
        %v4695 = vpop.f32.mrb[0].mxu0
        %v4696 = vadd.f32 %v4471, %v4695
        %v4697 = vpop.f32.mrb[0].mxu0
        %4698 = vmatprep.mubr.f32.mxu0 %v4152
        %4699 = vmatmul.mubr.f32.gmra.mrb[0].mxu0 %v4151
        %v4700 = vpop.f32.mrb[0].mxu0
        %v4701 = vadd.f32 %v4476, %v4700
        %v4702 = vpop.f32.mrb[0].mxu0
        %4703 = vmatprep.mubr.f32.mxu0 %v4158
        %4704 = vmatmul.mubr.f32.gmra.mrb[0].mxu0 %v4157
        %v4705 = vpop.f32.mrb[0].mxu0
        %v4706 = vadd.f32 %v4481, %v4705
        %v4707 = vpop.f32.mrb[0].mxu0
        %4708 = vmatprep.mubr.f32.mxu0 %v4164
        %4709 = vmatmul.mubr.f32.gmra.mrb[0].mxu0 %v4163
        %v4710 = vpop.f32.mrb[0].mxu0
        %v4711 = vadd.f32 %v4486, %v4710
        %v4712 = vpop.f32.mrb[0].mxu0
        %4713 = vdwg.mxu0
        %4714 = vmatprep.subr.mxu0 0.0
        %4715 = vmatpush1.msra.mxu0 %v4232
        %4716 = vmatprep.subr.mxu0 0.0
        %4717 = vmatpush1.msra.mxu0 %v4233
        %4718 = vmatprep.subr.mxu0 0.0
        %4719 = vmatpush1.msra.mxu0 %v4234
        %4720 = vmatprep.subr.mxu0 0.0
        %4721 = vmatpush1.msra.mxu0 %v4235
        %4722 = vmatprep.subr.mxu0 0.0
        %4723 = vmatpush1.msra.mxu0 %v4236
        %4724 = vmatprep.subr.mxu0 0.0
        %4725 = vmatpush1.msra.mxu0 %v4237
        %4726 = vmatprep.subr.mxu0 0.0
        %4727 = vmatpush1.msra.mxu0 %v4238
        %4728 = vmatprep.subr.mxu0 0.0
        %4729 = vmatpush1.msra.mxu0 %v4239
        %4730 = vmatprep.subr.mxu0 0.0
        %4731 = vmatpush1.msra.mxu0 %v4240
        %4732 = vmatprep.subr.mxu0 0.0
        %4733 = vmatpush1.msra.mxu0 %v4241
        %4734 = vmatprep.subr.mxu0 0.0
        %4735 = vmatpush1.msra.mxu0 %v4242
        %4736 = vmatprep.subr.mxu0 0.0
        %4737 = vmatpush1.msra.mxu0 %v4243
        %4738 = vmatprep.subr.mxu0 0.0
        %4739 = vmatpush1.msra.mxu0 %v4244
        %4740 = vmatprep.subr.mxu0 0.0
        %4741 = vmatpush1.msra.mxu0 %v4245
        %4742 = vmatprep.subr.mxu0 0.0
        %4743 = vmatpush1.msra.mxu0 %v4246
        %4744 = vmatprep.subr.mxu0 0.0
        %4745 = vmatpush1.msra.mxu0 %v4247
        %4746 = vmatprep.subr.mxu0 0.0
        %4747 = vmatpush1.msra.mxu0 %v4248
        %4748 = vmatprep.subr.mxu0 0.0
        %4749 = vmatpush1.msra.mxu0 %v4249
        %4750 = vmatprep.subr.mxu0 0.0
        %4751 = vmatpush1.msra.mxu0 %v4250
        %4752 = vmatprep.subr.mxu0 0.0
        %4753 = vmatpush1.msra.mxu0 %v4251
        %4754 = vmatprep.subr.mxu0 0.0
        %4755 = vmatpush1.msra.mxu0 %v4252
        %4756 = vmatprep.subr.mxu0 0.0
        %4757 = vmatpush1.msra.mxu0 %v4253
        %4758 = vmatprep.subr.mxu0 0.0
        %4759 = vmatpush1.msra.mxu0 %v4254
        %4760 = vmatprep.subr.mxu0 0.0
        %4761 = vmatpush1.msra.mxu0 %v4255
        %4762 = vmatprep.subr.mxu0 0.0
        %4763 = vmatpush1.msra.mxu0 %v4256
        %4764 = vmatprep.subr.mxu0 0.0
        %4765 = vmatpush1.msra.mxu0 %v4257
        %4766 = vmatprep.subr.mxu0 0.0
        %4767 = vmatpush1.msra.mxu0 %v4258
        %4768 = vmatprep.subr.mxu0 0.0
        %4769 = vmatpush1.msra.mxu0 %v4259
        %4770 = vmatprep.subr.mxu0 0.0
        %4771 = vmatpush1.msra.mxu0 %v4260
        %4772 = vmatprep.subr.mxu0 0.0
        %4773 = vmatpush1.msra.mxu0 %v4261
        %4774 = vmatprep.subr.mxu0 0.0
        %4775 = vmatpush1.msra.mxu0 %v4262
        %4776 = vmatprep.subr.mxu0 0.0
        %4777 = vmatpush1.msra.mxu0 %v4263
        %4778 = vmatprep.mubr.f32.mxu0 %v3980
        %4779 = vmatmul.mubr.f32.gmra.mrb[0].mxu0 %v3979
        %v4780 = vpop.f32.mrb[0].mxu0
        %v4781 = vadd.f32 %v4556, %v4780
        %v4782 = vpop.f32.mrb[0].mxu0
        %4783 = vmatprep.mubr.f32.mxu0 %v3986
        %4784 = vmatmul.mubr.f32.gmra.mrb[0].mxu0 %v3985
        %v4785 = vpop.f32.mrb[0].mxu0
        %v4786 = vadd.f32 %v4561, %v4785
        %v4787 = vpop.f32.mrb[0].mxu0
        %4788 = vmatprep.mubr.f32.mxu0 %v3992
        %4789 = vmatmul.mubr.f32.gmra.mrb[0].mxu0 %v3991
        %v4790 = vpop.f32.mrb[0].mxu0
        %v4791 = vadd.f32 %v4566, %v4790
        %v4792 = vpop.f32.mrb[0].mxu0
        %4793 = vmatprep.mubr.f32.mxu0 %v3998
        %4794 = vmatmul.mubr.f32.gmra.mrb[0].mxu0 %v3997
        %v4795 = vpop.f32.mrb[0].mxu0
        %v4796 = vadd.f32 %v4571, %v4795
        %v4797 = vpop.f32.mrb[0].mxu0
        %4798 = vmatprep.mubr.f32.mxu0 %v4004
        %4799 = vmatmul.mubr.f32.gmra.mrb[0].mxu0 %v4003
        %v4800 = vpop.f32.mrb[0].mxu0
        %v4801 = vadd.f32 %v4576, %v4800
        %v4802 = vpop.f32.mrb[0].mxu0
        %4803 = vmatprep.mubr.f32.mxu0 %v4010
        %4804 = vmatmul.mubr.f32.gmra.mrb[0].mxu0 %v4009
        %v4805 = vpop.f32.mrb[0].mxu0
        %v4806 = vadd.f32 %v4581, %v4805
        %v4807 = vpop.f32.mrb[0].mxu0
        %4808 = vmatprep.mubr.f32.mxu0 %v4016
        %4809 = vmatmul.mubr.f32.gmra.mrb[0].mxu0 %v4015
        %v4810 = vpop.f32.mrb[0].mxu0
        %v4811 = vadd.f32 %v4586, %v4810
        %v4812 = vpop.f32.mrb[0].mxu0
        %4813 = vmatprep.mubr.f32.mxu0 %v4022
        %4814 = vmatmul.mubr.f32.gmra.mrb[0].mxu0 %v4021
        %v4815 = vpop.f32.mrb[0].mxu0
        %v4816 = vadd.f32 %v4591, %v4815
        %v4817 = vpop.f32.mrb[0].mxu0
        %4818 = vmatprep.mubr.f32.mxu0 %v4028
        %4819 = vmatmul.mubr.f32.gmra.mrb[0].mxu0 %v4027
        %v4820 = vpop.f32.mrb[0].mxu0
        %v4821 = vadd.f32 %v4596, %v4820
        %v4822 = vpop.f32.mrb[0].mxu0
        %4823 = vmatprep.mubr.f32.mxu0 %v4034
        %4824 = vmatmul.mubr.f32.gmra.mrb[0].mxu0 %v4033
        %v4825 = vpop.f32.mrb[0].mxu0
        %v4826 = vadd.f32 %v4601, %v4825
        %v4827 = vpop.f32.mrb[0].mxu0
        %4828 = vmatprep.mubr.f32.mxu0 %v4040
        %4829 = vmatmul.mubr.f32.gmra.mrb[0].mxu0 %v4039
        %v4830 = vpop.f32.mrb[0].mxu0
        %v4831 = vadd.f32 %v4606, %v4830
        %v4832 = vpop.f32.mrb[0].mxu0
        %4833 = vmatprep.mubr.f32.mxu0 %v4046
        %4834 = vmatmul.mubr.f32.gmra.mrb[0].mxu0 %v4045
        %v4835 = vpop.f32.mrb[0].mxu0
        %v4836 = vadd.f32 %v4611, %v4835
        %v4837 = vpop.f32.mrb[0].mxu0
        %4838 = vmatprep.mubr.f32.mxu0 %v4052
        %4839 = vmatmul.mubr.f32.gmra.mrb[0].mxu0 %v4051
        %v4840 = vpop.f32.mrb[0].mxu0
        %v4841 = vadd.f32 %v4616, %v4840
        %v4842 = vpop.f32.mrb[0].mxu0
        %4843 = vmatprep.mubr.f32.mxu0 %v4058
        %4844 = vmatmul.mubr.f32.gmra.mrb[0].mxu0 %v4057
        %v4845 = vpop.f32.mrb[0].mxu0
        %v4846 = vadd.f32 %v4621, %v4845
        %v4847 = vpop.f32.mrb[0].mxu0
        %4848 = vmatprep.mubr.f32.mxu0 %v4064
        %4849 = vmatmul.mubr.f32.gmra.mrb[0].mxu0 %v4063
        %v4850 = vpop.f32.mrb[0].mxu0
        %v4851 = vadd.f32 %v4626, %v4850
        %v4852 = vpop.f32.mrb[0].mxu0
        %4853 = vmatprep.mubr.f32.mxu0 %v4070
        %4854 = vmatmul.mubr.f32.gmra.mrb[0].mxu0 %v4069
        %v4855 = vpop.f32.mrb[0].mxu0
        %v4856 = vadd.f32 %v4631, %v4855
        %v4857 = vpop.f32.mrb[0].mxu0
        %4858 = vmatprep.mubr.f32.mxu0 %v4076
        %4859 = vmatmul.mubr.f32.gmra.mrb[0].mxu0 %v4075
        %v4860 = vpop.f32.mrb[0].mxu0
        %v4861 = vadd.f32 %v4636, %v4860
        %v4862 = vpop.f32.mrb[0].mxu0
        %4863 = vmatprep.mubr.f32.mxu0 %v4082
        %4864 = vmatmul.mubr.f32.gmra.mrb[0].mxu0 %v4081
        %v4865 = vpop.f32.mrb[0].mxu0
        %v4866 = vadd.f32 %v4641, %v4865
        %v4867 = vpop.f32.mrb[0].mxu0
        %4868 = vmatprep.mubr.f32.mxu0 %v4088
        %4869 = vmatmul.mubr.f32.gmra.mrb[0].mxu0 %v4087
        %v4870 = vpop.f32.mrb[0].mxu0
        %v4871 = vadd.f32 %v4646, %v4870
        %v4872 = vpop.f32.mrb[0].mxu0
        %4873 = vmatprep.mubr.f32.mxu0 %v4094
        %4874 = vmatmul.mubr.f32.gmra.mrb[0].mxu0 %v4093
        %v4875 = vpop.f32.mrb[0].mxu0
        %v4876 = vadd.f32 %v4651, %v4875
        %v4877 = vpop.f32.mrb[0].mxu0
        %4878 = vmatprep.mubr.f32.mxu0 %v4100
        %4879 = vmatmul.mubr.f32.gmra.mrb[0].mxu0 %v4099
        %v4880 = vpop.f32.mrb[0].mxu0
        %v4881 = vadd.f32 %v4656, %v4880
        %v4882 = vpop.f32.mrb[0].mxu0
        %4883 = vmatprep.mubr.f32.mxu0 %v4106
        %4884 = vmatmul.mubr.f32.gmra.mrb[0].mxu0 %v4105
        %v4885 = vpop.f32.mrb[0].mxu0
        %v4886 = vadd.f32 %v4661, %v4885
        %v4887 = vpop.f32.mrb[0].mxu0
        %4888 = vmatprep.mubr.f32.mxu0 %v4112
        %4889 = vmatmul.mubr.f32.gmra.mrb[0].mxu0 %v4111
        %v4890 = vpop.f32.mrb[0].mxu0
        %v4891 = vadd.f32 %v4666, %v4890
        %v4892 = vpop.f32.mrb[0].mxu0
        %4893 = vmatprep.mubr.f32.mxu0 %v4118
        %4894 = vmatmul.mubr.f32.gmra.mrb[0].mxu0 %v4117
        %v4895 = vpop.f32.mrb[0].mxu0
        %v4896 = vadd.f32 %v4671, %v4895
        %v4897 = vpop.f32.mrb[0].mxu0
        %4898 = vmatprep.mubr.f32.mxu0 %v4124
        %4899 = vmatmul.mubr.f32.gmra.mrb[0].mxu0 %v4123
        %v4900 = vpop.f32.mrb[0].mxu0
        %v4901 = vadd.f32 %v4676, %v4900
        %v4902 = vpop.f32.mrb[0].mxu0
        %4903 = vmatprep.mubr.f32.mxu0 %v4130
        %4904 = vmatmul.mubr.f32.gmra.mrb[0].mxu0 %v4129
        %v4905 = vpop.f32.mrb[0].mxu0
        %v4906 = vadd.f32 %v4681, %v4905
        %v4907 = vpop.f32.mrb[0].mxu0
        %4908 = vmatprep.mubr.f32.mxu0 %v4136
        %4909 = vmatmul.mubr.f32.gmra.mrb[0].mxu0 %v4135
        %v4910 = vpop.f32.mrb[0].mxu0
        %v4911 = vadd.f32 %v4686, %v4910
        %v4912 = vpop.f32.mrb[0].mxu0
        %4913 = vmatprep.mubr.f32.mxu0 %v4142
        %4914 = vmatmul.mubr.f32.gmra.mrb[0].mxu0 %v4141
        %v4915 = vpop.f32.mrb[0].mxu0
        %v4916 = vadd.f32 %v4691, %v4915
        %v4917 = vpop.f32.mrb[0].mxu0
        %4918 = vmatprep.mubr.f32.mxu0 %v4148
        %4919 = vmatmul.mubr.f32.gmra.mrb[0].mxu0 %v4147
        %v4920 = vpop.f32.mrb[0].mxu0
        %v4921 = vadd.f32 %v4696, %v4920
        %v4922 = vpop.f32.mrb[0].mxu0
        %4923 = vmatprep.mubr.f32.mxu0 %v4154
        %4924 = vmatmul.mubr.f32.gmra.mrb[0].mxu0 %v4153
        %v4925 = vpop.f32.mrb[0].mxu0
        %v4926 = vadd.f32 %v4701, %v4925
        %v4927 = vpop.f32.mrb[0].mxu0
        %4928 = vmatprep.mubr.f32.mxu0 %v4160
        %4929 = vmatmul.mubr.f32.gmra.mrb[0].mxu0 %v4159
        %v4930 = vpop.f32.mrb[0].mxu0
        %v4931 = vadd.f32 %v4706, %v4930
        %v4932 = vpop.f32.mrb[0].mxu0
        %4933 = vmatprep.mubr.f32.mxu0 %v4166
        %4934 = vmatmul.mubr.f32.gmra.mrb[0].mxu0 %v4165
        %v4935 = vpop.f32.mrb[0].mxu0
        %v4936 = vadd.f32 %v4711, %v4935
        %v4937 = vpop.f32.mrb[0].mxu0
        %4938 = vdwg.mxu0
        %v4939 = vadd.f32 %v3817, %v4781
        %v4940 = vadd.f32 %v3822, %v4786
        %v4941 = vadd.f32 %v3827, %v4791
        %v4942 = vadd.f32 %v3832, %v4796
        %v4943 = vadd.f32 %v3837, %v4801
        %v4944 = vadd.f32 %v3842, %v4806
        %v4945 = vadd.f32 %v3847, %v4811
        %v4946 = vadd.f32 %v3852, %v4816
        %v4947 = vadd.f32 %v3857, %v4821
        %v4948 = vadd.f32 %v3862, %v4826
        %v4949 = vadd.f32 %v3867, %v4831
        %v4950 = vadd.f32 %v3872, %v4836
        %v4951 = vadd.f32 %v3877, %v4841
        %v4952 = vadd.f32 %v3882, %v4846
        %v4953 = vadd.f32 %v3887, %v4851
        %v4954 = vadd.f32 %v3892, %v4856
        %v4955 = vadd.f32 %v3897, %v4861
        %v4956 = vadd.f32 %v3902, %v4866
        %v4957 = vadd.f32 %v3907, %v4871
        %v4958 = vadd.f32 %v3912, %v4876
        %v4959 = vadd.f32 %v3917, %v4881
        %v4960 = vadd.f32 %v3922, %v4886
        %v4961 = vadd.f32 %v3927, %v4891
        %v4962 = vadd.f32 %v3932, %v4896
        %v4963 = vadd.f32 %v3937, %v4901
        %v4964 = vadd.f32 %v3942, %v4906
        %v4965 = vadd.f32 %v3947, %v4911
        %v4966 = vadd.f32 %v3952, %v4916
        %v4967 = vadd.f32 %v3957, %v4921
        %v4968 = vadd.f32 %v3962, %v4926
        %v4969 = vadd.f32 %v3967, %v4931
        %v4970 = vadd.f32 %v3972, %v4936
        %v4971 = vld [vmem:[#allocation11] sm:$0x1]
        %v4973 = vlaneseq
        %v4974 = vshrl.u32 %v4973, 7
        %v4975 = vsub.s32 0, %v4974
        %v4976 = vrot.slane %v4971, %v4975
        %v4978 = vadd.f32 %v4939, %v4976
        %v4979 = vadd.f32 %v4940, %v4976
        %v4980 = vadd.f32 %v4941, %v4976
        %v4981 = vadd.f32 %v4942, %v4976
        %v4982 = vadd.f32 %v4943, %v4976
        %v4983 = vadd.f32 %v4944, %v4976
        %v4984 = vadd.f32 %v4945, %v4976
        %v4985 = vadd.f32 %v4946, %v4976
        %v4986 = vadd.f32 %v4947, %v4976
        %v4987 = vadd.f32 %v4948, %v4976
        %v4988 = vadd.f32 %v4949, %v4976
        %v4989 = vadd.f32 %v4950, %v4976
        %v4990 = vadd.f32 %v4951, %v4976
        %v4991 = vadd.f32 %v4952, %v4976
        %v4992 = vadd.f32 %v4953, %v4976
        %v4993 = vadd.f32 %v4954, %v4976
        %v4994 = vadd.f32 %v4955, %v4976
        %v4995 = vadd.f32 %v4956, %v4976
        %v4996 = vadd.f32 %v4957, %v4976
        %v4997 = vadd.f32 %v4958, %v4976
        %v4998 = vadd.f32 %v4959, %v4976
        %v4999 = vadd.f32 %v4960, %v4976
        %v5000 = vadd.f32 %v4961, %v4976
        %v5001 = vadd.f32 %v4962, %v4976
        %v5002 = vadd.f32 %v4963, %v4976
        %v5003 = vadd.f32 %v4964, %v4976
        %v5004 = vadd.f32 %v4965, %v4976
        %v5005 = vadd.f32 %v4966, %v4976
        %v5006 = vadd.f32 %v4967, %v4976
        %v5007 = vadd.f32 %v4968, %v4976
        %v5008 = vadd.f32 %v4969, %v4976
        %v5009 = vadd.f32 %v4970, %v4976
        %5010 = vst [vmem:[%s338] sm:$0xff] %v4978
        %5011 = vst [vmem:[%s338 + $0x8] sm:$0xff] %v4979
        %5012 = vst [vmem:[%s338 + $0x10] sm:$0xff] %v4980
        %5013 = vst [vmem:[%s338 + $0x18] sm:$0xff] %v4981
        %5014 = vst [vmem:[%s338 + $0x20] sm:$0xff] %v4982
        %5015 = vst [vmem:[%s338 + $0x28] sm:$0xff] %v4983
        %5016 = vst [vmem:[%s338 + $0x30] sm:$0xff] %v4984
        %5017 = vst [vmem:[%s338 + $0x38] sm:$0xff] %v4985
        %5018 = vst [vmem:[%s338 + $0x40] sm:$0xff] %v4986
        %5019 = vst [vmem:[%s338 + $0x48] sm:$0xff] %v4987
        %5020 = vst [vmem:[%s338 + $0x50] sm:$0xff] %v4988
        %5021 = vst [vmem:[%s338 + $0x58] sm:$0xff] %v4989
        %5022 = vst [vmem:[%s338 + $0x60] sm:$0xff] %v4990
        %5023 = vst [vmem:[%s338 + $0x68] sm:$0xff] %v4991
        %5024 = vst [vmem:[%s338 + $0x70] sm:$0xff] %v4992
        %5025 = vst [vmem:[%s338 + $0x78] sm:$0xff] %v4993
        %5026 = vst [vmem:[%s338 + $0x80] sm:$0xff] %v4994
        %5027 = vst [vmem:[%s338 + $0x88] sm:$0xff] %v4995
        %5028 = vst [vmem:[%s338 + $0x90] sm:$0xff] %v4996
        %5029 = vst [vmem:[%s338 + $0x98] sm:$0xff] %v4997
        %5030 = vst [vmem:[%s338 + $0xa0] sm:$0xff] %v4998
        %5031 = vst [vmem:[%s338 + $0xa8] sm:$0xff] %v4999
        %5032 = vst [vmem:[%s338 + $0xb0] sm:$0xff] %v5000
        %5033 = vst [vmem:[%s338 + $0xb8] sm:$0xff] %v5001
        %5034 = vst [vmem:[%s338 + $0xc0] sm:$0xff] %v5002
        %5035 = vst [vmem:[%s338 + $0xc8] sm:$0xff] %v5003
        %5036 = vst [vmem:[%s338 + $0xd0] sm:$0xff] %v5004
        %5037 = vst [vmem:[%s338 + $0xd8] sm:$0xff] %v5005
        %5038 = vst [vmem:[%s338 + $0xe0] sm:$0xff] %v5006
        %5039 = vst [vmem:[%s338 + $0xe8] sm:$0xff] %v5007
        %5040 = vst [vmem:[%s338 + $0xf0] sm:$0xff] %v5008
        %5041 = vst [vmem:[%s338 + $0xf8] sm:$0xff] %v5009
        %s5042 = sand.u32 %s169, 1
        %s5043 = scalar_lea.sflag [#allocation5], %s5042
        %s5044 = sand.u32 %s169, 1
        %s5045 = smul.addr %s5044, 256
        %s5046 = scalar_lea.vmem [#allocation12], %s5045
        // Predicated region
        $region65: #{pfm_forward.1} parent=43 // pred_check
          %p5047 = pneg %p179
        $region66: #{pfm_forward.1} parent=43 // pred_check_branch
          %5049 = sbr.rel (%p5047) target = $region68
        $region67: #{pfm_forward.1} parent=43 // pred_region
          %s5051 = ssub.s32 4096, 4096
          %5052 = vsyncadd %s5043, %s5051
          %s5053 = smul.addr %s25, 32
          %s5054 = smul.addr %s5053, 128
          %s5055 = scalar_lea.hbm %s6, %s5054
          %s5056 = sshll.u32 %s5046, 4
          %s5057 = int_to_ptr.vmem [resolvable:$true] %s5056
          %5062 = dma.vmem_to_hbm [thread:$0]  %s5057, 4096, %s5055, %s5043, 128, 128, 8
        $region68: #{pfm_forward.1} parent=43 // pred_fallthru
          _
      $region44: #{pfm_forward.1} parent=5 // pred_fallthru
        _
      %p5063 = scmp.le.s32.totalorder 2, %s20
      // Predicated region
      $region69: #{pfm_forward.1} parent=5 // pred_check
        %p5064 = pneg %p5063
      $region70: #{pfm_forward.1} parent=5 // pred_check_branch
        %5066 = sbr.rel (%p5064) target = $region72
      $region71: #{pfm_forward.1} parent=5 // pred_region
        %s5067 = ssub.s32 %s20, 2
        // Predicated region
        $region73: #{pfm_forward.1} parent=71 // pred_check
          %p5068 = pneg %p185
        $region74: #{pfm_forward.1} parent=71 // pred_check_branch
          %5070 = sbr.rel (%p5068) target = $region76
        $region75: #{pfm_forward.1} parent=71 // pred_region
          %s5071 = sand.u32 %s170, 1
          %s5072 = scalar_lea.sflag [#allocation5], %s5071
          %s5073 = sand.u32 %s170, 1
          %s5074 = smul.addr %s5073, 256
          %s5075 = scalar_lea.vmem [#allocation12], %s5074
          %5076 = dma.done %s5072, 4096
        $region76: #{pfm_forward.1} parent=71 // pred_fallthru
          _
      $region72: #{pfm_forward.1} parent=5 // pred_fallthru
        _
    $region6: #{pfm_forward.1} parent=1 // loop_footer
      %s24 = sadd.s32 1, %s20
    $region7: #{pfm_forward.1} parent=1 // loop_footer_branch
      %19 = sbr.rel target = $region3
    $region8: #{pfm_forward.1} parent=1 // loop_exit
      _
    %5077 = vsyncpa [#allocation4], 1
    %s5078 = scalar_lea.sflag [#allocation4], 1
    %5079 = vsyncpa %s5078, 1
    %5080 = vsyncpa [#allocation7], 1
    %5081 = vsyncpa [#allocation10], 1
    %5082 = vsyncpa [#allocation5], 1
    %s5083 = scalar_lea.sflag [#allocation5], 1
    %5084 = vsyncpa %s5083, 1

</llo_original>
